<compile_context>
chip_gen: v6e
topology: v6e:2x2x1
jax: 0.10.0
libtpu: 0.0.40
codegen_flags: <defaults>
</compile_context>

<pallas_src>
import functools

import jax
import jax.numpy as jnp
from jax import lax
from jax.experimental import pallas as pl
from jax.experimental.pallas import tpu as pltpu


def _round_up(a, b):
    return (a + b - 1) // b * b


def _vmem_capacity_bytes():
    try:
        return int(pltpu.get_tpu_info().vmem_capacity_bytes)
    except Exception:
        return 64 << 20  # conservative default: v7x per-TensorCore VMEM


# --------------------------------------------------------------------------
# Kernels
# --------------------------------------------------------------------------
def _ffn_kernel_single(x_ref, g_ref, beta_ref, w1_ref, b1_ref, w2_ref, b2_ref,
                       o_ref, *, d_true):
    """Whole d_ff resident in VMEM: LN -> Linear -> ReLU -> Linear, one row tile."""
    # LayerNorm statistics in f32 (rows arrive as bf16).
    x = x_ref[...].astype(jnp.float32)                       # (tm, Dp)
    inv_d = jnp.float32(1.0 / d_true)
    sum_x = jnp.sum(x, axis=-1, keepdims=True)
    sum_x2 = jnp.sum(x * x, axis=-1, keepdims=True)
    mean = sum_x * inv_d
    # E[x^2] - E[x]^2: zero padding along D contributes nothing.
    var = sum_x2 * inv_d - mean * mean
    xn = (x - mean) * lax.rsqrt(var + 1e-5)
    xn = xn * g_ref[...].astype(jnp.float32) + beta_ref[...].astype(jnp.float32)

    # Linear(d_model -> d_ff) + bias + ReLU  (bf16 operands, f32 accumulate)
    h = jnp.dot(xn.astype(w1_ref.dtype), w1_ref[...],
                preferred_element_type=jnp.float32)
    h = jnp.maximum(h + b1_ref[...].astype(jnp.float32), 0.0)

    # Dropout: inference-mode identity.
    # TODO(synk): training-mode dropout not emitted.

    # Linear(d_ff -> d_model) + bias, lane-dense store.
    y = jnp.dot(h.astype(w2_ref.dtype), w2_ref[...],
                preferred_element_type=jnp.float32)
    o_ref[...] = (y + b2_ref[...].astype(jnp.float32)).astype(o_ref.dtype)


def _ffn_kernel_tiled(x_ref, g_ref, beta_ref, w1_ref, b1_ref, w2_ref, b2_ref,
                      o_ref, xn_ref, acc_ref, *, d_true):
    """F-tiled fallback: one (row-tile, d_ff-tile) step, f32 accumulator."""
    f = pl.program_id(1)
    nf = pl.num_programs(1)

    # LayerNorm once per row tile, cached as bf16 in scratch.
    @pl.when(f == 0)
    def _():
        x = x_ref[...].astype(jnp.float32)
        inv_d = jnp.float32(1.0 / d_true)
        sum_x = jnp.sum(x, axis=-1, keepdims=True)
        sum_x2 = jnp.sum(x * x, axis=-1, keepdims=True)
        mean = sum_x * inv_d
        var = sum_x2 * inv_d - mean * mean
        xn = (x - mean) * lax.rsqrt(var + 1e-5)
        xn = xn * g_ref[...].astype(jnp.float32) + beta_ref[...].astype(jnp.float32)
        xn_ref[...] = xn.astype(xn_ref.dtype)

    h = jnp.dot(xn_ref[...], w1_ref[...], preferred_element_type=jnp.float32)
    h = jnp.maximum(h + b1_ref[...].astype(jnp.float32), 0.0)

    # Dropout: inference-mode identity.
    partial = jnp.dot(h.astype(w2_ref.dtype), w2_ref[...],
                      preferred_element_type=jnp.float32)

    @pl.when(f == 0)
    def _():
        acc_ref[...] = partial          # write first product directly (no zero-init)

    @pl.when(f > 0)
    def _():
        acc_ref[...] += partial

    @pl.when(f == nf - 1)
    def _():
        o_ref[...] = (acc_ref[...] + b2_ref[...].astype(jnp.float32)).astype(o_ref.dtype)


# --------------------------------------------------------------------------
# Wrapper
# --------------------------------------------------------------------------
def prepare_ffn_params(gamma, beta, w1, b1, w2, b2, *, compute_dtype=jnp.bfloat16):
    """Pad to lane-aligned shapes and cast weights to the MXU compute dtype.

    Call ONCE and reuse: this hoists the per-call weight pad + bf16 cast
    (a full HBM read/write of both matrices) out of the hot path.
    """
    D, F = w1.shape
    Dp = _round_up(D, 128)
    Fp = _round_up(F, 128)
    return dict(
        d_model=D, d_ff=F, d_model_padded=Dp, d_ff_padded=Fp,
        compute_dtype=compute_dtype,
        gamma=jnp.pad(gamma, (0, Dp - D)).reshape(1, Dp).astype(jnp.float32),
        beta=jnp.pad(beta, (0, Dp - D)).reshape(1, Dp).astype(jnp.float32),
        w1=jnp.pad(w1, ((0, Dp - D), (0, Fp - F))).astype(compute_dtype),
        b1=jnp.pad(b1, (0, Fp - F)).reshape(1, Fp).astype(jnp.float32),
        w2=jnp.pad(w2, ((0, Fp - F), (0, Dp - D))).astype(compute_dtype),
        b2=jnp.pad(b2, (0, Dp - D)).reshape(1, Dp).astype(jnp.float32),
    )


def feed_forward(x, params):
    """x: (batch, seq, d_model) -> (batch, seq, d_model); params from prepare_ffn_params."""
    B, S, D = x.shape
    assert D == params["d_model"]
    Dp = params["d_model_padded"]
    Fp = params["d_ff_padded"]
    compute_dtype = params["compute_dtype"]
    cbpe = jnp.dtype(compute_dtype).itemsize
    out_dtype = x.dtype
    out_bpe = jnp.dtype(out_dtype).itemsize
    M = B * S

    # ---- chip-aware per-TensorCore VMEM budget ----
    cap = _vmem_capacity_bytes()
    budget = max(min(int(0.8 * cap), cap - (12 << 20)), 16 << 20)

    def footprint(tm, tf, tiled):
        fp = (
            2 * tm * Dp * cbpe                   # x tile (bf16), double-buffered
            + 2 * tm * Dp * out_bpe              # out tile, double-buffered
            + 2 * (Dp * tf + tf * Dp) * cbpe     # W1 + W2 tiles, double-buffered
            + 2 * (tf + 3 * Dp) * 4              # b1 tile + gamma/beta/b2
            + tm * tf * (4 + cbpe)               # f32 h intermediate + bf16 copy
            + 4 * tm * Dp * 4                    # LN f32 temporaries
        )
        if tiled:
            fp += tm * Dp * cbpe + tm * Dp * 4   # xn cache + f32 accumulator
        return fp

    # ---- row-tile cap: multiple of 8, >= 2 row steps when M allows (megacore) ----
    tm_cap = _round_up(M, 8)
    if M >= 16:
        tm_cap = min(tm_cap, _round_up((M + 1) // 2, 8))

    # ---- preferred path: whole d_ff resident -> weights DMA'd exactly once ----
    single = False
    tm = min(512, tm_cap)
    t = tm
    while True:
        if footprint(t, Fp, tiled=False) <= budget:
            tm, single = t, True
            break
        if t <= 8:
            break
        t = max(8, _round_up(t // 2, 8))

    if single:
        tf = Fp
    else:
        # Fallback: tile d_ff; keep tm large so arithmetic intensity vs.
        # re-streamed weights (~tm flops/byte) stays above the HBM roofline.
        tm = min(1024, tm_cap)
        tf_cands = [t for t in (2048, 1024, 512, 256, 128) if t <= Fp and Fp % t == 0]
        tf = tf_cands[0]
        while footprint(tm, tf, tiled=True) > budget:
            smaller = [t for t in tf_cands if t < tf]
            if tf > 512 and smaller:
                tf = smaller[0]
            elif tm > 256:
                tm = max(8, _round_up(tm // 2, 8))
            elif smaller:
                tf = smaller[0]
            elif tm > 8:
                tm = max(8, _round_up(tm // 2, 8))
            else:
                break

    # ---- pad / reshape inputs (zero padding is neutral for LN + matmuls) ----
    Mp = _round_up(M, tm)
    x2 = x.reshape(M, D).astype(compute_dtype)   # bf16 x: halves HBM read + VMEM tile
    if (Mp, Dp) != (M, D):
        x2 = jnp.pad(x2, ((0, Mp - M), (0, Dp - D)))

    gm, bt = params["gamma"], params["beta"]
    w1p, b1p, w2p, b2p = params["w1"], params["b1"], params["w2"], params["b2"]

    n_row = Mp // tm
    vmem_limit = int(min(max(footprint(tm, tf, not single) * 5 // 4 + (4 << 20),
                             16 << 20), budget))

    if single:
        grid = (n_row,)
        in_specs = [
            pl.BlockSpec((tm, Dp), lambda i: (i, 0)),    # x rows tile
            pl.BlockSpec((1, Dp), lambda i: (0, 0)),     # gamma
            pl.BlockSpec((1, Dp), lambda i: (0, 0)),     # beta
            pl.BlockSpec((Dp, Fp), lambda i: (0, 0)),    # W1 (constant block -> one DMA)
            pl.BlockSpec((1, Fp), lambda i: (0, 0)),     # b1
            pl.BlockSpec((Fp, Dp), lambda i: (0, 0)),    # W2 (constant block -> one DMA)
            pl.BlockSpec((1, Dp), lambda i: (0, 0)),     # b2
        ]
        out_specs = pl.BlockSpec((tm, Dp), lambda i: (i, 0))
        scratch_shapes = []
        kernel = functools.partial(_ffn_kernel_single, d_true=float(D))
        dim_sem = ("parallel",)
        weight_reads = 1
    else:
        grid = (n_row, Fp // tf)
        in_specs = [
            pl.BlockSpec((tm, Dp), lambda i, f: (i, 0)),
            pl.BlockSpec((1, Dp), lambda i, f: (0, 0)),
            pl.BlockSpec((1, Dp), lambda i, f: (0, 0)),
            pl.BlockSpec((Dp, tf), lambda i, f: (0, f)),
            pl.BlockSpec((1, tf), lambda i, f: (0, f)),
            pl.BlockSpec((tf, Dp), lambda i, f: (f, 0)),
            pl.BlockSpec((1, Dp), lambda i, f: (0, 0)),
        ]
        out_specs = pl.BlockSpec((tm, Dp), lambda i, f: (i, 0))
        scratch_shapes = [pltpu.VMEM((tm, Dp), compute_dtype),   # cached LN output
                          pltpu.VMEM((tm, Dp), jnp.float32)]     # f32 accumulator
        kernel = functools.partial(_ffn_kernel_tiled, d_true=float(D))
        dim_sem = ("parallel", "arbitrary")
        weight_reads = n_row

    cost = pl.CostEstimate(
        flops=int(4 * Mp * Dp * Fp + 10 * Mp * Dp),
        transcendentals=int(Mp),
        bytes_accessed=int(Mp * Dp * (cbpe + out_bpe)
                           + weight_reads * 2 * Dp * Fp * cbpe
                           + (Fp + 3 * Dp) * 4),
    )

    out = pl.pallas_call(
        kernel,
        out_shape=jax.ShapeDtypeStruct((Mp, Dp), out_dtype),
        grid_spec=pltpu.PrefetchScalarGridSpec(
            num_scalar_prefetch=0,
            grid=grid,
            in_specs=in_specs,
            out_specs=out_specs,
            scratch_shapes=scratch_shapes,
        ),
        compiler_params=pltpu.CompilerParams(
            dimension_semantics=dim_sem,
            vmem_limit_bytes=vmem_limit,
        ),
        cost_estimate=cost,
    )(x2, gm, bt, w1p, b1p, w2p, b2p)

    return out[:M, :D].reshape(B, S, D)


# --------------------------------------------------------------------------
# Reference + demo
# --------------------------------------------------------------------------
def _reference(x, gamma, beta, w1, b1, w2, b2, compute_dtype=jnp.bfloat16):
    """Pure-JAX reference with the same bf16-operand / f32-accumulate matmuls."""
    mean = jnp.mean(x, axis=-1, keepdims=True)
    var = jnp.mean((x - mean) ** 2, axis=-1, keepdims=True)
    xn = (x - mean) / jnp.sqrt(var + 1e-5) * gamma + beta
    h = jnp.dot(xn.astype(compute_dtype), w1.astype(compute_dtype),
                preferred_element_type=jnp.float32) + b1
    h = jnp.maximum(h, 0.0)
    y = jnp.dot(h.astype(compute_dtype), w2.astype(compute_dtype),
                preferred_element_type=jnp.float32) + b2
    return y


if __name__ == "__main__":
    # Small shapes consistent with the module (d_model=512, d_ff=1024).
    B, S, D, F = 2, 8, 512, 1024

    key = jax.random.PRNGKey(0)
    kx, kw1, kb1, kw2, kb2 = jax.random.split(key, 5)

    x = jax.random.normal(kx, (B, S, D), dtype=jnp.float32)

    # Deterministic parameter init mimicking torch.nn.Linear defaults
    # (uniform +-1/sqrt(fan_in)); LayerNorm gamma=1, beta=0.
    lim1 = 1.0 / jnp.sqrt(jnp.float32(D))
    lim2 = 1.0 / jnp.sqrt(jnp.float32(F))
    w1 = jax.random.uniform(kw1, (D, F), jnp.float32, -lim1, lim1)
    b1 = jax.random.uniform(kb1, (F,), jnp.float32, -lim1, lim1)
    w2 = jax.random.uniform(kw2, (F, D), jnp.float32, -lim2, lim2)
    b2 = jax.random.uniform(kb2, (D,), jnp.float32, -lim2, lim2)
    gamma = jnp.ones((D,), jnp.float32)
    beta = jnp.zeros((D,), jnp.float32)

    # Hoisted out of the hot path: pad + bf16-cast weights once, reuse per call.
    params = prepare_ffn_params(gamma, beta, w1, b1, w2, b2)

    out = feed_forward(x, params)
    out = jax.block_until_ready(out)

    ref = _reference(x, gamma, beta, w1, b1, w2, b2)
    assert out.shape == (B, S, D)
    assert out.dtype == x.dtype
    assert jnp.allclose(out, ref, atol=3e-2, rtol=3e-2), "mismatch vs reference"

    print("KERNEL_OK")
</pallas_src>

<mosaic_0001>
module attributes {stable_mosaic.version = 11 : i64} {
  func.func @_ffn_kernel_single(%arg0: i32, %arg1: memref<8x512xbf16, #tpu.memory_space<vmem>>, %arg2: memref<1x512xf32, #tpu.memory_space<vmem>>, %arg3: memref<1x512xf32, #tpu.memory_space<vmem>>, %arg4: memref<512x1024xbf16, #tpu.memory_space<vmem>>, %arg5: memref<1x1024xf32, #tpu.memory_space<vmem>>, %arg6: memref<1024x512xbf16, #tpu.memory_space<vmem>>, %arg7: memref<1x512xf32, #tpu.memory_space<vmem>>, %arg8: memref<8x512xf32, #tpu.memory_space<vmem>>) attributes {dimension_semantics = [#tpu.dimension_semantics<parallel>], iteration_bounds = array<i64: 2>, scalar_prefetch = 0 : i64, scratch_operands = 0 : i64, tpu.core_type = #tpu.core_type<tc>, window_params = [{transform_indices = @transform_0, window_bounds = array<i64: 8, 512>}, {pipeline_mode = #tpu.pipeline_mode<synchronous>, transform_indices = @transform_1, window_bounds = array<i64: 1, 512>}, {pipeline_mode = #tpu.pipeline_mode<synchronous>, transform_indices = @transform_2, window_bounds = array<i64: 1, 512>}, {pipeline_mode = #tpu.pipeline_mode<synchronous>, transform_indices = @transform_3, window_bounds = array<i64: 512, 1024>}, {pipeline_mode = #tpu.pipeline_mode<synchronous>, transform_indices = @transform_4, window_bounds = array<i64: 1, 1024>}, {pipeline_mode = #tpu.pipeline_mode<synchronous>, transform_indices = @transform_5, window_bounds = array<i64: 1024, 512>}, {pipeline_mode = #tpu.pipeline_mode<synchronous>, transform_indices = @transform_6, window_bounds = array<i64: 1, 512>}, {transform_indices = @transform_7, window_bounds = array<i64: 8, 512>}]} {
    %c0 = arith.constant 0 : index
    %c0_0 = arith.constant 0 : index
    %0 = vector.load %arg1[%c0, %c0_0] : memref<8x512xbf16, #tpu.memory_space<vmem>>, vector<8x512xbf16>
    %1 = arith.extf %0 : vector<8x512xbf16> to vector<8x512xf32>
    %cst = arith.constant dense<0.000000e+00> : vector<8xf32>
    %2 = vector.multi_reduction <add>, %1, %cst [1] : vector<8x512xf32> to vector<8xf32>
    %3 = vector.shape_cast %2 : vector<8xf32> to vector<8x1xf32>
    %4 = arith.mulf %1, %1 : vector<8x512xf32>
    %cst_1 = arith.constant dense<0.000000e+00> : vector<8xf32>
    %5 = vector.multi_reduction <add>, %4, %cst_1 [1] : vector<8x512xf32> to vector<8xf32>
    %6 = vector.shape_cast %5 : vector<8xf32> to vector<8x1xf32>
    %cst_2 = arith.constant 0.001953125 : f32
    %7 = vector.broadcast %cst_2 : f32 to vector<8x1xf32>
    %8 = arith.mulf %3, %7 : vector<8x1xf32>
    %cst_3 = arith.constant 0.001953125 : f32
    %9 = vector.broadcast %cst_3 : f32 to vector<8x1xf32>
    %10 = arith.mulf %6, %9 : vector<8x1xf32>
    %11 = arith.mulf %8, %8 : vector<8x1xf32>
    %12 = arith.subf %10, %11 : vector<8x1xf32>
    %13 = vector.broadcast %8 : vector<8x1xf32> to vector<8x512xf32>
    %14 = arith.subf %1, %13 : vector<8x512xf32>
    %cst_4 = arith.constant 9.99999974E-6 : f32
    %15 = vector.broadcast %cst_4 : f32 to vector<8x1xf32>
    %16 = arith.addf %12, %15 : vector<8x1xf32>
    %17 = math.rsqrt %16 : vector<8x1xf32>
    %18 = vector.broadcast %17 : vector<8x1xf32> to vector<8x512xf32>
    %19 = arith.mulf %14, %18 : vector<8x512xf32>
    %c0_5 = arith.constant 0 : index
    %c0_6 = arith.constant 0 : index
    %20 = vector.load %arg2[%c0_5, %c0_6] : memref<1x512xf32, #tpu.memory_space<vmem>>, vector<1x512xf32>
    %21 = vector.broadcast %20 : vector<1x512xf32> to vector<8x512xf32>
    %22 = arith.mulf %19, %21 : vector<8x512xf32>
    %c0_7 = arith.constant 0 : index
    %c0_8 = arith.constant 0 : index
    %23 = vector.load %arg3[%c0_7, %c0_8] : memref<1x512xf32, #tpu.memory_space<vmem>>, vector<1x512xf32>
    %24 = vector.broadcast %23 : vector<1x512xf32> to vector<8x512xf32>
    %25 = arith.addf %22, %24 : vector<8x512xf32>
    %26 = arith.truncf %25 : vector<8x512xf32> to vector<8x512xbf16>
    %c0_9 = arith.constant 0 : index
    %c0_10 = arith.constant 0 : index
    %27 = vector.load %arg4[%c0_9, %c0_10] : memref<512x1024xbf16, #tpu.memory_space<vmem>>, vector<512x1024xbf16>
    %cst_11 = arith.constant dense<0.000000e+00> : vector<8x1024xf32>
    %28 = tpu.matmul %26, %27, %cst_11 {dimension_numbers = #tpu.dot_dimension_numbers<[1], [0], [0], [1], [0, 0, 1, 1], [], []>} : vector<8x512xbf16>, vector<512x1024xbf16>, vector<8x1024xf32> -> vector<8x1024xf32>
    %c0_12 = arith.constant 0 : index
    %c0_13 = arith.constant 0 : index
    %29 = vector.load %arg5[%c0_12, %c0_13] : memref<1x1024xf32, #tpu.memory_space<vmem>>, vector<1x1024xf32>
    %30 = vector.broadcast %29 : vector<1x1024xf32> to vector<8x1024xf32>
    %31 = arith.addf %28, %30 : vector<8x1024xf32>
    %cst_14 = arith.constant 0.000000e+00 : f32
    %32 = vector.broadcast %cst_14 : f32 to vector<8x1024xf32>
    %33 = arith.maximumf %31, %32 : vector<8x1024xf32>
    %34 = arith.truncf %33 : vector<8x1024xf32> to vector<8x1024xbf16>
    %c0_15 = arith.constant 0 : index
    %c0_16 = arith.constant 0 : index
    %35 = vector.load %arg6[%c0_15, %c0_16] : memref<1024x512xbf16, #tpu.memory_space<vmem>>, vector<1024x512xbf16>
    %cst_17 = arith.constant dense<0.000000e+00> : vector<8x512xf32>
    %36 = tpu.matmul %34, %35, %cst_17 {dimension_numbers = #tpu.dot_dimension_numbers<[1], [0], [0], [1], [0, 0, 1, 1], [], []>} : vector<8x1024xbf16>, vector<1024x512xbf16>, vector<8x512xf32> -> vector<8x512xf32>
    %c0_18 = arith.constant 0 : index
    %c0_19 = arith.constant 0 : index
    %37 = vector.load %arg7[%c0_18, %c0_19] : memref<1x512xf32, #tpu.memory_space<vmem>>, vector<1x512xf32>
    %38 = vector.broadcast %37 : vector<1x512xf32> to vector<8x512xf32>
    %39 = arith.addf %36, %38 : vector<8x512xf32>
    %c0_20 = arith.constant 0 : index
    %c0_21 = arith.constant 0 : index
    %40 = vector.load %arg8[%c0_20, %c0_21] : memref<8x512xf32, #tpu.memory_space<vmem>>, vector<8x512xf32>
    tpu.vector_store %arg8[%c0_20, %c0_21], %39 {strides = array<i32>} : memref<8x512xf32, #tpu.memory_space<vmem>>, vector<8x512xf32>,
    return
  }
  func.func @transform_0(%arg0: i32) -> (i32, i32) {
    %c0_i32 = arith.constant 0 : i32
    %c0_i32_0 = arith.constant 0 : i32
    return %arg0, %c0_i32 : i32, i32
  }
  func.func @transform_1(%arg0: i32) -> (i32, i32) {
    %c0_i32 = arith.constant 0 : i32
    %c0_i32_0 = arith.constant 0 : i32
    %c0_i32_1 = arith.constant 0 : i32
    return %c0_i32, %c0_i32_0 : i32, i32
  }
  func.func @transform_2(%arg0: i32) -> (i32, i32) {
    %c0_i32 = arith.constant 0 : i32
    %c0_i32_0 = arith.constant 0 : i32
    %c0_i32_1 = arith.constant 0 : i32
    return %c0_i32, %c0_i32_0 : i32, i32
  }
  func.func @transform_3(%arg0: i32) -> (i32, i32) {
    %c0_i32 = arith.constant 0 : i32
    %c0_i32_0 = arith.constant 0 : i32
    %c0_i32_1 = arith.constant 0 : i32
    return %c0_i32, %c0_i32_0 : i32, i32
  }
  func.func @transform_4(%arg0: i32) -> (i32, i32) {
    %c0_i32 = arith.constant 0 : i32
    %c0_i32_0 = arith.constant 0 : i32
    %c0_i32_1 = arith.constant 0 : i32
    return %c0_i32, %c0_i32_0 : i32, i32
  }
  func.func @transform_5(%arg0: i32) -> (i32, i32) {
    %c0_i32 = arith.constant 0 : i32
    %c0_i32_0 = arith.constant 0 : i32
    %c0_i32_1 = arith.constant 0 : i32
    return %c0_i32, %c0_i32_0 : i32, i32
  }
  func.func @transform_6(%arg0: i32) -> (i32, i32) {
    %c0_i32 = arith.constant 0 : i32
    %c0_i32_0 = arith.constant 0 : i32
    %c0_i32_1 = arith.constant 0 : i32
    return %c0_i32, %c0_i32_0 : i32, i32
  }
  func.func @transform_7(%arg0: i32) -> (i32, i32) {
    %c0_i32 = arith.constant 0 : i32
    %c0_i32_0 = arith.constant 0 : i32
    return %arg0, %c0_i32 : i32, i32
  }
}

</mosaic_0001>

<llo_original>
// kernel: tpu_custom_call.1
$region0: #{tpu_custom_call.1}
  #allocation0 [shape = 'u32[]', space=smem, size = 0x4, offset = 0x4, fixed_abs, tag = 'smem constant byte address 0x4 - core index']
  #allocation1 [shape = 'u32[144,128]{1,0:T(1,128)}', space=vmem, size = 0x12000, scoped, tag = 'internal scratch']
  %s0 = inlined_call_operand.hbm [shape: bf16[16,512], index: 0, kind: input, shape index: {}]
  %s1 = inlined_call_operand.hbm [shape: f32[1,512], index: 1, kind: input, shape index: {}]
  %s2 = inlined_call_operand.hbm [shape: f32[1,512], index: 2, kind: input, shape index: {}]
  %s3 = inlined_call_operand.hbm [shape: bf16[512,1024], index: 3, kind: input, shape index: {}]
  %s4 = inlined_call_operand.hbm [shape: f32[1,1024], index: 4, kind: input, shape index: {}]
  %s5 = inlined_call_operand.hbm [shape: bf16[1024,512], index: 5, kind: input, shape index: {}]
  %s6 = inlined_call_operand.vmem [shape: f32[1,512], index: 6, kind: input, shape index: {}]
  %s7 = inlined_call_operand.hbm [shape: f32[16,512], index: 7, kind: output, shape index: {}]
  %s8 = sld [smem:[#allocation0]]
  $region85: #{tpu_custom_call.1} parent=0
    _
  %s10 = ssub.s32 1, %s8
  %s11 = scalar_select 0, %s10, %s8
  $region1: #{tpu_custom_call.1} parent=0
    #allocation2 [shape = 'u8[16384]{0}', space=vmem, size = 0x4000, scoped, tag = 'input window, operand 0']
    #allocation3 [shape = 's32[2]{0}', space=sflag, size = 0x8, scoped, tag = 'scoped memory for tpu_custom_call.1']
    #allocation4 [shape = 's32[2]{0}', space=sflag, size = 0x8, scoped, tag = 'scoped memory for tpu_custom_call.1']
    #allocation5 [shape = 'u8[2048]{0}', space=vmem, size = 0x800, scoped, tag = 'input window, operand 1, single buffered']
    #allocation6 [shape = 's32[1]{0}', space=sflag, size = 0x4, scoped, tag = 'scoped memory for tpu_custom_call.1']
    #allocation7 [shape = 'u8[2048]{0}', space=vmem, size = 0x800, scoped, tag = 'input window, operand 2, single buffered']
    #allocation8 [shape = 'u8[1048576]{0}', space=vmem, size = 0x100000, scoped, tag = 'input window, operand 3, single buffered']
    #allocation9 [shape = 's32[1]{0}', space=sflag, size = 0x4, scoped, tag = 'scoped memory for tpu_custom_call.1']
    #allocation10 [shape = 'u8[4096]{0}', space=vmem, size = 0x1000, scoped, tag = 'input window, operand 4, single buffered']
    #allocation11 [shape = 'u8[1048576]{0}', space=vmem, size = 0x100000, scoped, tag = 'input window, operand 5, single buffered']
    #allocation12 [shape = 's32[1]{0}', space=sflag, size = 0x4, scoped, tag = 'scoped memory for tpu_custom_call.1']
    #allocation13 [shape = 'u8[32768]{0}', space=vmem, size = 0x8000, scoped, tag = 'output window, operand 0']
    %12 = vsyncpa [#allocation3], 0
    %s13 = scalar_lea.sflag [#allocation3], 1
    %14 = vsyncpa %s13, 0
    %15 = vsyncpa [#allocation6], 0
    %16 = vsyncpa [#allocation9], 0
    %17 = vsyncpa [#allocation12], 0
    %18 = vsyncpa [#allocation4], 0
    %s19 = scalar_lea.sflag [#allocation4], 1
    %20 = vsyncpa %s19, 0
    loop: start=0, step=1, limit=4
    $region2: #{tpu_custom_call.1} parent=1 // loop_pre_header
      _
    $region3: #{tpu_custom_call.1} parent=1 // loop_header
      %s22 = sphi 0, %s26
      %p23 = scmp.ge.s32.totalorder %s22, 4
      %s32 = sphi 0, %s34
      %s35 = sphi 0, %s32
      %s36 = sphi 0, %s35
      %s52 = sphi 0, %s36
      %s56 = sphi 0, %s56
      %s58 = sphi 0, %s56
      %s59 = sphi 0, %s58
      %s73 = sphi 0, %s59
      %s77 = sphi 0, %s77
      %s79 = sphi 0, %s77
      %s80 = sphi 0, %s79
      %s94 = sphi 0, %s80
      %s98 = sphi 0, %s98
      %s100 = sphi 0, %s98
      %s101 = sphi 0, %s100
      %s115 = sphi 0, %s101
      %s119 = sphi 0, %s119
      %s121 = sphi 0, %s119
      %s122 = sphi 0, %s121
      %s136 = sphi 0, %s122
      %s140 = sphi 0, %s140
      %s142 = sphi 0, %s140
      %s143 = sphi 0, %s142
      %s157 = sphi 0, %s143
      %s161 = sphi 0, %s161
      %s163 = sphi 0, %s161
      %s164 = sphi 0, %s163
      %s178 = sphi 0, %s164
      %s184 = sphi 0, %s186
      %s187 = sphi 0, %s184
      %s188 = sphi 0, %s187
      %s204 = sphi 0, %s188
    $region4: #{tpu_custom_call.1} parent=1 // loop_header_branch
      %25 = sbr.rel (%p23) target = $region8
    $region5: #{tpu_custom_call.1} parent=1 // loop_body
      %s27 = ssub.s32 %s22, 1
      %s28 = ssub.s32 %s22, 2
      %s29 = sadd.s32 %s22, 1
      %s30 = ssub.s32 %s22, %s29
      %p31 = scmp.eq.s32.totalorder %s30, 0
      %s33 = sadd.s32 %s32, 1
      %s34 = scalar_select %p31, %s32, %s33
      %p37 = pneg %p31
      %p38 = scmp.eq.s32.totalorder %s22, 1
      %p39 = por %p37, %p38
      %p40 = scmp.ne.s32.totalorder %s32, %s35
      %p41 = scmp.eq.s32.totalorder %s22, 0
      %p42 = por %p40, %p41
      %p43 = scmp.ne.s32.totalorder %s32, %s35
      %p44 = scmp.eq.s32.totalorder %s27, 1
      %p45 = por %p43, %p44
      %p46 = scmp.ne.s32.totalorder %s35, %s36
      %p47 = scmp.eq.s32.totalorder %s27, 0
      %p48 = por %p46, %p47
      %p49 = scmp.ne.s32.totalorder %s35, %s36
      %p50 = scmp.eq.s32.totalorder %s28, 1
      %p51 = por %p49, %p50
      %p53 = scmp.ne.s32.totalorder %s36, %s52
      %p54 = scmp.eq.s32.totalorder %s28, 0
      %p55 = por %p53, %p54
      %s57 = sadd.s32 %s56, 1
      %p60 = scmp.eq.s32.totalorder %s22, 1
      %p61 = scmp.ne.s32.totalorder %s56, %s58
      %p62 = scmp.eq.s32.totalorder %s22, 0
      %p63 = por %p61, %p62
      %p64 = scmp.ne.s32.totalorder %s56, %s58
      %p65 = scmp.eq.s32.totalorder %s27, 1
      %p66 = por %p64, %p65
      %p67 = scmp.ne.s32.totalorder %s58, %s59
      %p68 = scmp.eq.s32.totalorder %s27, 0
      %p69 = por %p67, %p68
      %p70 = scmp.ne.s32.totalorder %s58, %s59
      %p71 = scmp.eq.s32.totalorder %s28, 1
      %p72 = por %p70, %p71
      %p74 = scmp.ne.s32.totalorder %s59, %s73
      %p75 = scmp.eq.s32.totalorder %s28, 0
      %p76 = por %p74, %p75
      %s78 = sadd.s32 %s77, 1
      %p81 = scmp.eq.s32.totalorder %s22, 1
      %p82 = scmp.ne.s32.totalorder %s77, %s79
      %p83 = scmp.eq.s32.totalorder %s22, 0
      %p84 = por %p82, %p83
      %p85 = scmp.ne.s32.totalorder %s77, %s79
      %p86 = scmp.eq.s32.totalorder %s27, 1
      %p87 = por %p85, %p86
      %p88 = scmp.ne.s32.totalorder %s79, %s80
      %p89 = scmp.eq.s32.totalorder %s27, 0
      %p90 = por %p88, %p89
      %p91 = scmp.ne.s32.totalorder %s79, %s80
      %p92 = scmp.eq.s32.totalorder %s28, 1
      %p93 = por %p91, %p92
      %p95 = scmp.ne.s32.totalorder %s80, %s94
      %p96 = scmp.eq.s32.totalorder %s28, 0
      %p97 = por %p95, %p96
      %s99 = sadd.s32 %s98, 1
      %p102 = scmp.eq.s32.totalorder %s22, 1
      %p103 = scmp.ne.s32.totalorder %s98, %s100
      %p104 = scmp.eq.s32.totalorder %s22, 0
      %p105 = por %p103, %p104
      %p106 = scmp.ne.s32.totalorder %s98, %s100
      %p107 = scmp.eq.s32.totalorder %s27, 1
      %p108 = por %p106, %p107
      %p109 = scmp.ne.s32.totalorder %s100, %s101
      %p110 = scmp.eq.s32.totalorder %s27, 0
      %p111 = por %p109, %p110
      %p112 = scmp.ne.s32.totalorder %s100, %s101
      %p113 = scmp.eq.s32.totalorder %s28, 1
      %p114 = por %p112, %p113
      %p116 = scmp.ne.s32.totalorder %s101, %s115
      %p117 = scmp.eq.s32.totalorder %s28, 0
      %p118 = por %p116, %p117
      %s120 = sadd.s32 %s119, 1
      %p123 = scmp.eq.s32.totalorder %s22, 1
      %p124 = scmp.ne.s32.totalorder %s119, %s121
      %p125 = scmp.eq.s32.totalorder %s22, 0
      %p126 = por %p124, %p125
      %p127 = scmp.ne.s32.totalorder %s119, %s121
      %p128 = scmp.eq.s32.totalorder %s27, 1
      %p129 = por %p127, %p128
      %p130 = scmp.ne.s32.totalorder %s121, %s122
      %p131 = scmp.eq.s32.totalorder %s27, 0
      %p132 = por %p130, %p131
      %p133 = scmp.ne.s32.totalorder %s121, %s122
      %p134 = scmp.eq.s32.totalorder %s28, 1
      %p135 = por %p133, %p134
      %p137 = scmp.ne.s32.totalorder %s122, %s136
      %p138 = scmp.eq.s32.totalorder %s28, 0
      %p139 = por %p137, %p138
      %s141 = sadd.s32 %s140, 1
      %p144 = scmp.eq.s32.totalorder %s22, 1
      %p145 = scmp.ne.s32.totalorder %s140, %s142
      %p146 = scmp.eq.s32.totalorder %s22, 0
      %p147 = por %p145, %p146
      %p148 = scmp.ne.s32.totalorder %s140, %s142
      %p149 = scmp.eq.s32.totalorder %s27, 1
      %p150 = por %p148, %p149
      %p151 = scmp.ne.s32.totalorder %s142, %s143
      %p152 = scmp.eq.s32.totalorder %s27, 0
      %p153 = por %p151, %p152
      %p154 = scmp.ne.s32.totalorder %s142, %s143
      %p155 = scmp.eq.s32.totalorder %s28, 1
      %p156 = por %p154, %p155
      %p158 = scmp.ne.s32.totalorder %s143, %s157
      %p159 = scmp.eq.s32.totalorder %s28, 0
      %p160 = por %p158, %p159
      %s162 = sadd.s32 %s161, 1
      %p165 = scmp.eq.s32.totalorder %s22, 1
      %p166 = scmp.ne.s32.totalorder %s161, %s163
      %p167 = scmp.eq.s32.totalorder %s22, 0
      %p168 = por %p166, %p167
      %p169 = scmp.ne.s32.totalorder %s161, %s163
      %p170 = scmp.eq.s32.totalorder %s27, 1
      %p171 = por %p169, %p170
      %p172 = scmp.ne.s32.totalorder %s163, %s164
      %p173 = scmp.eq.s32.totalorder %s27, 0
      %p174 = por %p172, %p173
      %p175 = scmp.ne.s32.totalorder %s163, %s164
      %p176 = scmp.eq.s32.totalorder %s28, 1
      %p177 = por %p175, %p176
      %p179 = scmp.ne.s32.totalorder %s164, %s178
      %p180 = scmp.eq.s32.totalorder %s28, 0
      %p181 = por %p179, %p180
      %s182 = ssub.s32 %s22, %s29
      %p183 = scmp.eq.s32.totalorder %s182, 0
      %s185 = sadd.s32 %s184, 1
      %s186 = scalar_select %p183, %s184, %s185
      %p189 = pneg %p183
      %p190 = scmp.eq.s32.totalorder %s22, 1
      %p191 = por %p189, %p190
      %p192 = scmp.ne.s32.totalorder %s184, %s187
      %p193 = scmp.eq.s32.totalorder %s22, 0
      %p194 = por %p192, %p193
      %p195 = scmp.ne.s32.totalorder %s184, %s187
      %p196 = scmp.eq.s32.totalorder %s27, 1
      %p197 = por %p195, %p196
      %p198 = scmp.ne.s32.totalorder %s187, %s188
      %p199 = scmp.eq.s32.totalorder %s27, 0
      %p200 = por %p198, %p199
      %p201 = scmp.ne.s32.totalorder %s187, %s188
      %p202 = scmp.eq.s32.totalorder %s28, 1
      %p203 = por %p201, %p202
      %p205 = scmp.ne.s32.totalorder %s188, %s204
      %p206 = scmp.eq.s32.totalorder %s28, 0
      %p207 = por %p205, %p206
      %p208 = scmp.le.s32.totalorder 1, %s22
      %p209 = scmp.lt.s32.totalorder %s22, 3
      %p210 = pnand %p208, %p209
      %p211 = pneg %p210
      // Predicated region
      $region9: #{tpu_custom_call.1} parent=5 // pred_check
        _
      $region10: #{tpu_custom_call.1} parent=5 // pred_check_branch
        %213 = sbr.rel (%p210) target = $region12
      $region11: #{tpu_custom_call.1} parent=5 // pred_region
        %s214 = ssub.s32 %s22, 1
        // Predicated region
        $region13: #{tpu_custom_call.1} parent=11 // pred_check
          %p215 = pneg %p69
        $region14: #{tpu_custom_call.1} parent=11 // pred_check_branch
          %217 = sbr.rel (%p215) target = $region16
        $region15: #{tpu_custom_call.1} parent=11 // pred_region
          %s219 = ssub.s32 64, 64
          %220 = vsyncadd [#allocation6], %s219
          %s222 = sshll.u32 [#allocation5], 4
          %s223 = int_to_ptr.vmem [resolvable:$true] %s222
          %225 = dma.hbm_to_vmem [thread:$0]  %s1, 64, %s223, [#allocation6]
        $region16: #{tpu_custom_call.1} parent=11 // pred_fallthru
          _
        // Predicated region
        $region17: #{tpu_custom_call.1} parent=11 // pred_check
          %p226 = pneg %p90
        $region18: #{tpu_custom_call.1} parent=11 // pred_check_branch
          %228 = sbr.rel (%p226) target = $region20
        $region19: #{tpu_custom_call.1} parent=11 // pred_region
          %s230 = ssub.s32 64, 64
          %231 = vsyncadd [#allocation6], %s230
          %s233 = sshll.u32 [#allocation7], 4
          %s234 = int_to_ptr.vmem [resolvable:$true] %s233
          %236 = dma.hbm_to_vmem [thread:$0]  %s2, 64, %s234, [#allocation6]
        $region20: #{tpu_custom_call.1} parent=11 // pred_fallthru
          _
        // Predicated region
        $region21: #{tpu_custom_call.1} parent=11 // pred_check
          %p237 = pneg %p111
        $region22: #{tpu_custom_call.1} parent=11 // pred_check_branch
          %239 = sbr.rel (%p237) target = $region24
        $region23: #{tpu_custom_call.1} parent=11 // pred_region
          %s241 = ssub.s32 32768, 32768
          %242 = vsyncadd [#allocation9], %s241
          %s243 = sshll.u32 [#allocation8], 4
          %s244 = int_to_ptr.vmem [resolvable:$true] %s243
          %249 = dma.hbm_to_vmem [thread:$0]  %s3, 32768, %s244, [#allocation9], 512, 512, 32
        $region24: #{tpu_custom_call.1} parent=11 // pred_fallthru
          _
        // Predicated region
        $region25: #{tpu_custom_call.1} parent=11 // pred_check
          %p250 = pneg %p132
        $region26: #{tpu_custom_call.1} parent=11 // pred_check_branch
          %252 = sbr.rel (%p250) target = $region28
        $region27: #{tpu_custom_call.1} parent=11 // pred_region
          %s254 = ssub.s32 128, 128
          %255 = vsyncadd [#allocation9], %s254
          %s257 = sshll.u32 [#allocation10], 4
          %s258 = int_to_ptr.vmem [resolvable:$true] %s257
          %260 = dma.hbm_to_vmem [thread:$0]  %s4, 128, %s258, [#allocation9]
        $region28: #{tpu_custom_call.1} parent=11 // pred_fallthru
          _
        // Predicated region
        $region29: #{tpu_custom_call.1} parent=11 // pred_check
          %p261 = pneg %p153
        $region30: #{tpu_custom_call.1} parent=11 // pred_check_branch
          %263 = sbr.rel (%p261) target = $region32
        $region31: #{tpu_custom_call.1} parent=11 // pred_region
          %s265 = ssub.s32 32768, 32768
          %266 = vsyncadd [#allocation12], %s265
          %s267 = sshll.u32 [#allocation11], 4
          %s268 = int_to_ptr.vmem [resolvable:$true] %s267
          %273 = dma.hbm_to_vmem [thread:$0]  %s5, 32768, %s268, [#allocation12], 256, 256, 16
        $region32: #{tpu_custom_call.1} parent=11 // pred_fallthru
          _
        // Predicated region
        $region33: #{tpu_custom_call.1} parent=11 // pred_check
          %p274 = pneg %p174
        $region34: #{tpu_custom_call.1} parent=11 // pred_check_branch
          %276 = sbr.rel (%p274) target = $region36
        $region35: #{tpu_custom_call.1} parent=11 // pred_region
          _
        $region36: #{tpu_custom_call.1} parent=11 // pred_fallthru
          _
      $region12: #{tpu_custom_call.1} parent=5 // pred_fallthru
        _
      %p277 = scmp.lt.s32.totalorder %s22, 2
      // Predicated region
      $region37: #{tpu_custom_call.1} parent=5 // pred_check
        %p278 = pneg %p277
      $region38: #{tpu_custom_call.1} parent=5 // pred_check_branch
        %280 = sbr.rel (%p278) target = $region40
      $region39: #{tpu_custom_call.1} parent=5 // pred_region
        // Predicated region
        $region41: #{tpu_custom_call.1} parent=39 // pred_check
          %p281 = pneg %p42
        $region42: #{tpu_custom_call.1} parent=39 // pred_check_branch
          %283 = sbr.rel (%p281) target = $region44
        $region43: #{tpu_custom_call.1} parent=39 // pred_region
          %s284 = sand.u32 %s32, 1
          %s285 = scalar_lea.sflag [#allocation3], %s284
          %s286 = sand.u32 %s32, 1
          %s287 = smul.addr %s286, 16
          %s288 = scalar_lea.vmem [#allocation2], %s287
          %s290 = ssub.s32 256, 256
          %291 = vsyncadd %s285, %s290
          %s292 = smul.addr %s22, 4
          %s293 = smul.addr %s292, 64
          %s294 = scalar_lea.hbm %s0, %s293
          %s296 = sshll.u32 %s288, 4
          %s297 = int_to_ptr.vmem [resolvable:$true] %s296
          %299 = dma.hbm_to_vmem [thread:$0]  %s294, 256, %s297, %s285
        $region44: #{tpu_custom_call.1} parent=39 // pred_fallthru
          _
      $region40: #{tpu_custom_call.1} parent=5 // pred_fallthru
        _
      %p300 = scmp.le.s32.totalorder 1, %s22
      %p301 = scmp.lt.s32.totalorder %s22, 3
      %p302 = pnand %p300, %p301
      %p303 = pneg %p302
      // Predicated region
      $region45: #{tpu_custom_call.1} parent=5 // pred_check
        _
      $region46: #{tpu_custom_call.1} parent=5 // pred_check_branch
        %305 = sbr.rel (%p302) target = $region48
      $region47: #{tpu_custom_call.1} parent=5 // pred_region
        %s306 = ssub.s32 %s22, 1
        %s307 = sand.u32 %s35, 1
        %s308 = scalar_lea.sflag [#allocation3], %s307
        %s309 = sand.u32 %s35, 1
        %s310 = smul.addr %s309, 16
        %s311 = scalar_lea.vmem [#allocation2], %s310
        // Predicated region
        $region49: #{tpu_custom_call.1} parent=47 // pred_check
          %p312 = pneg %p48
        $region50: #{tpu_custom_call.1} parent=47 // pred_check_branch
          %314 = sbr.rel (%p312) target = $region52
        $region51: #{tpu_custom_call.1} parent=47 // pred_region
          %315 = dma.done %s308, 256
        $region52: #{tpu_custom_call.1} parent=47 // pred_fallthru
          _
        // Predicated region
        $region53: #{tpu_custom_call.1} parent=47 // pred_check
          %p316 = pneg %p69
        $region54: #{tpu_custom_call.1} parent=47 // pred_check_branch
          %318 = sbr.rel (%p316) target = $region56
        $region55: #{tpu_custom_call.1} parent=47 // pred_region
          %319 = dma.done [#allocation6], 64
        $region56: #{tpu_custom_call.1} parent=47 // pred_fallthru
          _
        // Predicated region
        $region57: #{tpu_custom_call.1} parent=47 // pred_check
          %p320 = pneg %p90
        $region58: #{tpu_custom_call.1} parent=47 // pred_check_branch
          %322 = sbr.rel (%p320) target = $region60
        $region59: #{tpu_custom_call.1} parent=47 // pred_region
          %323 = dma.done [#allocation6], 64
        $region60: #{tpu_custom_call.1} parent=47 // pred_fallthru
          _
        // Predicated region
        $region61: #{tpu_custom_call.1} parent=47 // pred_check
          %p324 = pneg %p111
        $region62: #{tpu_custom_call.1} parent=47 // pred_check_branch
          %326 = sbr.rel (%p324) target = $region64
        $region63: #{tpu_custom_call.1} parent=47 // pred_region
          %327 = dma.done [#allocation9], 32768
        $region64: #{tpu_custom_call.1} parent=47 // pred_fallthru
          _
        // Predicated region
        $region65: #{tpu_custom_call.1} parent=47 // pred_check
          %p328 = pneg %p132
        $region66: #{tpu_custom_call.1} parent=47 // pred_check_branch
          %330 = sbr.rel (%p328) target = $region68
        $region67: #{tpu_custom_call.1} parent=47 // pred_region
          %331 = dma.done [#allocation9], 128
        $region68: #{tpu_custom_call.1} parent=47 // pred_fallthru
          _
        // Predicated region
        $region69: #{tpu_custom_call.1} parent=47 // pred_check
          %p332 = pneg %p153
        $region70: #{tpu_custom_call.1} parent=47 // pred_check_branch
          %334 = sbr.rel (%p332) target = $region72
        $region71: #{tpu_custom_call.1} parent=47 // pred_region
          %335 = dma.done [#allocation12], 32768
        $region72: #{tpu_custom_call.1} parent=47 // pred_fallthru
          _
        %s336 = sand.u32 %s35, 1
        %s337 = scalar_lea.sflag [#allocation3], %s336
        %s338 = sand.u32 %s35, 1
        %s339 = smul.addr %s338, 16
        %s340 = scalar_lea.vmem [#allocation2], %s339
        %p341 = pneg %p48
        %p342 = pneg %p45
        %p343 = pneg %p69
        %p344 = pneg %p66
        %p345 = pneg %p90
        %p346 = pneg %p87
        %p347 = pneg %p111
        %p348 = pneg %p108
        %p349 = pneg %p132
        %p350 = pneg %p129
        %p351 = pneg %p153
        %p352 = pneg %p150
        %p353 = pneg %p174
        %p354 = pneg %p171
        %p355 = pneg %p200
        %p356 = pneg %p197
        %s357 = sand.u32 %s187, 1
        %s358 = scalar_lea.sflag [#allocation4], %s357
        %s359 = sand.u32 %s187, 1
        %s360 = smul.addr %s359, 32
        %s361 = scalar_lea.vmem [#allocation13], %s360
        %v362 = vld [vmem:[%s311] sm:$0xff]
        %v363 = vld [vmem:[%s311 + $0x8] sm:$0xff]
        %v364 = vunpack.c.l.bf16 %v362
        %v365 = vunpack.c.h.bf16 %v362
        %v366 = vunpack.c.l.bf16 %v363
        %v367 = vunpack.c.h.bf16 %v363
        %v368 = vadd.f32 %v364, %v365
        %v369 = vadd.f32 %v368, %v366
        %v370 = vadd.f32 %v369, %v367
        %371 = vadd.xlane.f32.xlu0 %v370
        %v372 = vpop.xlane.xlu0 %371
        %v373 = vmul.f32 %v364, %v364
        %v374 = vmul.f32 %v365, %v365
        %v375 = vmul.f32 %v366, %v366
        %v376 = vmul.f32 %v367, %v367
        %v377 = vadd.f32 %v373, %v374
        %v378 = vadd.f32 %v377, %v375
        %v379 = vadd.f32 %v378, %v376
        %380 = vadd.xlane.f32.xlu0 %v379
        %v381 = vpop.xlane.xlu0 %380
        %v382 = vmul.f32 %v372, 0.001953125
        %v383 = vmul.f32 %v381, 0.001953125
        %v384 = vmul.f32 %v382, %v382
        %v385 = vsub.f32 %v383, %v384
        %v386 = vsub.f32 %v364, %v382
        %v387 = vsub.f32 %v365, %v382
        %v388 = vsub.f32 %v366, %v382
        %v389 = vsub.f32 %v367, %v382
        %v390 = vadd.f32 %v385, 1e-05
        %v391 = vrsqrt.pop %v390
        %v392 = vmul.f32 %v386, %v391
        %v393 = vmul.f32 %v387, %v391
        %v394 = vmul.f32 %v388, %v391
        %v395 = vmul.f32 %v389, %v391
        %v396 = vld [vmem:[#allocation5] sm:$0xf]
        %v398 = vlaneseq
        %v399 = vshrl.u32 %v398, 7
        %v400 = vsub.s32 0, %v399
        %v401 = vrot.slane %v396, %v400
        %v402 = vlaneseq
        %v403 = vshrl.u32 %v402, 7
        %v404 = vsub.s32 1, %v403
        %v405 = vrot.slane %v396, %v404
        %v406 = vlaneseq
        %v407 = vshrl.u32 %v406, 7
        %v408 = vsub.s32 2, %v407
        %v409 = vrot.slane %v396, %v408
        %v410 = vlaneseq
        %v411 = vshrl.u32 %v410, 7
        %v412 = vsub.s32 3, %v411
        %v413 = vrot.slane %v396, %v412
        %v418 = vmul.f32 %v392, %v401
        %v419 = vmul.f32 %v393, %v405
        %v420 = vmul.f32 %v394, %v409
        %v421 = vmul.f32 %v395, %v413
        %v422 = vld [vmem:[#allocation7] sm:$0xf]
        %v424 = vlaneseq
        %v425 = vshrl.u32 %v424, 7
        %v426 = vsub.s32 0, %v425
        %v427 = vrot.slane %v422, %v426
        %v428 = vlaneseq
        %v429 = vshrl.u32 %v428, 7
        %v430 = vsub.s32 1, %v429
        %v431 = vrot.slane %v422, %v430
        %v432 = vlaneseq
        %v433 = vshrl.u32 %v432, 7
        %v434 = vsub.s32 2, %v433
        %v435 = vrot.slane %v422, %v434
        %v436 = vlaneseq
        %v437 = vshrl.u32 %v436, 7
        %v438 = vsub.s32 3, %v437
        %v439 = vrot.slane %v422, %v438
        %v444 = vadd.f32 %v418, %v427
        %v445 = vadd.f32 %v419, %v431
        %v446 = vadd.f32 %v420, %v435
        %v447 = vadd.f32 %v421, %v439
        %v448 = vpack.c.bf16 %v444, %v444
        %v449 = vpack.c.bf16 %v445, %v445
        %v450 = vpack.c.bf16 %v446, %v446
        %v451 = vpack.c.bf16 %v447, %v447
        %v452 = vld [vmem:[#allocation8] sm:$0xff]
        %v453 = vld [vmem:[#allocation8 + $0x8] sm:$0xff]
        %v454 = vld [vmem:[#allocation8 + $0x10] sm:$0xff]
        %v455 = vld [vmem:[#allocation8 + $0x18] sm:$0xff]
        %v456 = vld [vmem:[#allocation8 + $0x20] sm:$0xff]
        %v457 = vld [vmem:[#allocation8 + $0x28] sm:$0xff]
        %v458 = vld [vmem:[#allocation8 + $0x30] sm:$0xff]
        %v459 = vld [vmem:[#allocation8 + $0x38] sm:$0xff]
        %v460 = vld [vmem:[#allocation8 + $0x40] sm:$0xff]
        %v461 = vld [vmem:[#allocation8 + $0x48] sm:$0xff]
        %v462 = vld [vmem:[#allocation8 + $0x50] sm:$0xff]
        %v463 = vld [vmem:[#allocation8 + $0x58] sm:$0xff]
        %v464 = vld [vmem:[#allocation8 + $0x60] sm:$0xff]
        %v465 = vld [vmem:[#allocation8 + $0x68] sm:$0xff]
        %v466 = vld [vmem:[#allocation8 + $0x70] sm:$0xff]
        %v467 = vld [vmem:[#allocation8 + $0x78] sm:$0xff]
        %v468 = vld [vmem:[#allocation8 + $0x80] sm:$0xff]
        %v469 = vld [vmem:[#allocation8 + $0x88] sm:$0xff]
        %v470 = vld [vmem:[#allocation8 + $0x90] sm:$0xff]
        %v471 = vld [vmem:[#allocation8 + $0x98] sm:$0xff]
        %v472 = vld [vmem:[#allocation8 + $0xa0] sm:$0xff]
        %v473 = vld [vmem:[#allocation8 + $0xa8] sm:$0xff]
        %v474 = vld [vmem:[#allocation8 + $0xb0] sm:$0xff]
        %v475 = vld [vmem:[#allocation8 + $0xb8] sm:$0xff]
        %v476 = vld [vmem:[#allocation8 + $0xc0] sm:$0xff]
        %v477 = vld [vmem:[#allocation8 + $0xc8] sm:$0xff]
        %v478 = vld [vmem:[#allocation8 + $0xd0] sm:$0xff]
        %v479 = vld [vmem:[#allocation8 + $0xd8] sm:$0xff]
        %v480 = vld [vmem:[#allocation8 + $0xe0] sm:$0xff]
        %v481 = vld [vmem:[#allocation8 + $0xe8] sm:$0xff]
        %v482 = vld [vmem:[#allocation8 + $0xf0] sm:$0xff]
        %v483 = vld [vmem:[#allocation8 + $0xf8] sm:$0xff]
        %v484 = vld [vmem:[#allocation8 + $0x100] sm:$0xff]
        %v485 = vld [vmem:[#allocation8 + $0x108] sm:$0xff]
        %v486 = vld [vmem:[#allocation8 + $0x110] sm:$0xff]
        %v487 = vld [vmem:[#allocation8 + $0x118] sm:$0xff]
        %v488 = vld [vmem:[#allocation8 + $0x120] sm:$0xff]
        %v489 = vld [vmem:[#allocation8 + $0x128] sm:$0xff]
        %v490 = vld [vmem:[#allocation8 + $0x130] sm:$0xff]
        %v491 = vld [vmem:[#allocation8 + $0x138] sm:$0xff]
        %v492 = vld [vmem:[#allocation8 + $0x140] sm:$0xff]
        %v493 = vld [vmem:[#allocation8 + $0x148] sm:$0xff]
        %v494 = vld [vmem:[#allocation8 + $0x150] sm:$0xff]
        %v495 = vld [vmem:[#allocation8 + $0x158] sm:$0xff]
        %v496 = vld [vmem:[#allocation8 + $0x160] sm:$0xff]
        %v497 = vld [vmem:[#allocation8 + $0x168] sm:$0xff]
        %v498 = vld [vmem:[#allocation8 + $0x170] sm:$0xff]
        %v499 = vld [vmem:[#allocation8 + $0x178] sm:$0xff]
        %v500 = vld [vmem:[#allocation8 + $0x180] sm:$0xff]
        %v501 = vld [vmem:[#allocation8 + $0x188] sm:$0xff]
        %v502 = vld [vmem:[#allocation8 + $0x190] sm:$0xff]
        %v503 = vld [vmem:[#allocation8 + $0x198] sm:$0xff]
        %v504 = vld [vmem:[#allocation8 + $0x1a0] sm:$0xff]
        %v505 = vld [vmem:[#allocation8 + $0x1a8] sm:$0xff]
        %v506 = vld [vmem:[#allocation8 + $0x1b0] sm:$0xff]
        %v507 = vld [vmem:[#allocation8 + $0x1b8] sm:$0xff]
        %v508 = vld [vmem:[#allocation8 + $0x1c0] sm:$0xff]
        %v509 = vld [vmem:[#allocation8 + $0x1c8] sm:$0xff]
        %v510 = vld [vmem:[#allocation8 + $0x1d0] sm:$0xff]
        %v511 = vld [vmem:[#allocation8 + $0x1d8] sm:$0xff]
        %v512 = vld [vmem:[#allocation8 + $0x1e0] sm:$0xff]
        %v513 = vld [vmem:[#allocation8 + $0x1e8] sm:$0xff]
        %v514 = vld [vmem:[#allocation8 + $0x1f0] sm:$0xff]
        %v515 = vld [vmem:[#allocation8 + $0x1f8] sm:$0xff]
        %v516 = vld [vmem:[#allocation8 + $0x200] sm:$0xff]
        %v517 = vld [vmem:[#allocation8 + $0x208] sm:$0xff]
        %v518 = vld [vmem:[#allocation8 + $0x210] sm:$0xff]
        %v519 = vld [vmem:[#allocation8 + $0x218] sm:$0xff]
        %v520 = vld [vmem:[#allocation8 + $0x220] sm:$0xff]
        %v521 = vld [vmem:[#allocation8 + $0x228] sm:$0xff]
        %v522 = vld [vmem:[#allocation8 + $0x230] sm:$0xff]
        %v523 = vld [vmem:[#allocation8 + $0x238] sm:$0xff]
        %v524 = vld [vmem:[#allocation8 + $0x240] sm:$0xff]
        %v525 = vld [vmem:[#allocation8 + $0x248] sm:$0xff]
        %v526 = vld [vmem:[#allocation8 + $0x250] sm:$0xff]
        %v527 = vld [vmem:[#allocation8 + $0x258] sm:$0xff]
        %v528 = vld [vmem:[#allocation8 + $0x260] sm:$0xff]
        %v529 = vld [vmem:[#allocation8 + $0x268] sm:$0xff]
        %v530 = vld [vmem:[#allocation8 + $0x270] sm:$0xff]
        %v531 = vld [vmem:[#allocation8 + $0x278] sm:$0xff]
        %v532 = vld [vmem:[#allocation8 + $0x280] sm:$0xff]
        %v533 = vld [vmem:[#allocation8 + $0x288] sm:$0xff]
        %v534 = vld [vmem:[#allocation8 + $0x290] sm:$0xff]
        %v535 = vld [vmem:[#allocation8 + $0x298] sm:$0xff]
        %v536 = vld [vmem:[#allocation8 + $0x2a0] sm:$0xff]
        %v537 = vld [vmem:[#allocation8 + $0x2a8] sm:$0xff]
        %v538 = vld [vmem:[#allocation8 + $0x2b0] sm:$0xff]
        %v539 = vld [vmem:[#allocation8 + $0x2b8] sm:$0xff]
        %v540 = vld [vmem:[#allocation8 + $0x2c0] sm:$0xff]
        %v541 = vld [vmem:[#allocation8 + $0x2c8] sm:$0xff]
        %v542 = vld [vmem:[#allocation8 + $0x2d0] sm:$0xff]
        %v543 = vld [vmem:[#allocation8 + $0x2d8] sm:$0xff]
        %v544 = vld [vmem:[#allocation8 + $0x2e0] sm:$0xff]
        %v545 = vld [vmem:[#allocation8 + $0x2e8] sm:$0xff]
        %v546 = vld [vmem:[#allocation8 + $0x2f0] sm:$0xff]
        %v547 = vld [vmem:[#allocation8 + $0x2f8] sm:$0xff]
        %v548 = vld [vmem:[#allocation8 + $0x300] sm:$0xff]
        %v549 = vld [vmem:[#allocation8 + $0x308] sm:$0xff]
        %v550 = vld [vmem:[#allocation8 + $0x310] sm:$0xff]
        %v551 = vld [vmem:[#allocation8 + $0x318] sm:$0xff]
        %v552 = vld [vmem:[#allocation8 + $0x320] sm:$0xff]
        %v553 = vld [vmem:[#allocation8 + $0x328] sm:$0xff]
        %v554 = vld [vmem:[#allocation8 + $0x330] sm:$0xff]
        %v555 = vld [vmem:[#allocation8 + $0x338] sm:$0xff]
        %v556 = vld [vmem:[#allocation8 + $0x340] sm:$0xff]
        %v557 = vld [vmem:[#allocation8 + $0x348] sm:$0xff]
        %v558 = vld [vmem:[#allocation8 + $0x350] sm:$0xff]
        %v559 = vld [vmem:[#allocation8 + $0x358] sm:$0xff]
        %v560 = vld [vmem:[#allocation8 + $0x360] sm:$0xff]
        %v561 = vld [vmem:[#allocation8 + $0x368] sm:$0xff]
        %v562 = vld [vmem:[#allocation8 + $0x370] sm:$0xff]
        %v563 = vld [vmem:[#allocation8 + $0x378] sm:$0xff]
        %v564 = vld [vmem:[#allocation8 + $0x380] sm:$0xff]
        %v565 = vld [vmem:[#allocation8 + $0x388] sm:$0xff]
        %v566 = vld [vmem:[#allocation8 + $0x390] sm:$0xff]
        %v567 = vld [vmem:[#allocation8 + $0x398] sm:$0xff]
        %v568 = vld [vmem:[#allocation8 + $0x3a0] sm:$0xff]
        %v569 = vld [vmem:[#allocation8 + $0x3a8] sm:$0xff]
        %v570 = vld [vmem:[#allocation8 + $0x3b0] sm:$0xff]
        %v571 = vld [vmem:[#allocation8 + $0x3b8] sm:$0xff]
        %v572 = vld [vmem:[#allocation8 + $0x3c0] sm:$0xff]
        %v573 = vld [vmem:[#allocation8 + $0x3c8] sm:$0xff]
        %v574 = vld [vmem:[#allocation8 + $0x3d0] sm:$0xff]
        %v575 = vld [vmem:[#allocation8 + $0x3d8] sm:$0xff]
        %v576 = vld [vmem:[#allocation8 + $0x3e0] sm:$0xff]
        %v577 = vld [vmem:[#allocation8 + $0x3e8] sm:$0xff]
        %v578 = vld [vmem:[#allocation8 + $0x3f0] sm:$0xff]
        %v579 = vld [vmem:[#allocation8 + $0x3f8] sm:$0xff]
        %v580 = vld [vmem:[#allocation8 + $0x400] sm:$0xff]
        %v581 = vld [vmem:[#allocation8 + $0x408] sm:$0xff]
        %v582 = vld [vmem:[#allocation8 + $0x410] sm:$0xff]
        %v583 = vld [vmem:[#allocation8 + $0x418] sm:$0xff]
        %v584 = vld [vmem:[#allocation8 + $0x420] sm:$0xff]
        %v585 = vld [vmem:[#allocation8 + $0x428] sm:$0xff]
        %v586 = vld [vmem:[#allocation8 + $0x430] sm:$0xff]
        %v587 = vld [vmem:[#allocation8 + $0x438] sm:$0xff]
        %v588 = vld [vmem:[#allocation8 + $0x440] sm:$0xff]
        %v589 = vld [vmem:[#allocation8 + $0x448] sm:$0xff]
        %v590 = vld [vmem:[#allocation8 + $0x450] sm:$0xff]
        %v591 = vld [vmem:[#allocation8 + $0x458] sm:$0xff]
        %v592 = vld [vmem:[#allocation8 + $0x460] sm:$0xff]
        %v593 = vld [vmem:[#allocation8 + $0x468] sm:$0xff]
        %v594 = vld [vmem:[#allocation8 + $0x470] sm:$0xff]
        %v595 = vld [vmem:[#allocation8 + $0x478] sm:$0xff]
        %v596 = vld [vmem:[#allocation8 + $0x480] sm:$0xff]
        %v597 = vld [vmem:[#allocation8 + $0x488] sm:$0xff]
        %v598 = vld [vmem:[#allocation8 + $0x490] sm:$0xff]
        %v599 = vld [vmem:[#allocation8 + $0x498] sm:$0xff]
        %v600 = vld [vmem:[#allocation8 + $0x4a0] sm:$0xff]
        %v601 = vld [vmem:[#allocation8 + $0x4a8] sm:$0xff]
        %v602 = vld [vmem:[#allocation8 + $0x4b0] sm:$0xff]
        %v603 = vld [vmem:[#allocation8 + $0x4b8] sm:$0xff]
        %v604 = vld [vmem:[#allocation8 + $0x4c0] sm:$0xff]
        %v605 = vld [vmem:[#allocation8 + $0x4c8] sm:$0xff]
        %v606 = vld [vmem:[#allocation8 + $0x4d0] sm:$0xff]
        %v607 = vld [vmem:[#allocation8 + $0x4d8] sm:$0xff]
        %v608 = vld [vmem:[#allocation8 + $0x4e0] sm:$0xff]
        %v609 = vld [vmem:[#allocation8 + $0x4e8] sm:$0xff]
        %v610 = vld [vmem:[#allocation8 + $0x4f0] sm:$0xff]
        %v611 = vld [vmem:[#allocation8 + $0x4f8] sm:$0xff]
        %v612 = vld [vmem:[#allocation8 + $0x500] sm:$0xff]
        %v613 = vld [vmem:[#allocation8 + $0x508] sm:$0xff]
        %v614 = vld [vmem:[#allocation8 + $0x510] sm:$0xff]
        %v615 = vld [vmem:[#allocation8 + $0x518] sm:$0xff]
        %v616 = vld [vmem:[#allocation8 + $0x520] sm:$0xff]
        %v617 = vld [vmem:[#allocation8 + $0x528] sm:$0xff]
        %v618 = vld [vmem:[#allocation8 + $0x530] sm:$0xff]
        %v619 = vld [vmem:[#allocation8 + $0x538] sm:$0xff]
        %v620 = vld [vmem:[#allocation8 + $0x540] sm:$0xff]
        %v621 = vld [vmem:[#allocation8 + $0x548] sm:$0xff]
        %v622 = vld [vmem:[#allocation8 + $0x550] sm:$0xff]
        %v623 = vld [vmem:[#allocation8 + $0x558] sm:$0xff]
        %v624 = vld [vmem:[#allocation8 + $0x560] sm:$0xff]
        %v625 = vld [vmem:[#allocation8 + $0x568] sm:$0xff]
        %v626 = vld [vmem:[#allocation8 + $0x570] sm:$0xff]
        %v627 = vld [vmem:[#allocation8 + $0x578] sm:$0xff]
        %v628 = vld [vmem:[#allocation8 + $0x580] sm:$0xff]
        %v629 = vld [vmem:[#allocation8 + $0x588] sm:$0xff]
        %v630 = vld [vmem:[#allocation8 + $0x590] sm:$0xff]
        %v631 = vld [vmem:[#allocation8 + $0x598] sm:$0xff]
        %v632 = vld [vmem:[#allocation8 + $0x5a0] sm:$0xff]
        %v633 = vld [vmem:[#allocation8 + $0x5a8] sm:$0xff]
        %v634 = vld [vmem:[#allocation8 + $0x5b0] sm:$0xff]
        %v635 = vld [vmem:[#allocation8 + $0x5b8] sm:$0xff]
        %v636 = vld [vmem:[#allocation8 + $0x5c0] sm:$0xff]
        %v637 = vld [vmem:[#allocation8 + $0x5c8] sm:$0xff]
        %v638 = vld [vmem:[#allocation8 + $0x5d0] sm:$0xff]
        %v639 = vld [vmem:[#allocation8 + $0x5d8] sm:$0xff]
        %v640 = vld [vmem:[#allocation8 + $0x5e0] sm:$0xff]
        %v641 = vld [vmem:[#allocation8 + $0x5e8] sm:$0xff]
        %v642 = vld [vmem:[#allocation8 + $0x5f0] sm:$0xff]
        %v643 = vld [vmem:[#allocation8 + $0x5f8] sm:$0xff]
        %v644 = vld [vmem:[#allocation8 + $0x600] sm:$0xff]
        %v645 = vld [vmem:[#allocation8 + $0x608] sm:$0xff]
        %v646 = vld [vmem:[#allocation8 + $0x610] sm:$0xff]
        %v647 = vld [vmem:[#allocation8 + $0x618] sm:$0xff]
        %v648 = vld [vmem:[#allocation8 + $0x620] sm:$0xff]
        %v649 = vld [vmem:[#allocation8 + $0x628] sm:$0xff]
        %v650 = vld [vmem:[#allocation8 + $0x630] sm:$0xff]
        %v651 = vld [vmem:[#allocation8 + $0x638] sm:$0xff]
        %v652 = vld [vmem:[#allocation8 + $0x640] sm:$0xff]
        %v653 = vld [vmem:[#allocation8 + $0x648] sm:$0xff]
        %v654 = vld [vmem:[#allocation8 + $0x650] sm:$0xff]
        %v655 = vld [vmem:[#allocation8 + $0x658] sm:$0xff]
        %v656 = vld [vmem:[#allocation8 + $0x660] sm:$0xff]
        %v657 = vld [vmem:[#allocation8 + $0x668] sm:$0xff]
        %v658 = vld [vmem:[#allocation8 + $0x670] sm:$0xff]
        %v659 = vld [vmem:[#allocation8 + $0x678] sm:$0xff]
        %v660 = vld [vmem:[#allocation8 + $0x680] sm:$0xff]
        %v661 = vld [vmem:[#allocation8 + $0x688] sm:$0xff]
        %v662 = vld [vmem:[#allocation8 + $0x690] sm:$0xff]
        %v663 = vld [vmem:[#allocation8 + $0x698] sm:$0xff]
        %v664 = vld [vmem:[#allocation8 + $0x6a0] sm:$0xff]
        %v665 = vld [vmem:[#allocation8 + $0x6a8] sm:$0xff]
        %v666 = vld [vmem:[#allocation8 + $0x6b0] sm:$0xff]
        %v667 = vld [vmem:[#allocation8 + $0x6b8] sm:$0xff]
        %v668 = vld [vmem:[#allocation8 + $0x6c0] sm:$0xff]
        %v669 = vld [vmem:[#allocation8 + $0x6c8] sm:$0xff]
        %v670 = vld [vmem:[#allocation8 + $0x6d0] sm:$0xff]
        %v671 = vld [vmem:[#allocation8 + $0x6d8] sm:$0xff]
        %v672 = vld [vmem:[#allocation8 + $0x6e0] sm:$0xff]
        %v673 = vld [vmem:[#allocation8 + $0x6e8] sm:$0xff]
        %v674 = vld [vmem:[#allocation8 + $0x6f0] sm:$0xff]
        %v675 = vld [vmem:[#allocation8 + $0x6f8] sm:$0xff]
        %v676 = vld [vmem:[#allocation8 + $0x700] sm:$0xff]
        %v677 = vld [vmem:[#allocation8 + $0x708] sm:$0xff]
        %v678 = vld [vmem:[#allocation8 + $0x710] sm:$0xff]
        %v679 = vld [vmem:[#allocation8 + $0x718] sm:$0xff]
        %v680 = vld [vmem:[#allocation8 + $0x720] sm:$0xff]
        %v681 = vld [vmem:[#allocation8 + $0x728] sm:$0xff]
        %v682 = vld [vmem:[#allocation8 + $0x730] sm:$0xff]
        %v683 = vld [vmem:[#allocation8 + $0x738] sm:$0xff]
        %v684 = vld [vmem:[#allocation8 + $0x740] sm:$0xff]
        %v685 = vld [vmem:[#allocation8 + $0x748] sm:$0xff]
        %v686 = vld [vmem:[#allocation8 + $0x750] sm:$0xff]
        %v687 = vld [vmem:[#allocation8 + $0x758] sm:$0xff]
        %v688 = vld [vmem:[#allocation8 + $0x760] sm:$0xff]
        %v689 = vld [vmem:[#allocation8 + $0x768] sm:$0xff]
        %v690 = vld [vmem:[#allocation8 + $0x770] sm:$0xff]
        %v691 = vld [vmem:[#allocation8 + $0x778] sm:$0xff]
        %v692 = vld [vmem:[#allocation8 + $0x780] sm:$0xff]
        %v693 = vld [vmem:[#allocation8 + $0x788] sm:$0xff]
        %v694 = vld [vmem:[#allocation8 + $0x790] sm:$0xff]
        %v695 = vld [vmem:[#allocation8 + $0x798] sm:$0xff]
        %v696 = vld [vmem:[#allocation8 + $0x7a0] sm:$0xff]
        %v697 = vld [vmem:[#allocation8 + $0x7a8] sm:$0xff]
        %v698 = vld [vmem:[#allocation8 + $0x7b0] sm:$0xff]
        %v699 = vld [vmem:[#allocation8 + $0x7b8] sm:$0xff]
        %v700 = vld [vmem:[#allocation8 + $0x7c0] sm:$0xff]
        %v701 = vld [vmem:[#allocation8 + $0x7c8] sm:$0xff]
        %v702 = vld [vmem:[#allocation8 + $0x7d0] sm:$0xff]
        %v703 = vld [vmem:[#allocation8 + $0x7d8] sm:$0xff]
        %v704 = vld [vmem:[#allocation8 + $0x7e0] sm:$0xff]
        %v705 = vld [vmem:[#allocation8 + $0x7e8] sm:$0xff]
        %v706 = vld [vmem:[#allocation8 + $0x7f0] sm:$0xff]
        %v707 = vld [vmem:[#allocation8 + $0x7f8] sm:$0xff]
        %v708 = vld [vmem:[#allocation10] sm:$0xff]
        %v710 = vlaneseq
        %v711 = vshrl.u32 %v710, 7
        %v712 = vsub.s32 0, %v711
        %v713 = vrot.slane %v708, %v712
        %v714 = vlaneseq
        %v715 = vshrl.u32 %v714, 7
        %v716 = vsub.s32 1, %v715
        %v717 = vrot.slane %v708, %v716
        %v718 = vlaneseq
        %v719 = vshrl.u32 %v718, 7
        %v720 = vsub.s32 2, %v719
        %v721 = vrot.slane %v708, %v720
        %v722 = vlaneseq
        %v723 = vshrl.u32 %v722, 7
        %v724 = vsub.s32 3, %v723
        %v725 = vrot.slane %v708, %v724
        %v726 = vlaneseq
        %v727 = vshrl.u32 %v726, 7
        %v728 = vsub.s32 4, %v727
        %v729 = vrot.slane %v708, %v728
        %v730 = vlaneseq
        %v731 = vshrl.u32 %v730, 7
        %v732 = vsub.s32 5, %v731
        %v733 = vrot.slane %v708, %v732
        %v734 = vlaneseq
        %v735 = vshrl.u32 %v734, 7
        %v736 = vsub.s32 6, %v735
        %v737 = vrot.slane %v708, %v736
        %v738 = vlaneseq
        %v739 = vshrl.u32 %v738, 7
        %v740 = vsub.s32 7, %v739
        %v741 = vrot.slane %v708, %v740
        %v1006 = vunpack.c.l.b16 %v452
        %v1007 = vunpack.c.h.b16 %v452
        %v1008 = vunpack.c.l.b16 %v453
        %v1009 = vunpack.c.h.b16 %v453
        %v1010 = vunpack.c.l.b16 %v454
        %v1011 = vunpack.c.h.b16 %v454
        %v1012 = vunpack.c.l.b16 %v455
        %v1013 = vunpack.c.h.b16 %v455
        %v1014 = vunpack.c.l.b16 %v456
        %v1015 = vunpack.c.h.b16 %v456
        %v1016 = vunpack.c.l.b16 %v457
        %v1017 = vunpack.c.h.b16 %v457
        %v1018 = vunpack.c.l.b16 %v458
        %v1019 = vunpack.c.h.b16 %v458
        %v1020 = vunpack.c.l.b16 %v459
        %v1021 = vunpack.c.h.b16 %v459
        %v1022 = vunpack.c.l.b16 %v460
        %v1023 = vunpack.c.h.b16 %v460
        %v1024 = vunpack.c.l.b16 %v461
        %v1025 = vunpack.c.h.b16 %v461
        %v1026 = vunpack.c.l.b16 %v462
        %v1027 = vunpack.c.h.b16 %v462
        %v1028 = vunpack.c.l.b16 %v463
        %v1029 = vunpack.c.h.b16 %v463
        %v1030 = vunpack.c.l.b16 %v464
        %v1031 = vunpack.c.h.b16 %v464
        %v1032 = vunpack.c.l.b16 %v465
        %v1033 = vunpack.c.h.b16 %v465
        %v1034 = vunpack.c.l.b16 %v466
        %v1035 = vunpack.c.h.b16 %v466
        %v1036 = vunpack.c.l.b16 %v467
        %v1037 = vunpack.c.h.b16 %v467
        %v1038 = vunpack.c.l.b16 %v468
        %v1039 = vunpack.c.h.b16 %v468
        %v1040 = vunpack.c.l.b16 %v469
        %v1041 = vunpack.c.h.b16 %v469
        %v1042 = vunpack.c.l.b16 %v470
        %v1043 = vunpack.c.h.b16 %v470
        %v1044 = vunpack.c.l.b16 %v471
        %v1045 = vunpack.c.h.b16 %v471
        %v1046 = vunpack.c.l.b16 %v472
        %v1047 = vunpack.c.h.b16 %v472
        %v1048 = vunpack.c.l.b16 %v473
        %v1049 = vunpack.c.h.b16 %v473
        %v1050 = vunpack.c.l.b16 %v474
        %v1051 = vunpack.c.h.b16 %v474
        %v1052 = vunpack.c.l.b16 %v475
        %v1053 = vunpack.c.h.b16 %v475
        %v1054 = vunpack.c.l.b16 %v476
        %v1055 = vunpack.c.h.b16 %v476
        %v1056 = vunpack.c.l.b16 %v477
        %v1057 = vunpack.c.h.b16 %v477
        %v1058 = vunpack.c.l.b16 %v478
        %v1059 = vunpack.c.h.b16 %v478
        %v1060 = vunpack.c.l.b16 %v479
        %v1061 = vunpack.c.h.b16 %v479
        %v1062 = vunpack.c.l.b16 %v480
        %v1063 = vunpack.c.h.b16 %v480
        %v1064 = vunpack.c.l.b16 %v481
        %v1065 = vunpack.c.h.b16 %v481
        %v1066 = vunpack.c.l.b16 %v482
        %v1067 = vunpack.c.h.b16 %v482
        %v1068 = vunpack.c.l.b16 %v483
        %v1069 = vunpack.c.h.b16 %v483
        %v1070 = vunpack.c.l.b16 %v484
        %v1071 = vunpack.c.h.b16 %v484
        %v1072 = vunpack.c.l.b16 %v485
        %v1073 = vunpack.c.h.b16 %v485
        %v1074 = vunpack.c.l.b16 %v486
        %v1075 = vunpack.c.h.b16 %v486
        %v1076 = vunpack.c.l.b16 %v487
        %v1077 = vunpack.c.h.b16 %v487
        %v1078 = vunpack.c.l.b16 %v488
        %v1079 = vunpack.c.h.b16 %v488
        %v1080 = vunpack.c.l.b16 %v489
        %v1081 = vunpack.c.h.b16 %v489
        %v1082 = vunpack.c.l.b16 %v490
        %v1083 = vunpack.c.h.b16 %v490
        %v1084 = vunpack.c.l.b16 %v491
        %v1085 = vunpack.c.h.b16 %v491
        %v1086 = vunpack.c.l.b16 %v492
        %v1087 = vunpack.c.h.b16 %v492
        %v1088 = vunpack.c.l.b16 %v493
        %v1089 = vunpack.c.h.b16 %v493
        %v1090 = vunpack.c.l.b16 %v494
        %v1091 = vunpack.c.h.b16 %v494
        %v1092 = vunpack.c.l.b16 %v495
        %v1093 = vunpack.c.h.b16 %v495
        %v1094 = vunpack.c.l.b16 %v496
        %v1095 = vunpack.c.h.b16 %v496
        %v1096 = vunpack.c.l.b16 %v497
        %v1097 = vunpack.c.h.b16 %v497
        %v1098 = vunpack.c.l.b16 %v498
        %v1099 = vunpack.c.h.b16 %v498
        %v1100 = vunpack.c.l.b16 %v499
        %v1101 = vunpack.c.h.b16 %v499
        %v1102 = vunpack.c.l.b16 %v500
        %v1103 = vunpack.c.h.b16 %v500
        %v1104 = vunpack.c.l.b16 %v501
        %v1105 = vunpack.c.h.b16 %v501
        %v1106 = vunpack.c.l.b16 %v502
        %v1107 = vunpack.c.h.b16 %v502
        %v1108 = vunpack.c.l.b16 %v503
        %v1109 = vunpack.c.h.b16 %v503
        %v1110 = vunpack.c.l.b16 %v504
        %v1111 = vunpack.c.h.b16 %v504
        %v1112 = vunpack.c.l.b16 %v505
        %v1113 = vunpack.c.h.b16 %v505
        %v1114 = vunpack.c.l.b16 %v506
        %v1115 = vunpack.c.h.b16 %v506
        %v1116 = vunpack.c.l.b16 %v507
        %v1117 = vunpack.c.h.b16 %v507
        %v1118 = vunpack.c.l.b16 %v508
        %v1119 = vunpack.c.h.b16 %v508
        %v1120 = vunpack.c.l.b16 %v509
        %v1121 = vunpack.c.h.b16 %v509
        %v1122 = vunpack.c.l.b16 %v510
        %v1123 = vunpack.c.h.b16 %v510
        %v1124 = vunpack.c.l.b16 %v511
        %v1125 = vunpack.c.h.b16 %v511
        %v1126 = vunpack.c.l.b16 %v512
        %v1127 = vunpack.c.h.b16 %v512
        %v1128 = vunpack.c.l.b16 %v513
        %v1129 = vunpack.c.h.b16 %v513
        %v1130 = vunpack.c.l.b16 %v514
        %v1131 = vunpack.c.h.b16 %v514
        %v1132 = vunpack.c.l.b16 %v515
        %v1133 = vunpack.c.h.b16 %v515
        %v1134 = vunpack.c.l.b16 %v516
        %v1135 = vunpack.c.h.b16 %v516
        %v1136 = vunpack.c.l.b16 %v517
        %v1137 = vunpack.c.h.b16 %v517
        %v1138 = vunpack.c.l.b16 %v518
        %v1139 = vunpack.c.h.b16 %v518
        %v1140 = vunpack.c.l.b16 %v519
        %v1141 = vunpack.c.h.b16 %v519
        %v1142 = vunpack.c.l.b16 %v520
        %v1143 = vunpack.c.h.b16 %v520
        %v1144 = vunpack.c.l.b16 %v521
        %v1145 = vunpack.c.h.b16 %v521
        %v1146 = vunpack.c.l.b16 %v522
        %v1147 = vunpack.c.h.b16 %v522
        %v1148 = vunpack.c.l.b16 %v523
        %v1149 = vunpack.c.h.b16 %v523
        %v1150 = vunpack.c.l.b16 %v524
        %v1151 = vunpack.c.h.b16 %v524
        %v1152 = vunpack.c.l.b16 %v525
        %v1153 = vunpack.c.h.b16 %v525
        %v1154 = vunpack.c.l.b16 %v526
        %v1155 = vunpack.c.h.b16 %v526
        %v1156 = vunpack.c.l.b16 %v527
        %v1157 = vunpack.c.h.b16 %v527
        %v1158 = vunpack.c.l.b16 %v528
        %v1159 = vunpack.c.h.b16 %v528
        %v1160 = vunpack.c.l.b16 %v529
        %v1161 = vunpack.c.h.b16 %v529
        %v1162 = vunpack.c.l.b16 %v530
        %v1163 = vunpack.c.h.b16 %v530
        %v1164 = vunpack.c.l.b16 %v531
        %v1165 = vunpack.c.h.b16 %v531
        %v1166 = vunpack.c.l.b16 %v532
        %v1167 = vunpack.c.h.b16 %v532
        %v1168 = vunpack.c.l.b16 %v533
        %v1169 = vunpack.c.h.b16 %v533
        %v1170 = vunpack.c.l.b16 %v534
        %v1171 = vunpack.c.h.b16 %v534
        %v1172 = vunpack.c.l.b16 %v535
        %v1173 = vunpack.c.h.b16 %v535
        %v1174 = vunpack.c.l.b16 %v536
        %v1175 = vunpack.c.h.b16 %v536
        %v1176 = vunpack.c.l.b16 %v537
        %v1177 = vunpack.c.h.b16 %v537
        %v1178 = vunpack.c.l.b16 %v538
        %v1179 = vunpack.c.h.b16 %v538
        %v1180 = vunpack.c.l.b16 %v539
        %v1181 = vunpack.c.h.b16 %v539
        %v1182 = vunpack.c.l.b16 %v540
        %v1183 = vunpack.c.h.b16 %v540
        %v1184 = vunpack.c.l.b16 %v541
        %v1185 = vunpack.c.h.b16 %v541
        %v1186 = vunpack.c.l.b16 %v542
        %v1187 = vunpack.c.h.b16 %v542
        %v1188 = vunpack.c.l.b16 %v543
        %v1189 = vunpack.c.h.b16 %v543
        %v1190 = vunpack.c.l.b16 %v544
        %v1191 = vunpack.c.h.b16 %v544
        %v1192 = vunpack.c.l.b16 %v545
        %v1193 = vunpack.c.h.b16 %v545
        %v1194 = vunpack.c.l.b16 %v546
        %v1195 = vunpack.c.h.b16 %v546
        %v1196 = vunpack.c.l.b16 %v547
        %v1197 = vunpack.c.h.b16 %v547
        %v1198 = vunpack.c.l.b16 %v548
        %v1199 = vunpack.c.h.b16 %v548
        %v1200 = vunpack.c.l.b16 %v549
        %v1201 = vunpack.c.h.b16 %v549
        %v1202 = vunpack.c.l.b16 %v550
        %v1203 = vunpack.c.h.b16 %v550
        %v1204 = vunpack.c.l.b16 %v551
        %v1205 = vunpack.c.h.b16 %v551
        %v1206 = vunpack.c.l.b16 %v552
        %v1207 = vunpack.c.h.b16 %v552
        %v1208 = vunpack.c.l.b16 %v553
        %v1209 = vunpack.c.h.b16 %v553
        %v1210 = vunpack.c.l.b16 %v554
        %v1211 = vunpack.c.h.b16 %v554
        %v1212 = vunpack.c.l.b16 %v555
        %v1213 = vunpack.c.h.b16 %v555
        %v1214 = vunpack.c.l.b16 %v556
        %v1215 = vunpack.c.h.b16 %v556
        %v1216 = vunpack.c.l.b16 %v557
        %v1217 = vunpack.c.h.b16 %v557
        %v1218 = vunpack.c.l.b16 %v558
        %v1219 = vunpack.c.h.b16 %v558
        %v1220 = vunpack.c.l.b16 %v559
        %v1221 = vunpack.c.h.b16 %v559
        %v1222 = vunpack.c.l.b16 %v560
        %v1223 = vunpack.c.h.b16 %v560
        %v1224 = vunpack.c.l.b16 %v561
        %v1225 = vunpack.c.h.b16 %v561
        %v1226 = vunpack.c.l.b16 %v562
        %v1227 = vunpack.c.h.b16 %v562
        %v1228 = vunpack.c.l.b16 %v563
        %v1229 = vunpack.c.h.b16 %v563
        %v1230 = vunpack.c.l.b16 %v564
        %v1231 = vunpack.c.h.b16 %v564
        %v1232 = vunpack.c.l.b16 %v565
        %v1233 = vunpack.c.h.b16 %v565
        %v1234 = vunpack.c.l.b16 %v566
        %v1235 = vunpack.c.h.b16 %v566
        %v1236 = vunpack.c.l.b16 %v567
        %v1237 = vunpack.c.h.b16 %v567
        %v1238 = vunpack.c.l.b16 %v568
        %v1239 = vunpack.c.h.b16 %v568
        %v1240 = vunpack.c.l.b16 %v569
        %v1241 = vunpack.c.h.b16 %v569
        %v1242 = vunpack.c.l.b16 %v570
        %v1243 = vunpack.c.h.b16 %v570
        %v1244 = vunpack.c.l.b16 %v571
        %v1245 = vunpack.c.h.b16 %v571
        %v1246 = vunpack.c.l.b16 %v572
        %v1247 = vunpack.c.h.b16 %v572
        %v1248 = vunpack.c.l.b16 %v573
        %v1249 = vunpack.c.h.b16 %v573
        %v1250 = vunpack.c.l.b16 %v574
        %v1251 = vunpack.c.h.b16 %v574
        %v1252 = vunpack.c.l.b16 %v575
        %v1253 = vunpack.c.h.b16 %v575
        %v1254 = vunpack.c.l.b16 %v576
        %v1255 = vunpack.c.h.b16 %v576
        %v1256 = vunpack.c.l.b16 %v577
        %v1257 = vunpack.c.h.b16 %v577
        %v1258 = vunpack.c.l.b16 %v578
        %v1259 = vunpack.c.h.b16 %v578
        %v1260 = vunpack.c.l.b16 %v579
        %v1261 = vunpack.c.h.b16 %v579
        %v1262 = vunpack.c.l.b16 %v580
        %v1263 = vunpack.c.h.b16 %v580
        %v1264 = vunpack.c.l.b16 %v581
        %v1265 = vunpack.c.h.b16 %v581
        %v1266 = vunpack.c.l.b16 %v582
        %v1267 = vunpack.c.h.b16 %v582
        %v1268 = vunpack.c.l.b16 %v583
        %v1269 = vunpack.c.h.b16 %v583
        %v1270 = vunpack.c.l.b16 %v584
        %v1271 = vunpack.c.h.b16 %v584
        %v1272 = vunpack.c.l.b16 %v585
        %v1273 = vunpack.c.h.b16 %v585
        %v1274 = vunpack.c.l.b16 %v586
        %v1275 = vunpack.c.h.b16 %v586
        %v1276 = vunpack.c.l.b16 %v587
        %v1277 = vunpack.c.h.b16 %v587
        %v1278 = vunpack.c.l.b16 %v588
        %v1279 = vunpack.c.h.b16 %v588
        %v1280 = vunpack.c.l.b16 %v589
        %v1281 = vunpack.c.h.b16 %v589
        %v1282 = vunpack.c.l.b16 %v590
        %v1283 = vunpack.c.h.b16 %v590
        %v1284 = vunpack.c.l.b16 %v591
        %v1285 = vunpack.c.h.b16 %v591
        %v1286 = vunpack.c.l.b16 %v592
        %v1287 = vunpack.c.h.b16 %v592
        %v1288 = vunpack.c.l.b16 %v593
        %v1289 = vunpack.c.h.b16 %v593
        %v1290 = vunpack.c.l.b16 %v594
        %v1291 = vunpack.c.h.b16 %v594
        %v1292 = vunpack.c.l.b16 %v595
        %v1293 = vunpack.c.h.b16 %v595
        %v1294 = vunpack.c.l.b16 %v596
        %v1295 = vunpack.c.h.b16 %v596
        %v1296 = vunpack.c.l.b16 %v597
        %v1297 = vunpack.c.h.b16 %v597
        %v1298 = vunpack.c.l.b16 %v598
        %v1299 = vunpack.c.h.b16 %v598
        %v1300 = vunpack.c.l.b16 %v599
        %v1301 = vunpack.c.h.b16 %v599
        %v1302 = vunpack.c.l.b16 %v600
        %v1303 = vunpack.c.h.b16 %v600
        %v1304 = vunpack.c.l.b16 %v601
        %v1305 = vunpack.c.h.b16 %v601
        %v1306 = vunpack.c.l.b16 %v602
        %v1307 = vunpack.c.h.b16 %v602
        %v1308 = vunpack.c.l.b16 %v603
        %v1309 = vunpack.c.h.b16 %v603
        %v1310 = vunpack.c.l.b16 %v604
        %v1311 = vunpack.c.h.b16 %v604
        %v1312 = vunpack.c.l.b16 %v605
        %v1313 = vunpack.c.h.b16 %v605
        %v1314 = vunpack.c.l.b16 %v606
        %v1315 = vunpack.c.h.b16 %v606
        %v1316 = vunpack.c.l.b16 %v607
        %v1317 = vunpack.c.h.b16 %v607
        %v1318 = vunpack.c.l.b16 %v608
        %v1319 = vunpack.c.h.b16 %v608
        %v1320 = vunpack.c.l.b16 %v609
        %v1321 = vunpack.c.h.b16 %v609
        %v1322 = vunpack.c.l.b16 %v610
        %v1323 = vunpack.c.h.b16 %v610
        %v1324 = vunpack.c.l.b16 %v611
        %v1325 = vunpack.c.h.b16 %v611
        %v1326 = vunpack.c.l.b16 %v612
        %v1327 = vunpack.c.h.b16 %v612
        %v1328 = vunpack.c.l.b16 %v613
        %v1329 = vunpack.c.h.b16 %v613
        %v1330 = vunpack.c.l.b16 %v614
        %v1331 = vunpack.c.h.b16 %v614
        %v1332 = vunpack.c.l.b16 %v615
        %v1333 = vunpack.c.h.b16 %v615
        %v1334 = vunpack.c.l.b16 %v616
        %v1335 = vunpack.c.h.b16 %v616
        %v1336 = vunpack.c.l.b16 %v617
        %v1337 = vunpack.c.h.b16 %v617
        %v1338 = vunpack.c.l.b16 %v618
        %v1339 = vunpack.c.h.b16 %v618
        %v1340 = vunpack.c.l.b16 %v619
        %v1341 = vunpack.c.h.b16 %v619
        %v1342 = vunpack.c.l.b16 %v620
        %v1343 = vunpack.c.h.b16 %v620
        %v1344 = vunpack.c.l.b16 %v621
        %v1345 = vunpack.c.h.b16 %v621
        %v1346 = vunpack.c.l.b16 %v622
        %v1347 = vunpack.c.h.b16 %v622
        %v1348 = vunpack.c.l.b16 %v623
        %v1349 = vunpack.c.h.b16 %v623
        %v1350 = vunpack.c.l.b16 %v624
        %v1351 = vunpack.c.h.b16 %v624
        %v1352 = vunpack.c.l.b16 %v625
        %v1353 = vunpack.c.h.b16 %v625
        %v1354 = vunpack.c.l.b16 %v626
        %v1355 = vunpack.c.h.b16 %v626
        %v1356 = vunpack.c.l.b16 %v627
        %v1357 = vunpack.c.h.b16 %v627
        %v1358 = vunpack.c.l.b16 %v628
        %v1359 = vunpack.c.h.b16 %v628
        %v1360 = vunpack.c.l.b16 %v629
        %v1361 = vunpack.c.h.b16 %v629
        %v1362 = vunpack.c.l.b16 %v630
        %v1363 = vunpack.c.h.b16 %v630
        %v1364 = vunpack.c.l.b16 %v631
        %v1365 = vunpack.c.h.b16 %v631
        %v1366 = vunpack.c.l.b16 %v632
        %v1367 = vunpack.c.h.b16 %v632
        %v1368 = vunpack.c.l.b16 %v633
        %v1369 = vunpack.c.h.b16 %v633
        %v1370 = vunpack.c.l.b16 %v634
        %v1371 = vunpack.c.h.b16 %v634
        %v1372 = vunpack.c.l.b16 %v635
        %v1373 = vunpack.c.h.b16 %v635
        %v1374 = vunpack.c.l.b16 %v636
        %v1375 = vunpack.c.h.b16 %v636
        %v1376 = vunpack.c.l.b16 %v637
        %v1377 = vunpack.c.h.b16 %v637
        %v1378 = vunpack.c.l.b16 %v638
        %v1379 = vunpack.c.h.b16 %v638
        %v1380 = vunpack.c.l.b16 %v639
        %v1381 = vunpack.c.h.b16 %v639
        %v1382 = vunpack.c.l.b16 %v640
        %v1383 = vunpack.c.h.b16 %v640
        %v1384 = vunpack.c.l.b16 %v641
        %v1385 = vunpack.c.h.b16 %v641
        %v1386 = vunpack.c.l.b16 %v642
        %v1387 = vunpack.c.h.b16 %v642
        %v1388 = vunpack.c.l.b16 %v643
        %v1389 = vunpack.c.h.b16 %v643
        %v1390 = vunpack.c.l.b16 %v644
        %v1391 = vunpack.c.h.b16 %v644
        %v1392 = vunpack.c.l.b16 %v645
        %v1393 = vunpack.c.h.b16 %v645
        %v1394 = vunpack.c.l.b16 %v646
        %v1395 = vunpack.c.h.b16 %v646
        %v1396 = vunpack.c.l.b16 %v647
        %v1397 = vunpack.c.h.b16 %v647
        %v1398 = vunpack.c.l.b16 %v648
        %v1399 = vunpack.c.h.b16 %v648
        %v1400 = vunpack.c.l.b16 %v649
        %v1401 = vunpack.c.h.b16 %v649
        %v1402 = vunpack.c.l.b16 %v650
        %v1403 = vunpack.c.h.b16 %v650
        %v1404 = vunpack.c.l.b16 %v651
        %v1405 = vunpack.c.h.b16 %v651
        %v1406 = vunpack.c.l.b16 %v652
        %v1407 = vunpack.c.h.b16 %v652
        %v1408 = vunpack.c.l.b16 %v653
        %v1409 = vunpack.c.h.b16 %v653
        %v1410 = vunpack.c.l.b16 %v654
        %v1411 = vunpack.c.h.b16 %v654
        %v1412 = vunpack.c.l.b16 %v655
        %v1413 = vunpack.c.h.b16 %v655
        %v1414 = vunpack.c.l.b16 %v656
        %v1415 = vunpack.c.h.b16 %v656
        %v1416 = vunpack.c.l.b16 %v657
        %v1417 = vunpack.c.h.b16 %v657
        %v1418 = vunpack.c.l.b16 %v658
        %v1419 = vunpack.c.h.b16 %v658
        %v1420 = vunpack.c.l.b16 %v659
        %v1421 = vunpack.c.h.b16 %v659
        %v1422 = vunpack.c.l.b16 %v660
        %v1423 = vunpack.c.h.b16 %v660
        %v1424 = vunpack.c.l.b16 %v661
        %v1425 = vunpack.c.h.b16 %v661
        %v1426 = vunpack.c.l.b16 %v662
        %v1427 = vunpack.c.h.b16 %v662
        %v1428 = vunpack.c.l.b16 %v663
        %v1429 = vunpack.c.h.b16 %v663
        %v1430 = vunpack.c.l.b16 %v664
        %v1431 = vunpack.c.h.b16 %v664
        %v1432 = vunpack.c.l.b16 %v665
        %v1433 = vunpack.c.h.b16 %v665
        %v1434 = vunpack.c.l.b16 %v666
        %v1435 = vunpack.c.h.b16 %v666
        %v1436 = vunpack.c.l.b16 %v667
        %v1437 = vunpack.c.h.b16 %v667
        %v1438 = vunpack.c.l.b16 %v668
        %v1439 = vunpack.c.h.b16 %v668
        %v1440 = vunpack.c.l.b16 %v669
        %v1441 = vunpack.c.h.b16 %v669
        %v1442 = vunpack.c.l.b16 %v670
        %v1443 = vunpack.c.h.b16 %v670
        %v1444 = vunpack.c.l.b16 %v671
        %v1445 = vunpack.c.h.b16 %v671
        %v1446 = vunpack.c.l.b16 %v672
        %v1447 = vunpack.c.h.b16 %v672
        %v1448 = vunpack.c.l.b16 %v673
        %v1449 = vunpack.c.h.b16 %v673
        %v1450 = vunpack.c.l.b16 %v674
        %v1451 = vunpack.c.h.b16 %v674
        %v1452 = vunpack.c.l.b16 %v675
        %v1453 = vunpack.c.h.b16 %v675
        %v1454 = vunpack.c.l.b16 %v676
        %v1455 = vunpack.c.h.b16 %v676
        %v1456 = vunpack.c.l.b16 %v677
        %v1457 = vunpack.c.h.b16 %v677
        %v1458 = vunpack.c.l.b16 %v678
        %v1459 = vunpack.c.h.b16 %v678
        %v1460 = vunpack.c.l.b16 %v679
        %v1461 = vunpack.c.h.b16 %v679
        %v1462 = vunpack.c.l.b16 %v680
        %v1463 = vunpack.c.h.b16 %v680
        %v1464 = vunpack.c.l.b16 %v681
        %v1465 = vunpack.c.h.b16 %v681
        %v1466 = vunpack.c.l.b16 %v682
        %v1467 = vunpack.c.h.b16 %v682
        %v1468 = vunpack.c.l.b16 %v683
        %v1469 = vunpack.c.h.b16 %v683
        %v1470 = vunpack.c.l.b16 %v684
        %v1471 = vunpack.c.h.b16 %v684
        %v1472 = vunpack.c.l.b16 %v685
        %v1473 = vunpack.c.h.b16 %v685
        %v1474 = vunpack.c.l.b16 %v686
        %v1475 = vunpack.c.h.b16 %v686
        %v1476 = vunpack.c.l.b16 %v687
        %v1477 = vunpack.c.h.b16 %v687
        %v1478 = vunpack.c.l.b16 %v688
        %v1479 = vunpack.c.h.b16 %v688
        %v1480 = vunpack.c.l.b16 %v689
        %v1481 = vunpack.c.h.b16 %v689
        %v1482 = vunpack.c.l.b16 %v690
        %v1483 = vunpack.c.h.b16 %v690
        %v1484 = vunpack.c.l.b16 %v691
        %v1485 = vunpack.c.h.b16 %v691
        %v1486 = vunpack.c.l.b16 %v692
        %v1487 = vunpack.c.h.b16 %v692
        %v1488 = vunpack.c.l.b16 %v693
        %v1489 = vunpack.c.h.b16 %v693
        %v1490 = vunpack.c.l.b16 %v694
        %v1491 = vunpack.c.h.b16 %v694
        %v1492 = vunpack.c.l.b16 %v695
        %v1493 = vunpack.c.h.b16 %v695
        %v1494 = vunpack.c.l.b16 %v696
        %v1495 = vunpack.c.h.b16 %v696
        %v1496 = vunpack.c.l.b16 %v697
        %v1497 = vunpack.c.h.b16 %v697
        %v1498 = vunpack.c.l.b16 %v698
        %v1499 = vunpack.c.h.b16 %v698
        %v1500 = vunpack.c.l.b16 %v699
        %v1501 = vunpack.c.h.b16 %v699
        %v1502 = vunpack.c.l.b16 %v700
        %v1503 = vunpack.c.h.b16 %v700
        %v1504 = vunpack.c.l.b16 %v701
        %v1505 = vunpack.c.h.b16 %v701
        %v1506 = vunpack.c.l.b16 %v702
        %v1507 = vunpack.c.h.b16 %v702
        %v1508 = vunpack.c.l.b16 %v703
        %v1509 = vunpack.c.h.b16 %v703
        %v1510 = vunpack.c.l.b16 %v704
        %v1511 = vunpack.c.h.b16 %v704
        %v1512 = vunpack.c.l.b16 %v705
        %v1513 = vunpack.c.h.b16 %v705
        %v1514 = vunpack.c.l.b16 %v706
        %v1515 = vunpack.c.h.b16 %v706
        %v1516 = vunpack.c.l.b16 %v707
        %v1517 = vunpack.c.h.b16 %v707
        %v1518 = vpack.c.b16 %v1014, %v1006
        %v1519 = vpack.c.b16 %v1015, %v1007
        %v1520 = vpack.c.b16 %v1016, %v1008
        %v1521 = vpack.c.b16 %v1017, %v1009
        %v1522 = vpack.c.b16 %v1018, %v1010
        %v1523 = vpack.c.b16 %v1019, %v1011
        %v1524 = vpack.c.b16 %v1020, %v1012
        %v1525 = vpack.c.b16 %v1021, %v1013
        %v1526 = vpack.c.b16 %v1030, %v1022
        %v1527 = vpack.c.b16 %v1031, %v1023
        %v1528 = vpack.c.b16 %v1032, %v1024
        %v1529 = vpack.c.b16 %v1033, %v1025
        %v1530 = vpack.c.b16 %v1034, %v1026
        %v1531 = vpack.c.b16 %v1035, %v1027
        %v1532 = vpack.c.b16 %v1036, %v1028
        %v1533 = vpack.c.b16 %v1037, %v1029
        %v1534 = vpack.c.b16 %v1046, %v1038
        %v1535 = vpack.c.b16 %v1047, %v1039
        %v1536 = vpack.c.b16 %v1048, %v1040
        %v1537 = vpack.c.b16 %v1049, %v1041
        %v1538 = vpack.c.b16 %v1050, %v1042
        %v1539 = vpack.c.b16 %v1051, %v1043
        %v1540 = vpack.c.b16 %v1052, %v1044
        %v1541 = vpack.c.b16 %v1053, %v1045
        %v1542 = vpack.c.b16 %v1062, %v1054
        %v1543 = vpack.c.b16 %v1063, %v1055
        %v1544 = vpack.c.b16 %v1064, %v1056
        %v1545 = vpack.c.b16 %v1065, %v1057
        %v1546 = vpack.c.b16 %v1066, %v1058
        %v1547 = vpack.c.b16 %v1067, %v1059
        %v1548 = vpack.c.b16 %v1068, %v1060
        %v1549 = vpack.c.b16 %v1069, %v1061
        %v1550 = vpack.c.b16 %v1078, %v1070
        %v1551 = vpack.c.b16 %v1079, %v1071
        %v1552 = vpack.c.b16 %v1080, %v1072
        %v1553 = vpack.c.b16 %v1081, %v1073
        %v1554 = vpack.c.b16 %v1082, %v1074
        %v1555 = vpack.c.b16 %v1083, %v1075
        %v1556 = vpack.c.b16 %v1084, %v1076
        %v1557 = vpack.c.b16 %v1085, %v1077
        %v1558 = vpack.c.b16 %v1094, %v1086
        %v1559 = vpack.c.b16 %v1095, %v1087
        %v1560 = vpack.c.b16 %v1096, %v1088
        %v1561 = vpack.c.b16 %v1097, %v1089
        %v1562 = vpack.c.b16 %v1098, %v1090
        %v1563 = vpack.c.b16 %v1099, %v1091
        %v1564 = vpack.c.b16 %v1100, %v1092
        %v1565 = vpack.c.b16 %v1101, %v1093
        %v1566 = vpack.c.b16 %v1110, %v1102
        %v1567 = vpack.c.b16 %v1111, %v1103
        %v1568 = vpack.c.b16 %v1112, %v1104
        %v1569 = vpack.c.b16 %v1113, %v1105
        %v1570 = vpack.c.b16 %v1114, %v1106
        %v1571 = vpack.c.b16 %v1115, %v1107
        %v1572 = vpack.c.b16 %v1116, %v1108
        %v1573 = vpack.c.b16 %v1117, %v1109
        %v1574 = vpack.c.b16 %v1126, %v1118
        %v1575 = vpack.c.b16 %v1127, %v1119
        %v1576 = vpack.c.b16 %v1128, %v1120
        %v1577 = vpack.c.b16 %v1129, %v1121
        %v1578 = vpack.c.b16 %v1130, %v1122
        %v1579 = vpack.c.b16 %v1131, %v1123
        %v1580 = vpack.c.b16 %v1132, %v1124
        %v1581 = vpack.c.b16 %v1133, %v1125
        %v1582 = vpack.c.b16 %v1142, %v1134
        %v1583 = vpack.c.b16 %v1143, %v1135
        %v1584 = vpack.c.b16 %v1144, %v1136
        %v1585 = vpack.c.b16 %v1145, %v1137
        %v1586 = vpack.c.b16 %v1146, %v1138
        %v1587 = vpack.c.b16 %v1147, %v1139
        %v1588 = vpack.c.b16 %v1148, %v1140
        %v1589 = vpack.c.b16 %v1149, %v1141
        %v1590 = vpack.c.b16 %v1158, %v1150
        %v1591 = vpack.c.b16 %v1159, %v1151
        %v1592 = vpack.c.b16 %v1160, %v1152
        %v1593 = vpack.c.b16 %v1161, %v1153
        %v1594 = vpack.c.b16 %v1162, %v1154
        %v1595 = vpack.c.b16 %v1163, %v1155
        %v1596 = vpack.c.b16 %v1164, %v1156
        %v1597 = vpack.c.b16 %v1165, %v1157
        %v1598 = vpack.c.b16 %v1174, %v1166
        %v1599 = vpack.c.b16 %v1175, %v1167
        %v1600 = vpack.c.b16 %v1176, %v1168
        %v1601 = vpack.c.b16 %v1177, %v1169
        %v1602 = vpack.c.b16 %v1178, %v1170
        %v1603 = vpack.c.b16 %v1179, %v1171
        %v1604 = vpack.c.b16 %v1180, %v1172
        %v1605 = vpack.c.b16 %v1181, %v1173
        %v1606 = vpack.c.b16 %v1190, %v1182
        %v1607 = vpack.c.b16 %v1191, %v1183
        %v1608 = vpack.c.b16 %v1192, %v1184
        %v1609 = vpack.c.b16 %v1193, %v1185
        %v1610 = vpack.c.b16 %v1194, %v1186
        %v1611 = vpack.c.b16 %v1195, %v1187
        %v1612 = vpack.c.b16 %v1196, %v1188
        %v1613 = vpack.c.b16 %v1197, %v1189
        %v1614 = vpack.c.b16 %v1206, %v1198
        %v1615 = vpack.c.b16 %v1207, %v1199
        %v1616 = vpack.c.b16 %v1208, %v1200
        %v1617 = vpack.c.b16 %v1209, %v1201
        %v1618 = vpack.c.b16 %v1210, %v1202
        %v1619 = vpack.c.b16 %v1211, %v1203
        %v1620 = vpack.c.b16 %v1212, %v1204
        %v1621 = vpack.c.b16 %v1213, %v1205
        %v1622 = vpack.c.b16 %v1222, %v1214
        %v1623 = vpack.c.b16 %v1223, %v1215
        %v1624 = vpack.c.b16 %v1224, %v1216
        %v1625 = vpack.c.b16 %v1225, %v1217
        %v1626 = vpack.c.b16 %v1226, %v1218
        %v1627 = vpack.c.b16 %v1227, %v1219
        %v1628 = vpack.c.b16 %v1228, %v1220
        %v1629 = vpack.c.b16 %v1229, %v1221
        %v1630 = vpack.c.b16 %v1238, %v1230
        %v1631 = vpack.c.b16 %v1239, %v1231
        %v1632 = vpack.c.b16 %v1240, %v1232
        %v1633 = vpack.c.b16 %v1241, %v1233
        %v1634 = vpack.c.b16 %v1242, %v1234
        %v1635 = vpack.c.b16 %v1243, %v1235
        %v1636 = vpack.c.b16 %v1244, %v1236
        %v1637 = vpack.c.b16 %v1245, %v1237
        %v1638 = vpack.c.b16 %v1254, %v1246
        %v1639 = vpack.c.b16 %v1255, %v1247
        %v1640 = vpack.c.b16 %v1256, %v1248
        %v1641 = vpack.c.b16 %v1257, %v1249
        %v1642 = vpack.c.b16 %v1258, %v1250
        %v1643 = vpack.c.b16 %v1259, %v1251
        %v1644 = vpack.c.b16 %v1260, %v1252
        %v1645 = vpack.c.b16 %v1261, %v1253
        %v1646 = vpack.c.b16 %v1270, %v1262
        %v1647 = vpack.c.b16 %v1271, %v1263
        %v1648 = vpack.c.b16 %v1272, %v1264
        %v1649 = vpack.c.b16 %v1273, %v1265
        %v1650 = vpack.c.b16 %v1274, %v1266
        %v1651 = vpack.c.b16 %v1275, %v1267
        %v1652 = vpack.c.b16 %v1276, %v1268
        %v1653 = vpack.c.b16 %v1277, %v1269
        %v1654 = vpack.c.b16 %v1286, %v1278
        %v1655 = vpack.c.b16 %v1287, %v1279
        %v1656 = vpack.c.b16 %v1288, %v1280
        %v1657 = vpack.c.b16 %v1289, %v1281
        %v1658 = vpack.c.b16 %v1290, %v1282
        %v1659 = vpack.c.b16 %v1291, %v1283
        %v1660 = vpack.c.b16 %v1292, %v1284
        %v1661 = vpack.c.b16 %v1293, %v1285
        %v1662 = vpack.c.b16 %v1302, %v1294
        %v1663 = vpack.c.b16 %v1303, %v1295
        %v1664 = vpack.c.b16 %v1304, %v1296
        %v1665 = vpack.c.b16 %v1305, %v1297
        %v1666 = vpack.c.b16 %v1306, %v1298
        %v1667 = vpack.c.b16 %v1307, %v1299
        %v1668 = vpack.c.b16 %v1308, %v1300
        %v1669 = vpack.c.b16 %v1309, %v1301
        %v1670 = vpack.c.b16 %v1318, %v1310
        %v1671 = vpack.c.b16 %v1319, %v1311
        %v1672 = vpack.c.b16 %v1320, %v1312
        %v1673 = vpack.c.b16 %v1321, %v1313
        %v1674 = vpack.c.b16 %v1322, %v1314
        %v1675 = vpack.c.b16 %v1323, %v1315
        %v1676 = vpack.c.b16 %v1324, %v1316
        %v1677 = vpack.c.b16 %v1325, %v1317
        %v1678 = vpack.c.b16 %v1334, %v1326
        %v1679 = vpack.c.b16 %v1335, %v1327
        %v1680 = vpack.c.b16 %v1336, %v1328
        %v1681 = vpack.c.b16 %v1337, %v1329
        %v1682 = vpack.c.b16 %v1338, %v1330
        %v1683 = vpack.c.b16 %v1339, %v1331
        %v1684 = vpack.c.b16 %v1340, %v1332
        %v1685 = vpack.c.b16 %v1341, %v1333
        %v1686 = vpack.c.b16 %v1350, %v1342
        %v1687 = vpack.c.b16 %v1351, %v1343
        %v1688 = vpack.c.b16 %v1352, %v1344
        %v1689 = vpack.c.b16 %v1353, %v1345
        %v1690 = vpack.c.b16 %v1354, %v1346
        %v1691 = vpack.c.b16 %v1355, %v1347
        %v1692 = vpack.c.b16 %v1356, %v1348
        %v1693 = vpack.c.b16 %v1357, %v1349
        %v1694 = vpack.c.b16 %v1366, %v1358
        %v1695 = vpack.c.b16 %v1367, %v1359
        %v1696 = vpack.c.b16 %v1368, %v1360
        %v1697 = vpack.c.b16 %v1369, %v1361
        %v1698 = vpack.c.b16 %v1370, %v1362
        %v1699 = vpack.c.b16 %v1371, %v1363
        %v1700 = vpack.c.b16 %v1372, %v1364
        %v1701 = vpack.c.b16 %v1373, %v1365
        %v1702 = vpack.c.b16 %v1382, %v1374
        %v1703 = vpack.c.b16 %v1383, %v1375
        %v1704 = vpack.c.b16 %v1384, %v1376
        %v1705 = vpack.c.b16 %v1385, %v1377
        %v1706 = vpack.c.b16 %v1386, %v1378
        %v1707 = vpack.c.b16 %v1387, %v1379
        %v1708 = vpack.c.b16 %v1388, %v1380
        %v1709 = vpack.c.b16 %v1389, %v1381
        %v1710 = vpack.c.b16 %v1398, %v1390
        %v1711 = vpack.c.b16 %v1399, %v1391
        %v1712 = vpack.c.b16 %v1400, %v1392
        %v1713 = vpack.c.b16 %v1401, %v1393
        %v1714 = vpack.c.b16 %v1402, %v1394
        %v1715 = vpack.c.b16 %v1403, %v1395
        %v1716 = vpack.c.b16 %v1404, %v1396
        %v1717 = vpack.c.b16 %v1405, %v1397
        %v1718 = vpack.c.b16 %v1414, %v1406
        %v1719 = vpack.c.b16 %v1415, %v1407
        %v1720 = vpack.c.b16 %v1416, %v1408
        %v1721 = vpack.c.b16 %v1417, %v1409
        %v1722 = vpack.c.b16 %v1418, %v1410
        %v1723 = vpack.c.b16 %v1419, %v1411
        %v1724 = vpack.c.b16 %v1420, %v1412
        %v1725 = vpack.c.b16 %v1421, %v1413
        %v1726 = vpack.c.b16 %v1430, %v1422
        %v1727 = vpack.c.b16 %v1431, %v1423
        %v1728 = vpack.c.b16 %v1432, %v1424
        %v1729 = vpack.c.b16 %v1433, %v1425
        %v1730 = vpack.c.b16 %v1434, %v1426
        %v1731 = vpack.c.b16 %v1435, %v1427
        %v1732 = vpack.c.b16 %v1436, %v1428
        %v1733 = vpack.c.b16 %v1437, %v1429
        %v1734 = vpack.c.b16 %v1446, %v1438
        %v1735 = vpack.c.b16 %v1447, %v1439
        %v1736 = vpack.c.b16 %v1448, %v1440
        %v1737 = vpack.c.b16 %v1449, %v1441
        %v1738 = vpack.c.b16 %v1450, %v1442
        %v1739 = vpack.c.b16 %v1451, %v1443
        %v1740 = vpack.c.b16 %v1452, %v1444
        %v1741 = vpack.c.b16 %v1453, %v1445
        %v1742 = vpack.c.b16 %v1462, %v1454
        %v1743 = vpack.c.b16 %v1463, %v1455
        %v1744 = vpack.c.b16 %v1464, %v1456
        %v1745 = vpack.c.b16 %v1465, %v1457
        %v1746 = vpack.c.b16 %v1466, %v1458
        %v1747 = vpack.c.b16 %v1467, %v1459
        %v1748 = vpack.c.b16 %v1468, %v1460
        %v1749 = vpack.c.b16 %v1469, %v1461
        %v1750 = vpack.c.b16 %v1478, %v1470
        %v1751 = vpack.c.b16 %v1479, %v1471
        %v1752 = vpack.c.b16 %v1480, %v1472
        %v1753 = vpack.c.b16 %v1481, %v1473
        %v1754 = vpack.c.b16 %v1482, %v1474
        %v1755 = vpack.c.b16 %v1483, %v1475
        %v1756 = vpack.c.b16 %v1484, %v1476
        %v1757 = vpack.c.b16 %v1485, %v1477
        %v1758 = vpack.c.b16 %v1494, %v1486
        %v1759 = vpack.c.b16 %v1495, %v1487
        %v1760 = vpack.c.b16 %v1496, %v1488
        %v1761 = vpack.c.b16 %v1497, %v1489
        %v1762 = vpack.c.b16 %v1498, %v1490
        %v1763 = vpack.c.b16 %v1499, %v1491
        %v1764 = vpack.c.b16 %v1500, %v1492
        %v1765 = vpack.c.b16 %v1501, %v1493
        %v1766 = vpack.c.b16 %v1510, %v1502
        %v1767 = vpack.c.b16 %v1511, %v1503
        %v1768 = vpack.c.b16 %v1512, %v1504
        %v1769 = vpack.c.b16 %v1513, %v1505
        %v1770 = vpack.c.b16 %v1514, %v1506
        %v1771 = vpack.c.b16 %v1515, %v1507
        %v1772 = vpack.c.b16 %v1516, %v1508
        %v1773 = vpack.c.b16 %v1517, %v1509
        %2030 = vmatprep.subr.bf16.mxu0 %v1575
        %2031 = vmatpush1.bf16.msra.mxu0 %v1574
        %2032 = vmatprep.subr.bf16.mxu0 %v1567
        %2033 = vmatpush1.bf16.msra.mxu0 %v1566
        %2034 = vmatprep.subr.bf16.mxu0 %v1559
        %2035 = vmatpush1.bf16.msra.mxu0 %v1558
        %2036 = vmatprep.subr.bf16.mxu0 %v1551
        %2037 = vmatpush1.bf16.msra.mxu0 %v1550
        %2038 = vmatprep.subr.bf16.mxu0 %v1543
        %2039 = vmatpush1.bf16.msra.mxu0 %v1542
        %2040 = vmatprep.subr.bf16.mxu0 %v1535
        %2041 = vmatpush1.bf16.msra.mxu0 %v1534
        %2042 = vmatprep.subr.bf16.mxu0 %v1527
        %2043 = vmatpush1.bf16.msra.mxu0 %v1526
        %2044 = vmatprep.subr.bf16.mxu0 %v1519
        %2045 = vmatpush1.bf16.msra.mxu0 %v1518
        %2046 = vmatprep.subr.bf16.mxu0 %v1639
        %2047 = vmatpush2.bf16.msra.mxu0 %v1638
        %2048 = vmatprep.subr.bf16.mxu0 %v1631
        %2049 = vmatpush2.bf16.msra.mxu0 %v1630
        %2050 = vmatprep.subr.bf16.mxu0 %v1623
        %2051 = vmatpush2.bf16.msra.mxu0 %v1622
        %2052 = vmatprep.subr.bf16.mxu0 %v1615
        %2053 = vmatpush2.bf16.msra.mxu0 %v1614
        %2054 = vmatprep.subr.bf16.mxu0 %v1607
        %2055 = vmatpush2.bf16.msra.mxu0 %v1606
        %2056 = vmatprep.subr.bf16.mxu0 %v1599
        %2057 = vmatpush2.bf16.msra.mxu0 %v1598
        %2058 = vmatprep.subr.bf16.mxu0 %v1591
        %2059 = vmatpush2.bf16.msra.mxu0 %v1590
        %2060 = vmatprep.subr.bf16.mxu0 %v1583
        %2061 = vmatpush2.bf16.msra.mxu0 %v1582
        %2062 = vmatprep.mubr.bf16.mxu0 %v449
        %2063 = vmatmul.mubr.bf16.gmra.mxu0 %v448
        %v2064 = vpop.f32.mrf.mxu0
        %v2065 = vadd.f32 %v713, %v2064
        %v2066 = vpop.f32.mrf.mxu0
        %v2067 = vadd.f32 %v717, %v2066
        %v2068 = vpop.f32.mrf.mxu0
        %v2069 = vpop.f32.mrf.mxu0
        %2070 = vdwg.mxu0
        %2071 = vmatprep.subr.bf16.mxu0 %v1703
        %2072 = vmatpush1.bf16.msra.mxu0 %v1702
        %2073 = vmatprep.subr.bf16.mxu0 %v1695
        %2074 = vmatpush1.bf16.msra.mxu0 %v1694
        %2075 = vmatprep.subr.bf16.mxu0 %v1687
        %2076 = vmatpush1.bf16.msra.mxu0 %v1686
        %2077 = vmatprep.subr.bf16.mxu0 %v1679
        %2078 = vmatpush1.bf16.msra.mxu0 %v1678
        %2079 = vmatprep.subr.bf16.mxu0 %v1671
        %2080 = vmatpush1.bf16.msra.mxu0 %v1670
        %2081 = vmatprep.subr.bf16.mxu0 %v1663
        %2082 = vmatpush1.bf16.msra.mxu0 %v1662
        %2083 = vmatprep.subr.bf16.mxu0 %v1655
        %2084 = vmatpush1.bf16.msra.mxu0 %v1654
        %2085 = vmatprep.subr.bf16.mxu0 %v1647
        %2086 = vmatpush1.bf16.msra.mxu0 %v1646
        %2087 = vmatprep.subr.bf16.mxu0 %v1767
        %2088 = vmatpush2.bf16.msra.mxu0 %v1766
        %2089 = vmatprep.subr.bf16.mxu0 %v1759
        %2090 = vmatpush2.bf16.msra.mxu0 %v1758
        %2091 = vmatprep.subr.bf16.mxu0 %v1751
        %2092 = vmatpush2.bf16.msra.mxu0 %v1750
        %2093 = vmatprep.subr.bf16.mxu0 %v1743
        %2094 = vmatpush2.bf16.msra.mxu0 %v1742
        %2095 = vmatprep.subr.bf16.mxu0 %v1735
        %2096 = vmatpush2.bf16.msra.mxu0 %v1734
        %2097 = vmatprep.subr.bf16.mxu0 %v1727
        %2098 = vmatpush2.bf16.msra.mxu0 %v1726
        %2099 = vmatprep.subr.bf16.mxu0 %v1719
        %2100 = vmatpush2.bf16.msra.mxu0 %v1718
        %2101 = vmatprep.subr.bf16.mxu0 %v1711
        %2102 = vmatpush2.bf16.msra.mxu0 %v1710
        %2103 = vmatprep.mubr.bf16.mxu0 %v451
        %2104 = vmatmul.mubr.bf16.gmra.mxu0 %v450
        %v2105 = vpop.f32.mrf.mxu0
        %v2106 = vadd.f32 %v2065, %v2105
        %v2107 = vpop.f32.mrf.mxu0
        %v2108 = vadd.f32 %v2067, %v2107
        %v2109 = vpop.f32.mrf.mxu0
        %v2110 = vpop.f32.mrf.mxu0
        %2111 = vdwg.mxu0
        %2112 = vmatprep.subr.bf16.mxu0 %v1577
        %2113 = vmatpush1.bf16.msra.mxu0 %v1576
        %2114 = vmatprep.subr.bf16.mxu0 %v1569
        %2115 = vmatpush1.bf16.msra.mxu0 %v1568
        %2116 = vmatprep.subr.bf16.mxu0 %v1561
        %2117 = vmatpush1.bf16.msra.mxu0 %v1560
        %2118 = vmatprep.subr.bf16.mxu0 %v1553
        %2119 = vmatpush1.bf16.msra.mxu0 %v1552
        %2120 = vmatprep.subr.bf16.mxu0 %v1545
        %2121 = vmatpush1.bf16.msra.mxu0 %v1544
        %2122 = vmatprep.subr.bf16.mxu0 %v1537
        %2123 = vmatpush1.bf16.msra.mxu0 %v1536
        %2124 = vmatprep.subr.bf16.mxu0 %v1529
        %2125 = vmatpush1.bf16.msra.mxu0 %v1528
        %2126 = vmatprep.subr.bf16.mxu0 %v1521
        %2127 = vmatpush1.bf16.msra.mxu0 %v1520
        %2128 = vmatprep.subr.bf16.mxu0 %v1641
        %2129 = vmatpush2.bf16.msra.mxu0 %v1640
        %2130 = vmatprep.subr.bf16.mxu0 %v1633
        %2131 = vmatpush2.bf16.msra.mxu0 %v1632
        %2132 = vmatprep.subr.bf16.mxu0 %v1625
        %2133 = vmatpush2.bf16.msra.mxu0 %v1624
        %2134 = vmatprep.subr.bf16.mxu0 %v1617
        %2135 = vmatpush2.bf16.msra.mxu0 %v1616
        %2136 = vmatprep.subr.bf16.mxu0 %v1609
        %2137 = vmatpush2.bf16.msra.mxu0 %v1608
        %2138 = vmatprep.subr.bf16.mxu0 %v1601
        %2139 = vmatpush2.bf16.msra.mxu0 %v1600
        %2140 = vmatprep.subr.bf16.mxu0 %v1593
        %2141 = vmatpush2.bf16.msra.mxu0 %v1592
        %2142 = vmatprep.subr.bf16.mxu0 %v1585
        %2143 = vmatpush2.bf16.msra.mxu0 %v1584
        %2144 = vmatprep.mubr.bf16.mxu0 %v449
        %2145 = vmatmul.mubr.bf16.gmra.mxu0 %v448
        %v2146 = vpop.f32.mrf.mxu0
        %v2147 = vadd.f32 %v721, %v2146
        %v2148 = vpop.f32.mrf.mxu0
        %v2149 = vadd.f32 %v725, %v2148
        %v2150 = vpop.f32.mrf.mxu0
        %v2151 = vpop.f32.mrf.mxu0
        %2152 = vdwg.mxu0
        %2153 = vmatprep.subr.bf16.mxu0 %v1705
        %2154 = vmatpush1.bf16.msra.mxu0 %v1704
        %2155 = vmatprep.subr.bf16.mxu0 %v1697
        %2156 = vmatpush1.bf16.msra.mxu0 %v1696
        %2157 = vmatprep.subr.bf16.mxu0 %v1689
        %2158 = vmatpush1.bf16.msra.mxu0 %v1688
        %2159 = vmatprep.subr.bf16.mxu0 %v1681
        %2160 = vmatpush1.bf16.msra.mxu0 %v1680
        %2161 = vmatprep.subr.bf16.mxu0 %v1673
        %2162 = vmatpush1.bf16.msra.mxu0 %v1672
        %2163 = vmatprep.subr.bf16.mxu0 %v1665
        %2164 = vmatpush1.bf16.msra.mxu0 %v1664
        %2165 = vmatprep.subr.bf16.mxu0 %v1657
        %2166 = vmatpush1.bf16.msra.mxu0 %v1656
        %2167 = vmatprep.subr.bf16.mxu0 %v1649
        %2168 = vmatpush1.bf16.msra.mxu0 %v1648
        %2169 = vmatprep.subr.bf16.mxu0 %v1769
        %2170 = vmatpush2.bf16.msra.mxu0 %v1768
        %2171 = vmatprep.subr.bf16.mxu0 %v1761
        %2172 = vmatpush2.bf16.msra.mxu0 %v1760
        %2173 = vmatprep.subr.bf16.mxu0 %v1753
        %2174 = vmatpush2.bf16.msra.mxu0 %v1752
        %2175 = vmatprep.subr.bf16.mxu0 %v1745
        %2176 = vmatpush2.bf16.msra.mxu0 %v1744
        %2177 = vmatprep.subr.bf16.mxu0 %v1737
        %2178 = vmatpush2.bf16.msra.mxu0 %v1736
        %2179 = vmatprep.subr.bf16.mxu0 %v1729
        %2180 = vmatpush2.bf16.msra.mxu0 %v1728
        %2181 = vmatprep.subr.bf16.mxu0 %v1721
        %2182 = vmatpush2.bf16.msra.mxu0 %v1720
        %2183 = vmatprep.subr.bf16.mxu0 %v1713
        %2184 = vmatpush2.bf16.msra.mxu0 %v1712
        %2185 = vmatprep.mubr.bf16.mxu0 %v451
        %2186 = vmatmul.mubr.bf16.gmra.mxu0 %v450
        %v2187 = vpop.f32.mrf.mxu0
        %v2188 = vadd.f32 %v2147, %v2187
        %v2189 = vpop.f32.mrf.mxu0
        %v2190 = vadd.f32 %v2149, %v2189
        %v2191 = vpop.f32.mrf.mxu0
        %v2192 = vpop.f32.mrf.mxu0
        %2193 = vdwg.mxu0
        %2194 = vmatprep.subr.bf16.mxu0 %v1579
        %2195 = vmatpush1.bf16.msra.mxu0 %v1578
        %2196 = vmatprep.subr.bf16.mxu0 %v1571
        %2197 = vmatpush1.bf16.msra.mxu0 %v1570
        %2198 = vmatprep.subr.bf16.mxu0 %v1563
        %2199 = vmatpush1.bf16.msra.mxu0 %v1562
        %2200 = vmatprep.subr.bf16.mxu0 %v1555
        %2201 = vmatpush1.bf16.msra.mxu0 %v1554
        %2202 = vmatprep.subr.bf16.mxu0 %v1547
        %2203 = vmatpush1.bf16.msra.mxu0 %v1546
        %2204 = vmatprep.subr.bf16.mxu0 %v1539
        %2205 = vmatpush1.bf16.msra.mxu0 %v1538
        %2206 = vmatprep.subr.bf16.mxu0 %v1531
        %2207 = vmatpush1.bf16.msra.mxu0 %v1530
        %2208 = vmatprep.subr.bf16.mxu0 %v1523
        %2209 = vmatpush1.bf16.msra.mxu0 %v1522
        %2210 = vmatprep.subr.bf16.mxu0 %v1643
        %2211 = vmatpush2.bf16.msra.mxu0 %v1642
        %2212 = vmatprep.subr.bf16.mxu0 %v1635
        %2213 = vmatpush2.bf16.msra.mxu0 %v1634
        %2214 = vmatprep.subr.bf16.mxu0 %v1627
        %2215 = vmatpush2.bf16.msra.mxu0 %v1626
        %2216 = vmatprep.subr.bf16.mxu0 %v1619
        %2217 = vmatpush2.bf16.msra.mxu0 %v1618
        %2218 = vmatprep.subr.bf16.mxu0 %v1611
        %2219 = vmatpush2.bf16.msra.mxu0 %v1610
        %2220 = vmatprep.subr.bf16.mxu0 %v1603
        %2221 = vmatpush2.bf16.msra.mxu0 %v1602
        %2222 = vmatprep.subr.bf16.mxu0 %v1595
        %2223 = vmatpush2.bf16.msra.mxu0 %v1594
        %2224 = vmatprep.subr.bf16.mxu0 %v1587
        %2225 = vmatpush2.bf16.msra.mxu0 %v1586
        %2226 = vmatprep.mubr.bf16.mxu0 %v449
        %2227 = vmatmul.mubr.bf16.gmra.mxu0 %v448
        %v2228 = vpop.f32.mrf.mxu0
        %v2229 = vadd.f32 %v729, %v2228
        %v2230 = vpop.f32.mrf.mxu0
        %v2231 = vadd.f32 %v733, %v2230
        %v2232 = vpop.f32.mrf.mxu0
        %v2233 = vpop.f32.mrf.mxu0
        %2234 = vdwg.mxu0
        %2235 = vmatprep.subr.bf16.mxu0 %v1707
        %2236 = vmatpush1.bf16.msra.mxu0 %v1706
        %2237 = vmatprep.subr.bf16.mxu0 %v1699
        %2238 = vmatpush1.bf16.msra.mxu0 %v1698
        %2239 = vmatprep.subr.bf16.mxu0 %v1691
        %2240 = vmatpush1.bf16.msra.mxu0 %v1690
        %2241 = vmatprep.subr.bf16.mxu0 %v1683
        %2242 = vmatpush1.bf16.msra.mxu0 %v1682
        %2243 = vmatprep.subr.bf16.mxu0 %v1675
        %2244 = vmatpush1.bf16.msra.mxu0 %v1674
        %2245 = vmatprep.subr.bf16.mxu0 %v1667
        %2246 = vmatpush1.bf16.msra.mxu0 %v1666
        %2247 = vmatprep.subr.bf16.mxu0 %v1659
        %2248 = vmatpush1.bf16.msra.mxu0 %v1658
        %2249 = vmatprep.subr.bf16.mxu0 %v1651
        %2250 = vmatpush1.bf16.msra.mxu0 %v1650
        %2251 = vmatprep.subr.bf16.mxu0 %v1771
        %2252 = vmatpush2.bf16.msra.mxu0 %v1770
        %2253 = vmatprep.subr.bf16.mxu0 %v1763
        %2254 = vmatpush2.bf16.msra.mxu0 %v1762
        %2255 = vmatprep.subr.bf16.mxu0 %v1755
        %2256 = vmatpush2.bf16.msra.mxu0 %v1754
        %2257 = vmatprep.subr.bf16.mxu0 %v1747
        %2258 = vmatpush2.bf16.msra.mxu0 %v1746
        %2259 = vmatprep.subr.bf16.mxu0 %v1739
        %2260 = vmatpush2.bf16.msra.mxu0 %v1738
        %2261 = vmatprep.subr.bf16.mxu0 %v1731
        %2262 = vmatpush2.bf16.msra.mxu0 %v1730
        %2263 = vmatprep.subr.bf16.mxu0 %v1723
        %2264 = vmatpush2.bf16.msra.mxu0 %v1722
        %2265 = vmatprep.subr.bf16.mxu0 %v1715
        %2266 = vmatpush2.bf16.msra.mxu0 %v1714
        %2267 = vmatprep.mubr.bf16.mxu0 %v451
        %2268 = vmatmul.mubr.bf16.gmra.mxu0 %v450
        %v2269 = vpop.f32.mrf.mxu0
        %v2270 = vadd.f32 %v2229, %v2269
        %v2271 = vpop.f32.mrf.mxu0
        %v2272 = vadd.f32 %v2231, %v2271
        %v2273 = vpop.f32.mrf.mxu0
        %v2274 = vpop.f32.mrf.mxu0
        %2275 = vdwg.mxu0
        %2276 = vmatprep.subr.bf16.mxu0 %v1581
        %2277 = vmatpush1.bf16.msra.mxu0 %v1580
        %2278 = vmatprep.subr.bf16.mxu0 %v1573
        %2279 = vmatpush1.bf16.msra.mxu0 %v1572
        %2280 = vmatprep.subr.bf16.mxu0 %v1565
        %2281 = vmatpush1.bf16.msra.mxu0 %v1564
        %2282 = vmatprep.subr.bf16.mxu0 %v1557
        %2283 = vmatpush1.bf16.msra.mxu0 %v1556
        %2284 = vmatprep.subr.bf16.mxu0 %v1549
        %2285 = vmatpush1.bf16.msra.mxu0 %v1548
        %2286 = vmatprep.subr.bf16.mxu0 %v1541
        %2287 = vmatpush1.bf16.msra.mxu0 %v1540
        %2288 = vmatprep.subr.bf16.mxu0 %v1533
        %2289 = vmatpush1.bf16.msra.mxu0 %v1532
        %2290 = vmatprep.subr.bf16.mxu0 %v1525
        %2291 = vmatpush1.bf16.msra.mxu0 %v1524
        %2292 = vmatprep.subr.bf16.mxu0 %v1645
        %2293 = vmatpush2.bf16.msra.mxu0 %v1644
        %2294 = vmatprep.subr.bf16.mxu0 %v1637
        %2295 = vmatpush2.bf16.msra.mxu0 %v1636
        %2296 = vmatprep.subr.bf16.mxu0 %v1629
        %2297 = vmatpush2.bf16.msra.mxu0 %v1628
        %2298 = vmatprep.subr.bf16.mxu0 %v1621
        %2299 = vmatpush2.bf16.msra.mxu0 %v1620
        %2300 = vmatprep.subr.bf16.mxu0 %v1613
        %2301 = vmatpush2.bf16.msra.mxu0 %v1612
        %2302 = vmatprep.subr.bf16.mxu0 %v1605
        %2303 = vmatpush2.bf16.msra.mxu0 %v1604
        %2304 = vmatprep.subr.bf16.mxu0 %v1597
        %2305 = vmatpush2.bf16.msra.mxu0 %v1596
        %2306 = vmatprep.subr.bf16.mxu0 %v1589
        %2307 = vmatpush2.bf16.msra.mxu0 %v1588
        %2308 = vmatprep.mubr.bf16.mxu0 %v449
        %2309 = vmatmul.mubr.bf16.gmra.mxu0 %v448
        %v2310 = vpop.f32.mrf.mxu0
        %v2311 = vadd.f32 %v737, %v2310
        %v2312 = vpop.f32.mrf.mxu0
        %v2313 = vadd.f32 %v741, %v2312
        %v2314 = vpop.f32.mrf.mxu0
        %v2315 = vpop.f32.mrf.mxu0
        %2316 = vdwg.mxu0
        %2317 = vmatprep.subr.bf16.mxu0 %v1709
        %2318 = vmatpush1.bf16.msra.mxu0 %v1708
        %2319 = vmatprep.subr.bf16.mxu0 %v1701
        %2320 = vmatpush1.bf16.msra.mxu0 %v1700
        %2321 = vmatprep.subr.bf16.mxu0 %v1693
        %2322 = vmatpush1.bf16.msra.mxu0 %v1692
        %2323 = vmatprep.subr.bf16.mxu0 %v1685
        %2324 = vmatpush1.bf16.msra.mxu0 %v1684
        %2325 = vmatprep.subr.bf16.mxu0 %v1677
        %2326 = vmatpush1.bf16.msra.mxu0 %v1676
        %2327 = vmatprep.subr.bf16.mxu0 %v1669
        %2328 = vmatpush1.bf16.msra.mxu0 %v1668
        %2329 = vmatprep.subr.bf16.mxu0 %v1661
        %2330 = vmatpush1.bf16.msra.mxu0 %v1660
        %2331 = vmatprep.subr.bf16.mxu0 %v1653
        %2332 = vmatpush1.bf16.msra.mxu0 %v1652
        %2333 = vmatprep.subr.bf16.mxu0 %v1773
        %2334 = vmatpush2.bf16.msra.mxu0 %v1772
        %2335 = vmatprep.subr.bf16.mxu0 %v1765
        %2336 = vmatpush2.bf16.msra.mxu0 %v1764
        %2337 = vmatprep.subr.bf16.mxu0 %v1757
        %2338 = vmatpush2.bf16.msra.mxu0 %v1756
        %2339 = vmatprep.subr.bf16.mxu0 %v1749
        %2340 = vmatpush2.bf16.msra.mxu0 %v1748
        %2341 = vmatprep.subr.bf16.mxu0 %v1741
        %2342 = vmatpush2.bf16.msra.mxu0 %v1740
        %2343 = vmatprep.subr.bf16.mxu0 %v1733
        %2344 = vmatpush2.bf16.msra.mxu0 %v1732
        %2345 = vmatprep.subr.bf16.mxu0 %v1725
        %2346 = vmatpush2.bf16.msra.mxu0 %v1724
        %2347 = vmatprep.subr.bf16.mxu0 %v1717
        %2348 = vmatpush2.bf16.msra.mxu0 %v1716
        %2349 = vmatprep.mubr.bf16.mxu0 %v451
        %2350 = vmatmul.mubr.bf16.gmra.mxu0 %v450
        %v2351 = vpop.f32.mrf.mxu0
        %v2352 = vadd.f32 %v2311, %v2351
        %v2353 = vpop.f32.mrf.mxu0
        %v2354 = vadd.f32 %v2313, %v2353
        %v2355 = vpop.f32.mrf.mxu0
        %v2356 = vpop.f32.mrf.mxu0
        %2357 = vdwg.mxu0
        %v2358 = vmax.f32 %v2106, 0.0
        %v2359 = vmax.f32 %v2108, 0.0
        %v2360 = vmax.f32 %v2188, 0.0
        %v2361 = vmax.f32 %v2190, 0.0
        %v2362 = vmax.f32 %v2270, 0.0
        %v2363 = vmax.f32 %v2272, 0.0
        %v2364 = vmax.f32 %v2352, 0.0
        %v2365 = vmax.f32 %v2354, 0.0
        %v2366 = vpack.c.bf16 %v2358, %v2358
        %v2367 = vpack.c.bf16 %v2359, %v2359
        %v2368 = vpack.c.bf16 %v2360, %v2360
        %v2369 = vpack.c.bf16 %v2361, %v2361
        %v2370 = vpack.c.bf16 %v2362, %v2362
        %v2371 = vpack.c.bf16 %v2363, %v2363
        %v2372 = vpack.c.bf16 %v2364, %v2364
        %v2373 = vpack.c.bf16 %v2365, %v2365
        %v2374 = vld [vmem:[#allocation11] sm:$0xff]
        %v2375 = vld [vmem:[#allocation11 + $0x8] sm:$0xff]
        %v2376 = vld [vmem:[#allocation11 + $0x10] sm:$0xff]
        %v2377 = vld [vmem:[#allocation11 + $0x18] sm:$0xff]
        %v2378 = vld [vmem:[#allocation11 + $0x20] sm:$0xff]
        %v2379 = vld [vmem:[#allocation11 + $0x28] sm:$0xff]
        %v2380 = vld [vmem:[#allocation11 + $0x30] sm:$0xff]
        %v2381 = vld [vmem:[#allocation11 + $0x38] sm:$0xff]
        %v2382 = vld [vmem:[#allocation11 + $0x40] sm:$0xff]
        %v2383 = vld [vmem:[#allocation11 + $0x48] sm:$0xff]
        %v2384 = vld [vmem:[#allocation11 + $0x50] sm:$0xff]
        %v2385 = vld [vmem:[#allocation11 + $0x58] sm:$0xff]
        %v2386 = vld [vmem:[#allocation11 + $0x60] sm:$0xff]
        %v2387 = vld [vmem:[#allocation11 + $0x68] sm:$0xff]
        %v2388 = vld [vmem:[#allocation11 + $0x70] sm:$0xff]
        %v2389 = vld [vmem:[#allocation11 + $0x78] sm:$0xff]
        %v2390 = vld [vmem:[#allocation11 + $0x80] sm:$0xff]
        %v2391 = vld [vmem:[#allocation11 + $0x88] sm:$0xff]
        %v2392 = vld [vmem:[#allocation11 + $0x90] sm:$0xff]
        %v2393 = vld [vmem:[#allocation11 + $0x98] sm:$0xff]
        %v2394 = vld [vmem:[#allocation11 + $0xa0] sm:$0xff]
        %v2395 = vld [vmem:[#allocation11 + $0xa8] sm:$0xff]
        %v2396 = vld [vmem:[#allocation11 + $0xb0] sm:$0xff]
        %v2397 = vld [vmem:[#allocation11 + $0xb8] sm:$0xff]
        %v2398 = vld [vmem:[#allocation11 + $0xc0] sm:$0xff]
        %v2399 = vld [vmem:[#allocation11 + $0xc8] sm:$0xff]
        %v2400 = vld [vmem:[#allocation11 + $0xd0] sm:$0xff]
        %v2401 = vld [vmem:[#allocation11 + $0xd8] sm:$0xff]
        %v2402 = vld [vmem:[#allocation11 + $0xe0] sm:$0xff]
        %v2403 = vld [vmem:[#allocation11 + $0xe8] sm:$0xff]
        %v2404 = vld [vmem:[#allocation11 + $0xf0] sm:$0xff]
        %v2405 = vld [vmem:[#allocation11 + $0xf8] sm:$0xff]
        %v2406 = vld [vmem:[#allocation11 + $0x100] sm:$0xff]
        %v2407 = vld [vmem:[#allocation11 + $0x108] sm:$0xff]
        %v2408 = vld [vmem:[#allocation11 + $0x110] sm:$0xff]
        %v2409 = vld [vmem:[#allocation11 + $0x118] sm:$0xff]
        %v2410 = vld [vmem:[#allocation11 + $0x120] sm:$0xff]
        %v2411 = vld [vmem:[#allocation11 + $0x128] sm:$0xff]
        %v2412 = vld [vmem:[#allocation11 + $0x130] sm:$0xff]
        %v2413 = vld [vmem:[#allocation11 + $0x138] sm:$0xff]
        %v2414 = vld [vmem:[#allocation11 + $0x140] sm:$0xff]
        %v2415 = vld [vmem:[#allocation11 + $0x148] sm:$0xff]
        %v2416 = vld [vmem:[#allocation11 + $0x150] sm:$0xff]
        %v2417 = vld [vmem:[#allocation11 + $0x158] sm:$0xff]
        %v2418 = vld [vmem:[#allocation11 + $0x160] sm:$0xff]
        %v2419 = vld [vmem:[#allocation11 + $0x168] sm:$0xff]
        %v2420 = vld [vmem:[#allocation11 + $0x170] sm:$0xff]
        %v2421 = vld [vmem:[#allocation11 + $0x178] sm:$0xff]
        %v2422 = vld [vmem:[#allocation11 + $0x180] sm:$0xff]
        %v2423 = vld [vmem:[#allocation11 + $0x188] sm:$0xff]
        %v2424 = vld [vmem:[#allocation11 + $0x190] sm:$0xff]
        %v2425 = vld [vmem:[#allocation11 + $0x198] sm:$0xff]
        %v2426 = vld [vmem:[#allocation11 + $0x1a0] sm:$0xff]
        %v2427 = vld [vmem:[#allocation11 + $0x1a8] sm:$0xff]
        %v2428 = vld [vmem:[#allocation11 + $0x1b0] sm:$0xff]
        %v2429 = vld [vmem:[#allocation11 + $0x1b8] sm:$0xff]
        %v2430 = vld [vmem:[#allocation11 + $0x1c0] sm:$0xff]
        %v2431 = vld [vmem:[#allocation11 + $0x1c8] sm:$0xff]
        %v2432 = vld [vmem:[#allocation11 + $0x1d0] sm:$0xff]
        %v2433 = vld [vmem:[#allocation11 + $0x1d8] sm:$0xff]
        %v2434 = vld [vmem:[#allocation11 + $0x1e0] sm:$0xff]
        %v2435 = vld [vmem:[#allocation11 + $0x1e8] sm:$0xff]
        %v2436 = vld [vmem:[#allocation11 + $0x1f0] sm:$0xff]
        %v2437 = vld [vmem:[#allocation11 + $0x1f8] sm:$0xff]
        %v2438 = vld [vmem:[#allocation11 + $0x200] sm:$0xff]
        %v2439 = vld [vmem:[#allocation11 + $0x208] sm:$0xff]
        %v2440 = vld [vmem:[#allocation11 + $0x210] sm:$0xff]
        %v2441 = vld [vmem:[#allocation11 + $0x218] sm:$0xff]
        %v2442 = vld [vmem:[#allocation11 + $0x220] sm:$0xff]
        %v2443 = vld [vmem:[#allocation11 + $0x228] sm:$0xff]
        %v2444 = vld [vmem:[#allocation11 + $0x230] sm:$0xff]
        %v2445 = vld [vmem:[#allocation11 + $0x238] sm:$0xff]
        %v2446 = vld [vmem:[#allocation11 + $0x240] sm:$0xff]
        %v2447 = vld [vmem:[#allocation11 + $0x248] sm:$0xff]
        %v2448 = vld [vmem:[#allocation11 + $0x250] sm:$0xff]
        %v2449 = vld [vmem:[#allocation11 + $0x258] sm:$0xff]
        %v2450 = vld [vmem:[#allocation11 + $0x260] sm:$0xff]
        %v2451 = vld [vmem:[#allocation11 + $0x268] sm:$0xff]
        %v2452 = vld [vmem:[#allocation11 + $0x270] sm:$0xff]
        %v2453 = vld [vmem:[#allocation11 + $0x278] sm:$0xff]
        %v2454 = vld [vmem:[#allocation11 + $0x280] sm:$0xff]
        %v2455 = vld [vmem:[#allocation11 + $0x288] sm:$0xff]
        %v2456 = vld [vmem:[#allocation11 + $0x290] sm:$0xff]
        %v2457 = vld [vmem:[#allocation11 + $0x298] sm:$0xff]
        %v2458 = vld [vmem:[#allocation11 + $0x2a0] sm:$0xff]
        %v2459 = vld [vmem:[#allocation11 + $0x2a8] sm:$0xff]
        %v2460 = vld [vmem:[#allocation11 + $0x2b0] sm:$0xff]
        %v2461 = vld [vmem:[#allocation11 + $0x2b8] sm:$0xff]
        %v2462 = vld [vmem:[#allocation11 + $0x2c0] sm:$0xff]
        %v2463 = vld [vmem:[#allocation11 + $0x2c8] sm:$0xff]
        %v2464 = vld [vmem:[#allocation11 + $0x2d0] sm:$0xff]
        %v2465 = vld [vmem:[#allocation11 + $0x2d8] sm:$0xff]
        %v2466 = vld [vmem:[#allocation11 + $0x2e0] sm:$0xff]
        %v2467 = vld [vmem:[#allocation11 + $0x2e8] sm:$0xff]
        %v2468 = vld [vmem:[#allocation11 + $0x2f0] sm:$0xff]
        %v2469 = vld [vmem:[#allocation11 + $0x2f8] sm:$0xff]
        %v2470 = vld [vmem:[#allocation11 + $0x300] sm:$0xff]
        %v2471 = vld [vmem:[#allocation11 + $0x308] sm:$0xff]
        %v2472 = vld [vmem:[#allocation11 + $0x310] sm:$0xff]
        %v2473 = vld [vmem:[#allocation11 + $0x318] sm:$0xff]
        %v2474 = vld [vmem:[#allocation11 + $0x320] sm:$0xff]
        %v2475 = vld [vmem:[#allocation11 + $0x328] sm:$0xff]
        %v2476 = vld [vmem:[#allocation11 + $0x330] sm:$0xff]
        %v2477 = vld [vmem:[#allocation11 + $0x338] sm:$0xff]
        %v2478 = vld [vmem:[#allocation11 + $0x340] sm:$0xff]
        %v2479 = vld [vmem:[#allocation11 + $0x348] sm:$0xff]
        %v2480 = vld [vmem:[#allocation11 + $0x350] sm:$0xff]
        %v2481 = vld [vmem:[#allocation11 + $0x358] sm:$0xff]
        %v2482 = vld [vmem:[#allocation11 + $0x360] sm:$0xff]
        %v2483 = vld [vmem:[#allocation11 + $0x368] sm:$0xff]
        %v2484 = vld [vmem:[#allocation11 + $0x370] sm:$0xff]
        %v2485 = vld [vmem:[#allocation11 + $0x378] sm:$0xff]
        %v2486 = vld [vmem:[#allocation11 + $0x380] sm:$0xff]
        %v2487 = vld [vmem:[#allocation11 + $0x388] sm:$0xff]
        %v2488 = vld [vmem:[#allocation11 + $0x390] sm:$0xff]
        %v2489 = vld [vmem:[#allocation11 + $0x398] sm:$0xff]
        %v2490 = vld [vmem:[#allocation11 + $0x3a0] sm:$0xff]
        %v2491 = vld [vmem:[#allocation11 + $0x3a8] sm:$0xff]
        %v2492 = vld [vmem:[#allocation11 + $0x3b0] sm:$0xff]
        %v2493 = vld [vmem:[#allocation11 + $0x3b8] sm:$0xff]
        %v2494 = vld [vmem:[#allocation11 + $0x3c0] sm:$0xff]
        %v2495 = vld [vmem:[#allocation11 + $0x3c8] sm:$0xff]
        %v2496 = vld [vmem:[#allocation11 + $0x3d0] sm:$0xff]
        %v2497 = vld [vmem:[#allocation11 + $0x3d8] sm:$0xff]
        %v2498 = vld [vmem:[#allocation11 + $0x3e0] sm:$0xff]
        %v2499 = vld [vmem:[#allocation11 + $0x3e8] sm:$0xff]
        %v2500 = vld [vmem:[#allocation11 + $0x3f0] sm:$0xff]
        %v2501 = vld [vmem:[#allocation11 + $0x3f8] sm:$0xff]
        %v2502 = vld [vmem:[#allocation11 + $0x400] sm:$0xff]
        %v2503 = vld [vmem:[#allocation11 + $0x408] sm:$0xff]
        %v2504 = vld [vmem:[#allocation11 + $0x410] sm:$0xff]
        %v2505 = vld [vmem:[#allocation11 + $0x418] sm:$0xff]
        %v2506 = vld [vmem:[#allocation11 + $0x420] sm:$0xff]
        %v2507 = vld [vmem:[#allocation11 + $0x428] sm:$0xff]
        %v2508 = vld [vmem:[#allocation11 + $0x430] sm:$0xff]
        %v2509 = vld [vmem:[#allocation11 + $0x438] sm:$0xff]
        %v2510 = vld [vmem:[#allocation11 + $0x440] sm:$0xff]
        %v2511 = vld [vmem:[#allocation11 + $0x448] sm:$0xff]
        %v2512 = vld [vmem:[#allocation11 + $0x450] sm:$0xff]
        %v2513 = vld [vmem:[#allocation11 + $0x458] sm:$0xff]
        %v2514 = vld [vmem:[#allocation11 + $0x460] sm:$0xff]
        %v2515 = vld [vmem:[#allocation11 + $0x468] sm:$0xff]
        %v2516 = vld [vmem:[#allocation11 + $0x470] sm:$0xff]
        %v2517 = vld [vmem:[#allocation11 + $0x478] sm:$0xff]
        %v2518 = vld [vmem:[#allocation11 + $0x480] sm:$0xff]
        %v2519 = vld [vmem:[#allocation11 + $0x488] sm:$0xff]
        %v2520 = vld [vmem:[#allocation11 + $0x490] sm:$0xff]
        %v2521 = vld [vmem:[#allocation11 + $0x498] sm:$0xff]
        %v2522 = vld [vmem:[#allocation11 + $0x4a0] sm:$0xff]
        %v2523 = vld [vmem:[#allocation11 + $0x4a8] sm:$0xff]
        %v2524 = vld [vmem:[#allocation11 + $0x4b0] sm:$0xff]
        %v2525 = vld [vmem:[#allocation11 + $0x4b8] sm:$0xff]
        %v2526 = vld [vmem:[#allocation11 + $0x4c0] sm:$0xff]
        %v2527 = vld [vmem:[#allocation11 + $0x4c8] sm:$0xff]
        %v2528 = vld [vmem:[#allocation11 + $0x4d0] sm:$0xff]
        %v2529 = vld [vmem:[#allocation11 + $0x4d8] sm:$0xff]
        %v2530 = vld [vmem:[#allocation11 + $0x4e0] sm:$0xff]
        %v2531 = vld [vmem:[#allocation11 + $0x4e8] sm:$0xff]
        %v2532 = vld [vmem:[#allocation11 + $0x4f0] sm:$0xff]
        %v2533 = vld [vmem:[#allocation11 + $0x4f8] sm:$0xff]
        %v2534 = vld [vmem:[#allocation11 + $0x500] sm:$0xff]
        %v2535 = vld [vmem:[#allocation11 + $0x508] sm:$0xff]
        %v2536 = vld [vmem:[#allocation11 + $0x510] sm:$0xff]
        %v2537 = vld [vmem:[#allocation11 + $0x518] sm:$0xff]
        %v2538 = vld [vmem:[#allocation11 + $0x520] sm:$0xff]
        %v2539 = vld [vmem:[#allocation11 + $0x528] sm:$0xff]
        %v2540 = vld [vmem:[#allocation11 + $0x530] sm:$0xff]
        %v2541 = vld [vmem:[#allocation11 + $0x538] sm:$0xff]
        %v2542 = vld [vmem:[#allocation11 + $0x540] sm:$0xff]
        %v2543 = vld [vmem:[#allocation11 + $0x548] sm:$0xff]
        %v2544 = vld [vmem:[#allocation11 + $0x550] sm:$0xff]
        %v2545 = vld [vmem:[#allocation11 + $0x558] sm:$0xff]
        %v2546 = vld [vmem:[#allocation11 + $0x560] sm:$0xff]
        %v2547 = vld [vmem:[#allocation11 + $0x568] sm:$0xff]
        %v2548 = vld [vmem:[#allocation11 + $0x570] sm:$0xff]
        %v2549 = vld [vmem:[#allocation11 + $0x578] sm:$0xff]
        %v2550 = vld [vmem:[#allocation11 + $0x580] sm:$0xff]
        %v2551 = vld [vmem:[#allocation11 + $0x588] sm:$0xff]
        %v2552 = vld [vmem:[#allocation11 + $0x590] sm:$0xff]
        %v2553 = vld [vmem:[#allocation11 + $0x598] sm:$0xff]
        %v2554 = vld [vmem:[#allocation11 + $0x5a0] sm:$0xff]
        %v2555 = vld [vmem:[#allocation11 + $0x5a8] sm:$0xff]
        %v2556 = vld [vmem:[#allocation11 + $0x5b0] sm:$0xff]
        %v2557 = vld [vmem:[#allocation11 + $0x5b8] sm:$0xff]
        %v2558 = vld [vmem:[#allocation11 + $0x5c0] sm:$0xff]
        %v2559 = vld [vmem:[#allocation11 + $0x5c8] sm:$0xff]
        %v2560 = vld [vmem:[#allocation11 + $0x5d0] sm:$0xff]
        %v2561 = vld [vmem:[#allocation11 + $0x5d8] sm:$0xff]
        %v2562 = vld [vmem:[#allocation11 + $0x5e0] sm:$0xff]
        %v2563 = vld [vmem:[#allocation11 + $0x5e8] sm:$0xff]
        %v2564 = vld [vmem:[#allocation11 + $0x5f0] sm:$0xff]
        %v2565 = vld [vmem:[#allocation11 + $0x5f8] sm:$0xff]
        %v2566 = vld [vmem:[#allocation11 + $0x600] sm:$0xff]
        %v2567 = vld [vmem:[#allocation11 + $0x608] sm:$0xff]
        %v2568 = vld [vmem:[#allocation11 + $0x610] sm:$0xff]
        %v2569 = vld [vmem:[#allocation11 + $0x618] sm:$0xff]
        %v2570 = vld [vmem:[#allocation11 + $0x620] sm:$0xff]
        %v2571 = vld [vmem:[#allocation11 + $0x628] sm:$0xff]
        %v2572 = vld [vmem:[#allocation11 + $0x630] sm:$0xff]
        %v2573 = vld [vmem:[#allocation11 + $0x638] sm:$0xff]
        %v2574 = vld [vmem:[#allocation11 + $0x640] sm:$0xff]
        %v2575 = vld [vmem:[#allocation11 + $0x648] sm:$0xff]
        %v2576 = vld [vmem:[#allocation11 + $0x650] sm:$0xff]
        %v2577 = vld [vmem:[#allocation11 + $0x658] sm:$0xff]
        %v2578 = vld [vmem:[#allocation11 + $0x660] sm:$0xff]
        %v2579 = vld [vmem:[#allocation11 + $0x668] sm:$0xff]
        %v2580 = vld [vmem:[#allocation11 + $0x670] sm:$0xff]
        %v2581 = vld [vmem:[#allocation11 + $0x678] sm:$0xff]
        %v2582 = vld [vmem:[#allocation11 + $0x680] sm:$0xff]
        %v2583 = vld [vmem:[#allocation11 + $0x688] sm:$0xff]
        %v2584 = vld [vmem:[#allocation11 + $0x690] sm:$0xff]
        %v2585 = vld [vmem:[#allocation11 + $0x698] sm:$0xff]
        %v2586 = vld [vmem:[#allocation11 + $0x6a0] sm:$0xff]
        %v2587 = vld [vmem:[#allocation11 + $0x6a8] sm:$0xff]
        %v2588 = vld [vmem:[#allocation11 + $0x6b0] sm:$0xff]
        %v2589 = vld [vmem:[#allocation11 + $0x6b8] sm:$0xff]
        %v2590 = vld [vmem:[#allocation11 + $0x6c0] sm:$0xff]
        %v2591 = vld [vmem:[#allocation11 + $0x6c8] sm:$0xff]
        %v2592 = vld [vmem:[#allocation11 + $0x6d0] sm:$0xff]
        %v2593 = vld [vmem:[#allocation11 + $0x6d8] sm:$0xff]
        %v2594 = vld [vmem:[#allocation11 + $0x6e0] sm:$0xff]
        %v2595 = vld [vmem:[#allocation11 + $0x6e8] sm:$0xff]
        %v2596 = vld [vmem:[#allocation11 + $0x6f0] sm:$0xff]
        %v2597 = vld [vmem:[#allocation11 + $0x6f8] sm:$0xff]
        %v2598 = vld [vmem:[#allocation11 + $0x700] sm:$0xff]
        %v2599 = vld [vmem:[#allocation11 + $0x708] sm:$0xff]
        %v2600 = vld [vmem:[#allocation11 + $0x710] sm:$0xff]
        %v2601 = vld [vmem:[#allocation11 + $0x718] sm:$0xff]
        %v2602 = vld [vmem:[#allocation11 + $0x720] sm:$0xff]
        %v2603 = vld [vmem:[#allocation11 + $0x728] sm:$0xff]
        %v2604 = vld [vmem:[#allocation11 + $0x730] sm:$0xff]
        %v2605 = vld [vmem:[#allocation11 + $0x738] sm:$0xff]
        %v2606 = vld [vmem:[#allocation11 + $0x740] sm:$0xff]
        %v2607 = vld [vmem:[#allocation11 + $0x748] sm:$0xff]
        %v2608 = vld [vmem:[#allocation11 + $0x750] sm:$0xff]
        %v2609 = vld [vmem:[#allocation11 + $0x758] sm:$0xff]
        %v2610 = vld [vmem:[#allocation11 + $0x760] sm:$0xff]
        %v2611 = vld [vmem:[#allocation11 + $0x768] sm:$0xff]
        %v2612 = vld [vmem:[#allocation11 + $0x770] sm:$0xff]
        %v2613 = vld [vmem:[#allocation11 + $0x778] sm:$0xff]
        %v2614 = vld [vmem:[#allocation11 + $0x780] sm:$0xff]
        %v2615 = vld [vmem:[#allocation11 + $0x788] sm:$0xff]
        %v2616 = vld [vmem:[#allocation11 + $0x790] sm:$0xff]
        %v2617 = vld [vmem:[#allocation11 + $0x798] sm:$0xff]
        %v2618 = vld [vmem:[#allocation11 + $0x7a0] sm:$0xff]
        %v2619 = vld [vmem:[#allocation11 + $0x7a8] sm:$0xff]
        %v2620 = vld [vmem:[#allocation11 + $0x7b0] sm:$0xff]
        %v2621 = vld [vmem:[#allocation11 + $0x7b8] sm:$0xff]
        %v2622 = vld [vmem:[#allocation11 + $0x7c0] sm:$0xff]
        %v2623 = vld [vmem:[#allocation11 + $0x7c8] sm:$0xff]
        %v2624 = vld [vmem:[#allocation11 + $0x7d0] sm:$0xff]
        %v2625 = vld [vmem:[#allocation11 + $0x7d8] sm:$0xff]
        %v2626 = vld [vmem:[#allocation11 + $0x7e0] sm:$0xff]
        %v2627 = vld [vmem:[#allocation11 + $0x7e8] sm:$0xff]
        %v2628 = vld [vmem:[#allocation11 + $0x7f0] sm:$0xff]
        %v2629 = vld [vmem:[#allocation11 + $0x7f8] sm:$0xff]
        %v2630 = vld [vmem:[%s6] sm:$0xf]
        %v2632 = vlaneseq
        %v2633 = vshrl.u32 %v2632, 7
        %v2634 = vsub.s32 0, %v2633
        %v2635 = vrot.slane %v2630, %v2634
        %v2636 = vlaneseq
        %v2637 = vshrl.u32 %v2636, 7
        %v2638 = vsub.s32 1, %v2637
        %v2639 = vrot.slane %v2630, %v2638
        %v2640 = vlaneseq
        %v2641 = vshrl.u32 %v2640, 7
        %v2642 = vsub.s32 2, %v2641
        %v2643 = vrot.slane %v2630, %v2642
        %v2644 = vlaneseq
        %v2645 = vshrl.u32 %v2644, 7
        %v2646 = vsub.s32 3, %v2645
        %v2647 = vrot.slane %v2630, %v2646
        %v2908 = vunpack.c.l.b16 %v2374
        %v2909 = vunpack.c.h.b16 %v2374
        %v2910 = vunpack.c.l.b16 %v2375
        %v2911 = vunpack.c.h.b16 %v2375
        %v2912 = vunpack.c.l.b16 %v2376
        %v2913 = vunpack.c.h.b16 %v2376
        %v2914 = vunpack.c.l.b16 %v2377
        %v2915 = vunpack.c.h.b16 %v2377
        %v2916 = vunpack.c.l.b16 %v2378
        %v2917 = vunpack.c.h.b16 %v2378
        %v2918 = vunpack.c.l.b16 %v2379
        %v2919 = vunpack.c.h.b16 %v2379
        %v2920 = vunpack.c.l.b16 %v2380
        %v2921 = vunpack.c.h.b16 %v2380
        %v2922 = vunpack.c.l.b16 %v2381
        %v2923 = vunpack.c.h.b16 %v2381
        %v2924 = vunpack.c.l.b16 %v2382
        %v2925 = vunpack.c.h.b16 %v2382
        %v2926 = vunpack.c.l.b16 %v2383
        %v2927 = vunpack.c.h.b16 %v2383
        %v2928 = vunpack.c.l.b16 %v2384
        %v2929 = vunpack.c.h.b16 %v2384
        %v2930 = vunpack.c.l.b16 %v2385
        %v2931 = vunpack.c.h.b16 %v2385
        %v2932 = vunpack.c.l.b16 %v2386
        %v2933 = vunpack.c.h.b16 %v2386
        %v2934 = vunpack.c.l.b16 %v2387
        %v2935 = vunpack.c.h.b16 %v2387
        %v2936 = vunpack.c.l.b16 %v2388
        %v2937 = vunpack.c.h.b16 %v2388
        %v2938 = vunpack.c.l.b16 %v2389
        %v2939 = vunpack.c.h.b16 %v2389
        %v2940 = vunpack.c.l.b16 %v2390
        %v2941 = vunpack.c.h.b16 %v2390
        %v2942 = vunpack.c.l.b16 %v2391
        %v2943 = vunpack.c.h.b16 %v2391
        %v2944 = vunpack.c.l.b16 %v2392
        %v2945 = vunpack.c.h.b16 %v2392
        %v2946 = vunpack.c.l.b16 %v2393
        %v2947 = vunpack.c.h.b16 %v2393
        %v2948 = vunpack.c.l.b16 %v2394
        %v2949 = vunpack.c.h.b16 %v2394
        %v2950 = vunpack.c.l.b16 %v2395
        %v2951 = vunpack.c.h.b16 %v2395
        %v2952 = vunpack.c.l.b16 %v2396
        %v2953 = vunpack.c.h.b16 %v2396
        %v2954 = vunpack.c.l.b16 %v2397
        %v2955 = vunpack.c.h.b16 %v2397
        %v2956 = vunpack.c.l.b16 %v2398
        %v2957 = vunpack.c.h.b16 %v2398
        %v2958 = vunpack.c.l.b16 %v2399
        %v2959 = vunpack.c.h.b16 %v2399
        %v2960 = vunpack.c.l.b16 %v2400
        %v2961 = vunpack.c.h.b16 %v2400
        %v2962 = vunpack.c.l.b16 %v2401
        %v2963 = vunpack.c.h.b16 %v2401
        %v2964 = vunpack.c.l.b16 %v2402
        %v2965 = vunpack.c.h.b16 %v2402
        %v2966 = vunpack.c.l.b16 %v2403
        %v2967 = vunpack.c.h.b16 %v2403
        %v2968 = vunpack.c.l.b16 %v2404
        %v2969 = vunpack.c.h.b16 %v2404
        %v2970 = vunpack.c.l.b16 %v2405
        %v2971 = vunpack.c.h.b16 %v2405
        %v2972 = vunpack.c.l.b16 %v2406
        %v2973 = vunpack.c.h.b16 %v2406
        %v2974 = vunpack.c.l.b16 %v2407
        %v2975 = vunpack.c.h.b16 %v2407
        %v2976 = vunpack.c.l.b16 %v2408
        %v2977 = vunpack.c.h.b16 %v2408
        %v2978 = vunpack.c.l.b16 %v2409
        %v2979 = vunpack.c.h.b16 %v2409
        %v2980 = vunpack.c.l.b16 %v2410
        %v2981 = vunpack.c.h.b16 %v2410
        %v2982 = vunpack.c.l.b16 %v2411
        %v2983 = vunpack.c.h.b16 %v2411
        %v2984 = vunpack.c.l.b16 %v2412
        %v2985 = vunpack.c.h.b16 %v2412
        %v2986 = vunpack.c.l.b16 %v2413
        %v2987 = vunpack.c.h.b16 %v2413
        %v2988 = vunpack.c.l.b16 %v2414
        %v2989 = vunpack.c.h.b16 %v2414
        %v2990 = vunpack.c.l.b16 %v2415
        %v2991 = vunpack.c.h.b16 %v2415
        %v2992 = vunpack.c.l.b16 %v2416
        %v2993 = vunpack.c.h.b16 %v2416
        %v2994 = vunpack.c.l.b16 %v2417
        %v2995 = vunpack.c.h.b16 %v2417
        %v2996 = vunpack.c.l.b16 %v2418
        %v2997 = vunpack.c.h.b16 %v2418
        %v2998 = vunpack.c.l.b16 %v2419
        %v2999 = vunpack.c.h.b16 %v2419
        %v3000 = vunpack.c.l.b16 %v2420
        %v3001 = vunpack.c.h.b16 %v2420
        %v3002 = vunpack.c.l.b16 %v2421
        %v3003 = vunpack.c.h.b16 %v2421
        %v3004 = vunpack.c.l.b16 %v2422
        %v3005 = vunpack.c.h.b16 %v2422
        %v3006 = vunpack.c.l.b16 %v2423
        %v3007 = vunpack.c.h.b16 %v2423
        %v3008 = vunpack.c.l.b16 %v2424
        %v3009 = vunpack.c.h.b16 %v2424
        %v3010 = vunpack.c.l.b16 %v2425
        %v3011 = vunpack.c.h.b16 %v2425
        %v3012 = vunpack.c.l.b16 %v2426
        %v3013 = vunpack.c.h.b16 %v2426
        %v3014 = vunpack.c.l.b16 %v2427
        %v3015 = vunpack.c.h.b16 %v2427
        %v3016 = vunpack.c.l.b16 %v2428
        %v3017 = vunpack.c.h.b16 %v2428
        %v3018 = vunpack.c.l.b16 %v2429
        %v3019 = vunpack.c.h.b16 %v2429
        %v3020 = vunpack.c.l.b16 %v2430
        %v3021 = vunpack.c.h.b16 %v2430
        %v3022 = vunpack.c.l.b16 %v2431
        %v3023 = vunpack.c.h.b16 %v2431
        %v3024 = vunpack.c.l.b16 %v2432
        %v3025 = vunpack.c.h.b16 %v2432
        %v3026 = vunpack.c.l.b16 %v2433
        %v3027 = vunpack.c.h.b16 %v2433
        %v3028 = vunpack.c.l.b16 %v2434
        %v3029 = vunpack.c.h.b16 %v2434
        %v3030 = vunpack.c.l.b16 %v2435
        %v3031 = vunpack.c.h.b16 %v2435
        %v3032 = vunpack.c.l.b16 %v2436
        %v3033 = vunpack.c.h.b16 %v2436
        %v3034 = vunpack.c.l.b16 %v2437
        %v3035 = vunpack.c.h.b16 %v2437
        %v3036 = vunpack.c.l.b16 %v2438
        %v3037 = vunpack.c.h.b16 %v2438
        %v3038 = vunpack.c.l.b16 %v2439
        %v3039 = vunpack.c.h.b16 %v2439
        %v3040 = vunpack.c.l.b16 %v2440
        %v3041 = vunpack.c.h.b16 %v2440
        %v3042 = vunpack.c.l.b16 %v2441
        %v3043 = vunpack.c.h.b16 %v2441
        %v3044 = vunpack.c.l.b16 %v2442
        %v3045 = vunpack.c.h.b16 %v2442
        %v3046 = vunpack.c.l.b16 %v2443
        %v3047 = vunpack.c.h.b16 %v2443
        %v3048 = vunpack.c.l.b16 %v2444
        %v3049 = vunpack.c.h.b16 %v2444
        %v3050 = vunpack.c.l.b16 %v2445
        %v3051 = vunpack.c.h.b16 %v2445
        %v3052 = vunpack.c.l.b16 %v2446
        %v3053 = vunpack.c.h.b16 %v2446
        %v3054 = vunpack.c.l.b16 %v2447
        %v3055 = vunpack.c.h.b16 %v2447
        %v3056 = vunpack.c.l.b16 %v2448
        %v3057 = vunpack.c.h.b16 %v2448
        %v3058 = vunpack.c.l.b16 %v2449
        %v3059 = vunpack.c.h.b16 %v2449
        %v3060 = vunpack.c.l.b16 %v2450
        %v3061 = vunpack.c.h.b16 %v2450
        %v3062 = vunpack.c.l.b16 %v2451
        %v3063 = vunpack.c.h.b16 %v2451
        %v3064 = vunpack.c.l.b16 %v2452
        %v3065 = vunpack.c.h.b16 %v2452
        %v3066 = vunpack.c.l.b16 %v2453
        %v3067 = vunpack.c.h.b16 %v2453
        %v3068 = vunpack.c.l.b16 %v2454
        %v3069 = vunpack.c.h.b16 %v2454
        %v3070 = vunpack.c.l.b16 %v2455
        %v3071 = vunpack.c.h.b16 %v2455
        %v3072 = vunpack.c.l.b16 %v2456
        %v3073 = vunpack.c.h.b16 %v2456
        %v3074 = vunpack.c.l.b16 %v2457
        %v3075 = vunpack.c.h.b16 %v2457
        %v3076 = vunpack.c.l.b16 %v2458
        %v3077 = vunpack.c.h.b16 %v2458
        %v3078 = vunpack.c.l.b16 %v2459
        %v3079 = vunpack.c.h.b16 %v2459
        %v3080 = vunpack.c.l.b16 %v2460
        %v3081 = vunpack.c.h.b16 %v2460
        %v3082 = vunpack.c.l.b16 %v2461
        %v3083 = vunpack.c.h.b16 %v2461
        %v3084 = vunpack.c.l.b16 %v2462
        %v3085 = vunpack.c.h.b16 %v2462
        %v3086 = vunpack.c.l.b16 %v2463
        %v3087 = vunpack.c.h.b16 %v2463
        %v3088 = vunpack.c.l.b16 %v2464
        %v3089 = vunpack.c.h.b16 %v2464
        %v3090 = vunpack.c.l.b16 %v2465
        %v3091 = vunpack.c.h.b16 %v2465
        %v3092 = vunpack.c.l.b16 %v2466
        %v3093 = vunpack.c.h.b16 %v2466
        %v3094 = vunpack.c.l.b16 %v2467
        %v3095 = vunpack.c.h.b16 %v2467
        %v3096 = vunpack.c.l.b16 %v2468
        %v3097 = vunpack.c.h.b16 %v2468
        %v3098 = vunpack.c.l.b16 %v2469
        %v3099 = vunpack.c.h.b16 %v2469
        %v3100 = vunpack.c.l.b16 %v2470
        %v3101 = vunpack.c.h.b16 %v2470
        %v3102 = vunpack.c.l.b16 %v2471
        %v3103 = vunpack.c.h.b16 %v2471
        %v3104 = vunpack.c.l.b16 %v2472
        %v3105 = vunpack.c.h.b16 %v2472
        %v3106 = vunpack.c.l.b16 %v2473
        %v3107 = vunpack.c.h.b16 %v2473
        %v3108 = vunpack.c.l.b16 %v2474
        %v3109 = vunpack.c.h.b16 %v2474
        %v3110 = vunpack.c.l.b16 %v2475
        %v3111 = vunpack.c.h.b16 %v2475
        %v3112 = vunpack.c.l.b16 %v2476
        %v3113 = vunpack.c.h.b16 %v2476
        %v3114 = vunpack.c.l.b16 %v2477
        %v3115 = vunpack.c.h.b16 %v2477
        %v3116 = vunpack.c.l.b16 %v2478
        %v3117 = vunpack.c.h.b16 %v2478
        %v3118 = vunpack.c.l.b16 %v2479
        %v3119 = vunpack.c.h.b16 %v2479
        %v3120 = vunpack.c.l.b16 %v2480
        %v3121 = vunpack.c.h.b16 %v2480
        %v3122 = vunpack.c.l.b16 %v2481
        %v3123 = vunpack.c.h.b16 %v2481
        %v3124 = vunpack.c.l.b16 %v2482
        %v3125 = vunpack.c.h.b16 %v2482
        %v3126 = vunpack.c.l.b16 %v2483
        %v3127 = vunpack.c.h.b16 %v2483
        %v3128 = vunpack.c.l.b16 %v2484
        %v3129 = vunpack.c.h.b16 %v2484
        %v3130 = vunpack.c.l.b16 %v2485
        %v3131 = vunpack.c.h.b16 %v2485
        %v3132 = vunpack.c.l.b16 %v2486
        %v3133 = vunpack.c.h.b16 %v2486
        %v3134 = vunpack.c.l.b16 %v2487
        %v3135 = vunpack.c.h.b16 %v2487
        %v3136 = vunpack.c.l.b16 %v2488
        %v3137 = vunpack.c.h.b16 %v2488
        %v3138 = vunpack.c.l.b16 %v2489
        %v3139 = vunpack.c.h.b16 %v2489
        %v3140 = vunpack.c.l.b16 %v2490
        %v3141 = vunpack.c.h.b16 %v2490
        %v3142 = vunpack.c.l.b16 %v2491
        %v3143 = vunpack.c.h.b16 %v2491
        %v3144 = vunpack.c.l.b16 %v2492
        %v3145 = vunpack.c.h.b16 %v2492
        %v3146 = vunpack.c.l.b16 %v2493
        %v3147 = vunpack.c.h.b16 %v2493
        %v3148 = vunpack.c.l.b16 %v2494
        %v3149 = vunpack.c.h.b16 %v2494
        %v3150 = vunpack.c.l.b16 %v2495
        %v3151 = vunpack.c.h.b16 %v2495
        %v3152 = vunpack.c.l.b16 %v2496
        %v3153 = vunpack.c.h.b16 %v2496
        %v3154 = vunpack.c.l.b16 %v2497
        %v3155 = vunpack.c.h.b16 %v2497
        %v3156 = vunpack.c.l.b16 %v2498
        %v3157 = vunpack.c.h.b16 %v2498
        %v3158 = vunpack.c.l.b16 %v2499
        %v3159 = vunpack.c.h.b16 %v2499
        %v3160 = vunpack.c.l.b16 %v2500
        %v3161 = vunpack.c.h.b16 %v2500
        %v3162 = vunpack.c.l.b16 %v2501
        %v3163 = vunpack.c.h.b16 %v2501
        %v3164 = vunpack.c.l.b16 %v2502
        %v3165 = vunpack.c.h.b16 %v2502
        %v3166 = vunpack.c.l.b16 %v2503
        %v3167 = vunpack.c.h.b16 %v2503
        %v3168 = vunpack.c.l.b16 %v2504
        %v3169 = vunpack.c.h.b16 %v2504
        %v3170 = vunpack.c.l.b16 %v2505
        %v3171 = vunpack.c.h.b16 %v2505
        %v3172 = vunpack.c.l.b16 %v2506
        %v3173 = vunpack.c.h.b16 %v2506
        %v3174 = vunpack.c.l.b16 %v2507
        %v3175 = vunpack.c.h.b16 %v2507
        %v3176 = vunpack.c.l.b16 %v2508
        %v3177 = vunpack.c.h.b16 %v2508
        %v3178 = vunpack.c.l.b16 %v2509
        %v3179 = vunpack.c.h.b16 %v2509
        %v3180 = vunpack.c.l.b16 %v2510
        %v3181 = vunpack.c.h.b16 %v2510
        %v3182 = vunpack.c.l.b16 %v2511
        %v3183 = vunpack.c.h.b16 %v2511
        %v3184 = vunpack.c.l.b16 %v2512
        %v3185 = vunpack.c.h.b16 %v2512
        %v3186 = vunpack.c.l.b16 %v2513
        %v3187 = vunpack.c.h.b16 %v2513
        %v3188 = vunpack.c.l.b16 %v2514
        %v3189 = vunpack.c.h.b16 %v2514
        %v3190 = vunpack.c.l.b16 %v2515
        %v3191 = vunpack.c.h.b16 %v2515
        %v3192 = vunpack.c.l.b16 %v2516
        %v3193 = vunpack.c.h.b16 %v2516
        %v3194 = vunpack.c.l.b16 %v2517
        %v3195 = vunpack.c.h.b16 %v2517
        %v3196 = vunpack.c.l.b16 %v2518
        %v3197 = vunpack.c.h.b16 %v2518
        %v3198 = vunpack.c.l.b16 %v2519
        %v3199 = vunpack.c.h.b16 %v2519
        %v3200 = vunpack.c.l.b16 %v2520
        %v3201 = vunpack.c.h.b16 %v2520
        %v3202 = vunpack.c.l.b16 %v2521
        %v3203 = vunpack.c.h.b16 %v2521
        %v3204 = vunpack.c.l.b16 %v2522
        %v3205 = vunpack.c.h.b16 %v2522
        %v3206 = vunpack.c.l.b16 %v2523
        %v3207 = vunpack.c.h.b16 %v2523
        %v3208 = vunpack.c.l.b16 %v2524
        %v3209 = vunpack.c.h.b16 %v2524
        %v3210 = vunpack.c.l.b16 %v2525
        %v3211 = vunpack.c.h.b16 %v2525
        %v3212 = vunpack.c.l.b16 %v2526
        %v3213 = vunpack.c.h.b16 %v2526
        %v3214 = vunpack.c.l.b16 %v2527
        %v3215 = vunpack.c.h.b16 %v2527
        %v3216 = vunpack.c.l.b16 %v2528
        %v3217 = vunpack.c.h.b16 %v2528
        %v3218 = vunpack.c.l.b16 %v2529
        %v3219 = vunpack.c.h.b16 %v2529
        %v3220 = vunpack.c.l.b16 %v2530
        %v3221 = vunpack.c.h.b16 %v2530
        %v3222 = vunpack.c.l.b16 %v2531
        %v3223 = vunpack.c.h.b16 %v2531
        %v3224 = vunpack.c.l.b16 %v2532
        %v3225 = vunpack.c.h.b16 %v2532
        %v3226 = vunpack.c.l.b16 %v2533
        %v3227 = vunpack.c.h.b16 %v2533
        %v3228 = vunpack.c.l.b16 %v2534
        %v3229 = vunpack.c.h.b16 %v2534
        %v3230 = vunpack.c.l.b16 %v2535
        %v3231 = vunpack.c.h.b16 %v2535
        %v3232 = vunpack.c.l.b16 %v2536
        %v3233 = vunpack.c.h.b16 %v2536
        %v3234 = vunpack.c.l.b16 %v2537
        %v3235 = vunpack.c.h.b16 %v2537
        %v3236 = vunpack.c.l.b16 %v2538
        %v3237 = vunpack.c.h.b16 %v2538
        %v3238 = vunpack.c.l.b16 %v2539
        %v3239 = vunpack.c.h.b16 %v2539
        %v3240 = vunpack.c.l.b16 %v2540
        %v3241 = vunpack.c.h.b16 %v2540
        %v3242 = vunpack.c.l.b16 %v2541
        %v3243 = vunpack.c.h.b16 %v2541
        %v3244 = vunpack.c.l.b16 %v2542
        %v3245 = vunpack.c.h.b16 %v2542
        %v3246 = vunpack.c.l.b16 %v2543
        %v3247 = vunpack.c.h.b16 %v2543
        %v3248 = vunpack.c.l.b16 %v2544
        %v3249 = vunpack.c.h.b16 %v2544
        %v3250 = vunpack.c.l.b16 %v2545
        %v3251 = vunpack.c.h.b16 %v2545
        %v3252 = vunpack.c.l.b16 %v2546
        %v3253 = vunpack.c.h.b16 %v2546
        %v3254 = vunpack.c.l.b16 %v2547
        %v3255 = vunpack.c.h.b16 %v2547
        %v3256 = vunpack.c.l.b16 %v2548
        %v3257 = vunpack.c.h.b16 %v2548
        %v3258 = vunpack.c.l.b16 %v2549
        %v3259 = vunpack.c.h.b16 %v2549
        %v3260 = vunpack.c.l.b16 %v2550
        %v3261 = vunpack.c.h.b16 %v2550
        %v3262 = vunpack.c.l.b16 %v2551
        %v3263 = vunpack.c.h.b16 %v2551
        %v3264 = vunpack.c.l.b16 %v2552
        %v3265 = vunpack.c.h.b16 %v2552
        %v3266 = vunpack.c.l.b16 %v2553
        %v3267 = vunpack.c.h.b16 %v2553
        %v3268 = vunpack.c.l.b16 %v2554
        %v3269 = vunpack.c.h.b16 %v2554
        %v3270 = vunpack.c.l.b16 %v2555
        %v3271 = vunpack.c.h.b16 %v2555
        %v3272 = vunpack.c.l.b16 %v2556
        %v3273 = vunpack.c.h.b16 %v2556
        %v3274 = vunpack.c.l.b16 %v2557
        %v3275 = vunpack.c.h.b16 %v2557
        %v3276 = vunpack.c.l.b16 %v2558
        %v3277 = vunpack.c.h.b16 %v2558
        %v3278 = vunpack.c.l.b16 %v2559
        %v3279 = vunpack.c.h.b16 %v2559
        %v3280 = vunpack.c.l.b16 %v2560
        %v3281 = vunpack.c.h.b16 %v2560
        %v3282 = vunpack.c.l.b16 %v2561
        %v3283 = vunpack.c.h.b16 %v2561
        %v3284 = vunpack.c.l.b16 %v2562
        %v3285 = vunpack.c.h.b16 %v2562
        %v3286 = vunpack.c.l.b16 %v2563
        %v3287 = vunpack.c.h.b16 %v2563
        %v3288 = vunpack.c.l.b16 %v2564
        %v3289 = vunpack.c.h.b16 %v2564
        %v3290 = vunpack.c.l.b16 %v2565
        %v3291 = vunpack.c.h.b16 %v2565
        %v3292 = vunpack.c.l.b16 %v2566
        %v3293 = vunpack.c.h.b16 %v2566
        %v3294 = vunpack.c.l.b16 %v2567
        %v3295 = vunpack.c.h.b16 %v2567
        %v3296 = vunpack.c.l.b16 %v2568
        %v3297 = vunpack.c.h.b16 %v2568
        %v3298 = vunpack.c.l.b16 %v2569
        %v3299 = vunpack.c.h.b16 %v2569
        %v3300 = vunpack.c.l.b16 %v2570
        %v3301 = vunpack.c.h.b16 %v2570
        %v3302 = vunpack.c.l.b16 %v2571
        %v3303 = vunpack.c.h.b16 %v2571
        %v3304 = vunpack.c.l.b16 %v2572
        %v3305 = vunpack.c.h.b16 %v2572
        %v3306 = vunpack.c.l.b16 %v2573
        %v3307 = vunpack.c.h.b16 %v2573
        %v3308 = vunpack.c.l.b16 %v2574
        %v3309 = vunpack.c.h.b16 %v2574
        %v3310 = vunpack.c.l.b16 %v2575
        %v3311 = vunpack.c.h.b16 %v2575
        %v3312 = vunpack.c.l.b16 %v2576
        %v3313 = vunpack.c.h.b16 %v2576
        %v3314 = vunpack.c.l.b16 %v2577
        %v3315 = vunpack.c.h.b16 %v2577
        %v3316 = vunpack.c.l.b16 %v2578
        %v3317 = vunpack.c.h.b16 %v2578
        %v3318 = vunpack.c.l.b16 %v2579
        %v3319 = vunpack.c.h.b16 %v2579
        %v3320 = vunpack.c.l.b16 %v2580
        %v3321 = vunpack.c.h.b16 %v2580
        %v3322 = vunpack.c.l.b16 %v2581
        %v3323 = vunpack.c.h.b16 %v2581
        %v3324 = vunpack.c.l.b16 %v2582
        %v3325 = vunpack.c.h.b16 %v2582
        %v3326 = vunpack.c.l.b16 %v2583
        %v3327 = vunpack.c.h.b16 %v2583
        %v3328 = vunpack.c.l.b16 %v2584
        %v3329 = vunpack.c.h.b16 %v2584
        %v3330 = vunpack.c.l.b16 %v2585
        %v3331 = vunpack.c.h.b16 %v2585
        %v3332 = vunpack.c.l.b16 %v2586
        %v3333 = vunpack.c.h.b16 %v2586
        %v3334 = vunpack.c.l.b16 %v2587
        %v3335 = vunpack.c.h.b16 %v2587
        %v3336 = vunpack.c.l.b16 %v2588
        %v3337 = vunpack.c.h.b16 %v2588
        %v3338 = vunpack.c.l.b16 %v2589
        %v3339 = vunpack.c.h.b16 %v2589
        %v3340 = vunpack.c.l.b16 %v2590
        %v3341 = vunpack.c.h.b16 %v2590
        %v3342 = vunpack.c.l.b16 %v2591
        %v3343 = vunpack.c.h.b16 %v2591
        %v3344 = vunpack.c.l.b16 %v2592
        %v3345 = vunpack.c.h.b16 %v2592
        %v3346 = vunpack.c.l.b16 %v2593
        %v3347 = vunpack.c.h.b16 %v2593
        %v3348 = vunpack.c.l.b16 %v2594
        %v3349 = vunpack.c.h.b16 %v2594
        %v3350 = vunpack.c.l.b16 %v2595
        %v3351 = vunpack.c.h.b16 %v2595
        %v3352 = vunpack.c.l.b16 %v2596
        %v3353 = vunpack.c.h.b16 %v2596
        %v3354 = vunpack.c.l.b16 %v2597
        %v3355 = vunpack.c.h.b16 %v2597
        %v3356 = vunpack.c.l.b16 %v2598
        %v3357 = vunpack.c.h.b16 %v2598
        %v3358 = vunpack.c.l.b16 %v2599
        %v3359 = vunpack.c.h.b16 %v2599
        %v3360 = vunpack.c.l.b16 %v2600
        %v3361 = vunpack.c.h.b16 %v2600
        %v3362 = vunpack.c.l.b16 %v2601
        %v3363 = vunpack.c.h.b16 %v2601
        %v3364 = vunpack.c.l.b16 %v2602
        %v3365 = vunpack.c.h.b16 %v2602
        %v3366 = vunpack.c.l.b16 %v2603
        %v3367 = vunpack.c.h.b16 %v2603
        %v3368 = vunpack.c.l.b16 %v2604
        %v3369 = vunpack.c.h.b16 %v2604
        %v3370 = vunpack.c.l.b16 %v2605
        %v3371 = vunpack.c.h.b16 %v2605
        %v3372 = vunpack.c.l.b16 %v2606
        %v3373 = vunpack.c.h.b16 %v2606
        %v3374 = vunpack.c.l.b16 %v2607
        %v3375 = vunpack.c.h.b16 %v2607
        %v3376 = vunpack.c.l.b16 %v2608
        %v3377 = vunpack.c.h.b16 %v2608
        %v3378 = vunpack.c.l.b16 %v2609
        %v3379 = vunpack.c.h.b16 %v2609
        %v3380 = vunpack.c.l.b16 %v2610
        %v3381 = vunpack.c.h.b16 %v2610
        %v3382 = vunpack.c.l.b16 %v2611
        %v3383 = vunpack.c.h.b16 %v2611
        %v3384 = vunpack.c.l.b16 %v2612
        %v3385 = vunpack.c.h.b16 %v2612
        %v3386 = vunpack.c.l.b16 %v2613
        %v3387 = vunpack.c.h.b16 %v2613
        %v3388 = vunpack.c.l.b16 %v2614
        %v3389 = vunpack.c.h.b16 %v2614
        %v3390 = vunpack.c.l.b16 %v2615
        %v3391 = vunpack.c.h.b16 %v2615
        %v3392 = vunpack.c.l.b16 %v2616
        %v3393 = vunpack.c.h.b16 %v2616
        %v3394 = vunpack.c.l.b16 %v2617
        %v3395 = vunpack.c.h.b16 %v2617
        %v3396 = vunpack.c.l.b16 %v2618
        %v3397 = vunpack.c.h.b16 %v2618
        %v3398 = vunpack.c.l.b16 %v2619
        %v3399 = vunpack.c.h.b16 %v2619
        %v3400 = vunpack.c.l.b16 %v2620
        %v3401 = vunpack.c.h.b16 %v2620
        %v3402 = vunpack.c.l.b16 %v2621
        %v3403 = vunpack.c.h.b16 %v2621
        %v3404 = vunpack.c.l.b16 %v2622
        %v3405 = vunpack.c.h.b16 %v2622
        %v3406 = vunpack.c.l.b16 %v2623
        %v3407 = vunpack.c.h.b16 %v2623
        %v3408 = vunpack.c.l.b16 %v2624
        %v3409 = vunpack.c.h.b16 %v2624
        %v3410 = vunpack.c.l.b16 %v2625
        %v3411 = vunpack.c.h.b16 %v2625
        %v3412 = vunpack.c.l.b16 %v2626
        %v3413 = vunpack.c.h.b16 %v2626
        %v3414 = vunpack.c.l.b16 %v2627
        %v3415 = vunpack.c.h.b16 %v2627
        %v3416 = vunpack.c.l.b16 %v2628
        %v3417 = vunpack.c.h.b16 %v2628
        %v3418 = vunpack.c.l.b16 %v2629
        %v3419 = vunpack.c.h.b16 %v2629
        %v3420 = vpack.c.b16 %v2912, %v2908
        %v3421 = vpack.c.b16 %v2913, %v2909
        %v3422 = vpack.c.b16 %v2914, %v2910
        %v3423 = vpack.c.b16 %v2915, %v2911
        %v3424 = vpack.c.b16 %v2920, %v2916
        %v3425 = vpack.c.b16 %v2921, %v2917
        %v3426 = vpack.c.b16 %v2922, %v2918
        %v3427 = vpack.c.b16 %v2923, %v2919
        %v3428 = vpack.c.b16 %v2928, %v2924
        %v3429 = vpack.c.b16 %v2929, %v2925
        %v3430 = vpack.c.b16 %v2930, %v2926
        %v3431 = vpack.c.b16 %v2931, %v2927
        %v3432 = vpack.c.b16 %v2936, %v2932
        %v3433 = vpack.c.b16 %v2937, %v2933
        %v3434 = vpack.c.b16 %v2938, %v2934
        %v3435 = vpack.c.b16 %v2939, %v2935
        %v3436 = vpack.c.b16 %v2944, %v2940
        %v3437 = vpack.c.b16 %v2945, %v2941
        %v3438 = vpack.c.b16 %v2946, %v2942
        %v3439 = vpack.c.b16 %v2947, %v2943
        %v3440 = vpack.c.b16 %v2952, %v2948
        %v3441 = vpack.c.b16 %v2953, %v2949
        %v3442 = vpack.c.b16 %v2954, %v2950
        %v3443 = vpack.c.b16 %v2955, %v2951
        %v3444 = vpack.c.b16 %v2960, %v2956
        %v3445 = vpack.c.b16 %v2961, %v2957
        %v3446 = vpack.c.b16 %v2962, %v2958
        %v3447 = vpack.c.b16 %v2963, %v2959
        %v3448 = vpack.c.b16 %v2968, %v2964
        %v3449 = vpack.c.b16 %v2969, %v2965
        %v3450 = vpack.c.b16 %v2970, %v2966
        %v3451 = vpack.c.b16 %v2971, %v2967
        %v3452 = vpack.c.b16 %v2976, %v2972
        %v3453 = vpack.c.b16 %v2977, %v2973
        %v3454 = vpack.c.b16 %v2978, %v2974
        %v3455 = vpack.c.b16 %v2979, %v2975
        %v3456 = vpack.c.b16 %v2984, %v2980
        %v3457 = vpack.c.b16 %v2985, %v2981
        %v3458 = vpack.c.b16 %v2986, %v2982
        %v3459 = vpack.c.b16 %v2987, %v2983
        %v3460 = vpack.c.b16 %v2992, %v2988
        %v3461 = vpack.c.b16 %v2993, %v2989
        %v3462 = vpack.c.b16 %v2994, %v2990
        %v3463 = vpack.c.b16 %v2995, %v2991
        %v3464 = vpack.c.b16 %v3000, %v2996
        %v3465 = vpack.c.b16 %v3001, %v2997
        %v3466 = vpack.c.b16 %v3002, %v2998
        %v3467 = vpack.c.b16 %v3003, %v2999
        %v3468 = vpack.c.b16 %v3008, %v3004
        %v3469 = vpack.c.b16 %v3009, %v3005
        %v3470 = vpack.c.b16 %v3010, %v3006
        %v3471 = vpack.c.b16 %v3011, %v3007
        %v3472 = vpack.c.b16 %v3016, %v3012
        %v3473 = vpack.c.b16 %v3017, %v3013
        %v3474 = vpack.c.b16 %v3018, %v3014
        %v3475 = vpack.c.b16 %v3019, %v3015
        %v3476 = vpack.c.b16 %v3024, %v3020
        %v3477 = vpack.c.b16 %v3025, %v3021
        %v3478 = vpack.c.b16 %v3026, %v3022
        %v3479 = vpack.c.b16 %v3027, %v3023
        %v3480 = vpack.c.b16 %v3032, %v3028
        %v3481 = vpack.c.b16 %v3033, %v3029
        %v3482 = vpack.c.b16 %v3034, %v3030
        %v3483 = vpack.c.b16 %v3035, %v3031
        %v3484 = vpack.c.b16 %v3040, %v3036
        %v3485 = vpack.c.b16 %v3041, %v3037
        %v3486 = vpack.c.b16 %v3042, %v3038
        %v3487 = vpack.c.b16 %v3043, %v3039
        %v3488 = vpack.c.b16 %v3048, %v3044
        %v3489 = vpack.c.b16 %v3049, %v3045
        %v3490 = vpack.c.b16 %v3050, %v3046
        %v3491 = vpack.c.b16 %v3051, %v3047
        %v3492 = vpack.c.b16 %v3056, %v3052
        %v3493 = vpack.c.b16 %v3057, %v3053
        %v3494 = vpack.c.b16 %v3058, %v3054
        %v3495 = vpack.c.b16 %v3059, %v3055
        %v3496 = vpack.c.b16 %v3064, %v3060
        %v3497 = vpack.c.b16 %v3065, %v3061
        %v3498 = vpack.c.b16 %v3066, %v3062
        %v3499 = vpack.c.b16 %v3067, %v3063
        %v3500 = vpack.c.b16 %v3072, %v3068
        %v3501 = vpack.c.b16 %v3073, %v3069
        %v3502 = vpack.c.b16 %v3074, %v3070
        %v3503 = vpack.c.b16 %v3075, %v3071
        %v3504 = vpack.c.b16 %v3080, %v3076
        %v3505 = vpack.c.b16 %v3081, %v3077
        %v3506 = vpack.c.b16 %v3082, %v3078
        %v3507 = vpack.c.b16 %v3083, %v3079
        %v3508 = vpack.c.b16 %v3088, %v3084
        %v3509 = vpack.c.b16 %v3089, %v3085
        %v3510 = vpack.c.b16 %v3090, %v3086
        %v3511 = vpack.c.b16 %v3091, %v3087
        %v3512 = vpack.c.b16 %v3096, %v3092
        %v3513 = vpack.c.b16 %v3097, %v3093
        %v3514 = vpack.c.b16 %v3098, %v3094
        %v3515 = vpack.c.b16 %v3099, %v3095
        %v3516 = vpack.c.b16 %v3104, %v3100
        %v3517 = vpack.c.b16 %v3105, %v3101
        %v3518 = vpack.c.b16 %v3106, %v3102
        %v3519 = vpack.c.b16 %v3107, %v3103
        %v3520 = vpack.c.b16 %v3112, %v3108
        %v3521 = vpack.c.b16 %v3113, %v3109
        %v3522 = vpack.c.b16 %v3114, %v3110
        %v3523 = vpack.c.b16 %v3115, %v3111
        %v3524 = vpack.c.b16 %v3120, %v3116
        %v3525 = vpack.c.b16 %v3121, %v3117
        %v3526 = vpack.c.b16 %v3122, %v3118
        %v3527 = vpack.c.b16 %v3123, %v3119
        %v3528 = vpack.c.b16 %v3128, %v3124
        %v3529 = vpack.c.b16 %v3129, %v3125
        %v3530 = vpack.c.b16 %v3130, %v3126
        %v3531 = vpack.c.b16 %v3131, %v3127
        %v3532 = vpack.c.b16 %v3136, %v3132
        %v3533 = vpack.c.b16 %v3137, %v3133
        %v3534 = vpack.c.b16 %v3138, %v3134
        %v3535 = vpack.c.b16 %v3139, %v3135
        %v3536 = vpack.c.b16 %v3144, %v3140
        %v3537 = vpack.c.b16 %v3145, %v3141
        %v3538 = vpack.c.b16 %v3146, %v3142
        %v3539 = vpack.c.b16 %v3147, %v3143
        %v3540 = vpack.c.b16 %v3152, %v3148
        %v3541 = vpack.c.b16 %v3153, %v3149
        %v3542 = vpack.c.b16 %v3154, %v3150
        %v3543 = vpack.c.b16 %v3155, %v3151
        %v3544 = vpack.c.b16 %v3160, %v3156
        %v3545 = vpack.c.b16 %v3161, %v3157
        %v3546 = vpack.c.b16 %v3162, %v3158
        %v3547 = vpack.c.b16 %v3163, %v3159
        %v3548 = vpack.c.b16 %v3168, %v3164
        %v3549 = vpack.c.b16 %v3169, %v3165
        %v3550 = vpack.c.b16 %v3170, %v3166
        %v3551 = vpack.c.b16 %v3171, %v3167
        %v3552 = vpack.c.b16 %v3176, %v3172
        %v3553 = vpack.c.b16 %v3177, %v3173
        %v3554 = vpack.c.b16 %v3178, %v3174
        %v3555 = vpack.c.b16 %v3179, %v3175
        %v3556 = vpack.c.b16 %v3184, %v3180
        %v3557 = vpack.c.b16 %v3185, %v3181
        %v3558 = vpack.c.b16 %v3186, %v3182
        %v3559 = vpack.c.b16 %v3187, %v3183
        %v3560 = vpack.c.b16 %v3192, %v3188
        %v3561 = vpack.c.b16 %v3193, %v3189
        %v3562 = vpack.c.b16 %v3194, %v3190
        %v3563 = vpack.c.b16 %v3195, %v3191
        %v3564 = vpack.c.b16 %v3200, %v3196
        %v3565 = vpack.c.b16 %v3201, %v3197
        %v3566 = vpack.c.b16 %v3202, %v3198
        %v3567 = vpack.c.b16 %v3203, %v3199
        %v3568 = vpack.c.b16 %v3208, %v3204
        %v3569 = vpack.c.b16 %v3209, %v3205
        %v3570 = vpack.c.b16 %v3210, %v3206
        %v3571 = vpack.c.b16 %v3211, %v3207
        %v3572 = vpack.c.b16 %v3216, %v3212
        %v3573 = vpack.c.b16 %v3217, %v3213
        %v3574 = vpack.c.b16 %v3218, %v3214
        %v3575 = vpack.c.b16 %v3219, %v3215
        %v3576 = vpack.c.b16 %v3224, %v3220
        %v3577 = vpack.c.b16 %v3225, %v3221
        %v3578 = vpack.c.b16 %v3226, %v3222
        %v3579 = vpack.c.b16 %v3227, %v3223
        %v3580 = vpack.c.b16 %v3232, %v3228
        %v3581 = vpack.c.b16 %v3233, %v3229
        %v3582 = vpack.c.b16 %v3234, %v3230
        %v3583 = vpack.c.b16 %v3235, %v3231
        %v3584 = vpack.c.b16 %v3240, %v3236
        %v3585 = vpack.c.b16 %v3241, %v3237
        %v3586 = vpack.c.b16 %v3242, %v3238
        %v3587 = vpack.c.b16 %v3243, %v3239
        %v3588 = vpack.c.b16 %v3248, %v3244
        %v3589 = vpack.c.b16 %v3249, %v3245
        %v3590 = vpack.c.b16 %v3250, %v3246
        %v3591 = vpack.c.b16 %v3251, %v3247
        %v3592 = vpack.c.b16 %v3256, %v3252
        %v3593 = vpack.c.b16 %v3257, %v3253
        %v3594 = vpack.c.b16 %v3258, %v3254
        %v3595 = vpack.c.b16 %v3259, %v3255
        %v3596 = vpack.c.b16 %v3264, %v3260
        %v3597 = vpack.c.b16 %v3265, %v3261
        %v3598 = vpack.c.b16 %v3266, %v3262
        %v3599 = vpack.c.b16 %v3267, %v3263
        %v3600 = vpack.c.b16 %v3272, %v3268
        %v3601 = vpack.c.b16 %v3273, %v3269
        %v3602 = vpack.c.b16 %v3274, %v3270
        %v3603 = vpack.c.b16 %v3275, %v3271
        %v3604 = vpack.c.b16 %v3280, %v3276
        %v3605 = vpack.c.b16 %v3281, %v3277
        %v3606 = vpack.c.b16 %v3282, %v3278
        %v3607 = vpack.c.b16 %v3283, %v3279
        %v3608 = vpack.c.b16 %v3288, %v3284
        %v3609 = vpack.c.b16 %v3289, %v3285
        %v3610 = vpack.c.b16 %v3290, %v3286
        %v3611 = vpack.c.b16 %v3291, %v3287
        %v3612 = vpack.c.b16 %v3296, %v3292
        %v3613 = vpack.c.b16 %v3297, %v3293
        %v3614 = vpack.c.b16 %v3298, %v3294
        %v3615 = vpack.c.b16 %v3299, %v3295
        %v3616 = vpack.c.b16 %v3304, %v3300
        %v3617 = vpack.c.b16 %v3305, %v3301
        %v3618 = vpack.c.b16 %v3306, %v3302
        %v3619 = vpack.c.b16 %v3307, %v3303
        %v3620 = vpack.c.b16 %v3312, %v3308
        %v3621 = vpack.c.b16 %v3313, %v3309
        %v3622 = vpack.c.b16 %v3314, %v3310
        %v3623 = vpack.c.b16 %v3315, %v3311
        %v3624 = vpack.c.b16 %v3320, %v3316
        %v3625 = vpack.c.b16 %v3321, %v3317
        %v3626 = vpack.c.b16 %v3322, %v3318
        %v3627 = vpack.c.b16 %v3323, %v3319
        %v3628 = vpack.c.b16 %v3328, %v3324
        %v3629 = vpack.c.b16 %v3329, %v3325
        %v3630 = vpack.c.b16 %v3330, %v3326
        %v3631 = vpack.c.b16 %v3331, %v3327
        %v3632 = vpack.c.b16 %v3336, %v3332
        %v3633 = vpack.c.b16 %v3337, %v3333
        %v3634 = vpack.c.b16 %v3338, %v3334
        %v3635 = vpack.c.b16 %v3339, %v3335
        %v3636 = vpack.c.b16 %v3344, %v3340
        %v3637 = vpack.c.b16 %v3345, %v3341
        %v3638 = vpack.c.b16 %v3346, %v3342
        %v3639 = vpack.c.b16 %v3347, %v3343
        %v3640 = vpack.c.b16 %v3352, %v3348
        %v3641 = vpack.c.b16 %v3353, %v3349
        %v3642 = vpack.c.b16 %v3354, %v3350
        %v3643 = vpack.c.b16 %v3355, %v3351
        %v3644 = vpack.c.b16 %v3360, %v3356
        %v3645 = vpack.c.b16 %v3361, %v3357
        %v3646 = vpack.c.b16 %v3362, %v3358
        %v3647 = vpack.c.b16 %v3363, %v3359
        %v3648 = vpack.c.b16 %v3368, %v3364
        %v3649 = vpack.c.b16 %v3369, %v3365
        %v3650 = vpack.c.b16 %v3370, %v3366
        %v3651 = vpack.c.b16 %v3371, %v3367
        %v3652 = vpack.c.b16 %v3376, %v3372
        %v3653 = vpack.c.b16 %v3377, %v3373
        %v3654 = vpack.c.b16 %v3378, %v3374
        %v3655 = vpack.c.b16 %v3379, %v3375
        %v3656 = vpack.c.b16 %v3384, %v3380
        %v3657 = vpack.c.b16 %v3385, %v3381
        %v3658 = vpack.c.b16 %v3386, %v3382
        %v3659 = vpack.c.b16 %v3387, %v3383
        %v3660 = vpack.c.b16 %v3392, %v3388
        %v3661 = vpack.c.b16 %v3393, %v3389
        %v3662 = vpack.c.b16 %v3394, %v3390
        %v3663 = vpack.c.b16 %v3395, %v3391
        %v3664 = vpack.c.b16 %v3400, %v3396
        %v3665 = vpack.c.b16 %v3401, %v3397
        %v3666 = vpack.c.b16 %v3402, %v3398
        %v3667 = vpack.c.b16 %v3403, %v3399
        %v3668 = vpack.c.b16 %v3408, %v3404
        %v3669 = vpack.c.b16 %v3409, %v3405
        %v3670 = vpack.c.b16 %v3410, %v3406
        %v3671 = vpack.c.b16 %v3411, %v3407
        %v3672 = vpack.c.b16 %v3416, %v3412
        %v3673 = vpack.c.b16 %v3417, %v3413
        %v3674 = vpack.c.b16 %v3418, %v3414
        %v3675 = vpack.c.b16 %v3419, %v3415
        %3932 = vmatprep.subr.bf16.mxu0 %v3449
        %3933 = vmatpush1.bf16.msra.mxu0 %v3448
        %3934 = vmatprep.subr.bf16.mxu0 %v3445
        %3935 = vmatpush1.bf16.msra.mxu0 %v3444
        %3936 = vmatprep.subr.bf16.mxu0 %v3441
        %3937 = vmatpush1.bf16.msra.mxu0 %v3440
        %3938 = vmatprep.subr.bf16.mxu0 %v3437
        %3939 = vmatpush1.bf16.msra.mxu0 %v3436
        %3940 = vmatprep.subr.bf16.mxu0 %v3433
        %3941 = vmatpush1.bf16.msra.mxu0 %v3432
        %3942 = vmatprep.subr.bf16.mxu0 %v3429
        %3943 = vmatpush1.bf16.msra.mxu0 %v3428
        %3944 = vmatprep.subr.bf16.mxu0 %v3425
        %3945 = vmatpush1.bf16.msra.mxu0 %v3424
        %3946 = vmatprep.subr.bf16.mxu0 %v3421
        %3947 = vmatpush1.bf16.msra.mxu0 %v3420
        %3948 = vmatprep.subr.bf16.mxu0 %v3481
        %3949 = vmatpush2.bf16.msra.mxu0 %v3480
        %3950 = vmatprep.subr.bf16.mxu0 %v3477
        %3951 = vmatpush2.bf16.msra.mxu0 %v3476
        %3952 = vmatprep.subr.bf16.mxu0 %v3473
        %3953 = vmatpush2.bf16.msra.mxu0 %v3472
        %3954 = vmatprep.subr.bf16.mxu0 %v3469
        %3955 = vmatpush2.bf16.msra.mxu0 %v3468
        %3956 = vmatprep.subr.bf16.mxu0 %v3465
        %3957 = vmatpush2.bf16.msra.mxu0 %v3464
        %3958 = vmatprep.subr.bf16.mxu0 %v3461
        %3959 = vmatpush2.bf16.msra.mxu0 %v3460
        %3960 = vmatprep.subr.bf16.mxu0 %v3457
        %3961 = vmatpush2.bf16.msra.mxu0 %v3456
        %3962 = vmatprep.subr.bf16.mxu0 %v3453
        %3963 = vmatpush2.bf16.msra.mxu0 %v3452
        %3964 = vmatprep.mubr.bf16.mxu0 %v2367
        %3965 = vmatmul.mubr.bf16.gmra.mxu0 %v2366
        %v3966 = vpop.f32.mrf.mxu0
        %v3967 = vadd.f32 %v2635, %v3966
        %v3968 = vpop.f32.mrf.mxu0
        %v3969 = vadd.f32 %v2639, %v3968
        %v3970 = vpop.f32.mrf.mxu0
        %v3971 = vpop.f32.mrf.mxu0
        %3972 = vdwg.mxu0
        %3973 = vmatprep.subr.bf16.mxu0 %v3513
        %3974 = vmatpush1.bf16.msra.mxu0 %v3512
        %3975 = vmatprep.subr.bf16.mxu0 %v3509
        %3976 = vmatpush1.bf16.msra.mxu0 %v3508
        %3977 = vmatprep.subr.bf16.mxu0 %v3505
        %3978 = vmatpush1.bf16.msra.mxu0 %v3504
        %3979 = vmatprep.subr.bf16.mxu0 %v3501
        %3980 = vmatpush1.bf16.msra.mxu0 %v3500
        %3981 = vmatprep.subr.bf16.mxu0 %v3497
        %3982 = vmatpush1.bf16.msra.mxu0 %v3496
        %3983 = vmatprep.subr.bf16.mxu0 %v3493
        %3984 = vmatpush1.bf16.msra.mxu0 %v3492
        %3985 = vmatprep.subr.bf16.mxu0 %v3489
        %3986 = vmatpush1.bf16.msra.mxu0 %v3488
        %3987 = vmatprep.subr.bf16.mxu0 %v3485
        %3988 = vmatpush1.bf16.msra.mxu0 %v3484
        %3989 = vmatprep.subr.bf16.mxu0 %v3545
        %3990 = vmatpush2.bf16.msra.mxu0 %v3544
        %3991 = vmatprep.subr.bf16.mxu0 %v3541
        %3992 = vmatpush2.bf16.msra.mxu0 %v3540
        %3993 = vmatprep.subr.bf16.mxu0 %v3537
        %3994 = vmatpush2.bf16.msra.mxu0 %v3536
        %3995 = vmatprep.subr.bf16.mxu0 %v3533
        %3996 = vmatpush2.bf16.msra.mxu0 %v3532
        %3997 = vmatprep.subr.bf16.mxu0 %v3529
        %3998 = vmatpush2.bf16.msra.mxu0 %v3528
        %3999 = vmatprep.subr.bf16.mxu0 %v3525
        %4000 = vmatpush2.bf16.msra.mxu0 %v3524
        %4001 = vmatprep.subr.bf16.mxu0 %v3521
        %4002 = vmatpush2.bf16.msra.mxu0 %v3520
        %4003 = vmatprep.subr.bf16.mxu0 %v3517
        %4004 = vmatpush2.bf16.msra.mxu0 %v3516
        %4005 = vmatprep.mubr.bf16.mxu0 %v2369
        %4006 = vmatmul.mubr.bf16.gmra.mxu0 %v2368
        %v4007 = vpop.f32.mrf.mxu0
        %v4008 = vadd.f32 %v3967, %v4007
        %v4009 = vpop.f32.mrf.mxu0
        %v4010 = vadd.f32 %v3969, %v4009
        %v4011 = vpop.f32.mrf.mxu0
        %v4012 = vpop.f32.mrf.mxu0
        %4013 = vdwg.mxu0
        %4014 = vmatprep.subr.bf16.mxu0 %v3577
        %4015 = vmatpush1.bf16.msra.mxu0 %v3576
        %4016 = vmatprep.subr.bf16.mxu0 %v3573
        %4017 = vmatpush1.bf16.msra.mxu0 %v3572
        %4018 = vmatprep.subr.bf16.mxu0 %v3569
        %4019 = vmatpush1.bf16.msra.mxu0 %v3568
        %4020 = vmatprep.subr.bf16.mxu0 %v3565
        %4021 = vmatpush1.bf16.msra.mxu0 %v3564
        %4022 = vmatprep.subr.bf16.mxu0 %v3561
        %4023 = vmatpush1.bf16.msra.mxu0 %v3560
        %4024 = vmatprep.subr.bf16.mxu0 %v3557
        %4025 = vmatpush1.bf16.msra.mxu0 %v3556
        %4026 = vmatprep.subr.bf16.mxu0 %v3553
        %4027 = vmatpush1.bf16.msra.mxu0 %v3552
        %4028 = vmatprep.subr.bf16.mxu0 %v3549
        %4029 = vmatpush1.bf16.msra.mxu0 %v3548
        %4030 = vmatprep.subr.bf16.mxu0 %v3609
        %4031 = vmatpush2.bf16.msra.mxu0 %v3608
        %4032 = vmatprep.subr.bf16.mxu0 %v3605
        %4033 = vmatpush2.bf16.msra.mxu0 %v3604
        %4034 = vmatprep.subr.bf16.mxu0 %v3601
        %4035 = vmatpush2.bf16.msra.mxu0 %v3600
        %4036 = vmatprep.subr.bf16.mxu0 %v3597
        %4037 = vmatpush2.bf16.msra.mxu0 %v3596
        %4038 = vmatprep.subr.bf16.mxu0 %v3593
        %4039 = vmatpush2.bf16.msra.mxu0 %v3592
        %4040 = vmatprep.subr.bf16.mxu0 %v3589
        %4041 = vmatpush2.bf16.msra.mxu0 %v3588
        %4042 = vmatprep.subr.bf16.mxu0 %v3585
        %4043 = vmatpush2.bf16.msra.mxu0 %v3584
        %4044 = vmatprep.subr.bf16.mxu0 %v3581
        %4045 = vmatpush2.bf16.msra.mxu0 %v3580
        %4046 = vmatprep.mubr.bf16.mxu0 %v2371
        %4047 = vmatmul.mubr.bf16.gmra.mxu0 %v2370
        %v4048 = vpop.f32.mrf.mxu0
        %v4049 = vadd.f32 %v4008, %v4048
        %v4050 = vpop.f32.mrf.mxu0
        %v4051 = vadd.f32 %v4010, %v4050
        %v4052 = vpop.f32.mrf.mxu0
        %v4053 = vpop.f32.mrf.mxu0
        %4054 = vdwg.mxu0
        %4055 = vmatprep.subr.bf16.mxu0 %v3641
        %4056 = vmatpush1.bf16.msra.mxu0 %v3640
        %4057 = vmatprep.subr.bf16.mxu0 %v3637
        %4058 = vmatpush1.bf16.msra.mxu0 %v3636
        %4059 = vmatprep.subr.bf16.mxu0 %v3633
        %4060 = vmatpush1.bf16.msra.mxu0 %v3632
        %4061 = vmatprep.subr.bf16.mxu0 %v3629
        %4062 = vmatpush1.bf16.msra.mxu0 %v3628
        %4063 = vmatprep.subr.bf16.mxu0 %v3625
        %4064 = vmatpush1.bf16.msra.mxu0 %v3624
        %4065 = vmatprep.subr.bf16.mxu0 %v3621
        %4066 = vmatpush1.bf16.msra.mxu0 %v3620
        %4067 = vmatprep.subr.bf16.mxu0 %v3617
        %4068 = vmatpush1.bf16.msra.mxu0 %v3616
        %4069 = vmatprep.subr.bf16.mxu0 %v3613
        %4070 = vmatpush1.bf16.msra.mxu0 %v3612
        %4071 = vmatprep.subr.bf16.mxu0 %v3673
        %4072 = vmatpush2.bf16.msra.mxu0 %v3672
        %4073 = vmatprep.subr.bf16.mxu0 %v3669
        %4074 = vmatpush2.bf16.msra.mxu0 %v3668
        %4075 = vmatprep.subr.bf16.mxu0 %v3665
        %4076 = vmatpush2.bf16.msra.mxu0 %v3664
        %4077 = vmatprep.subr.bf16.mxu0 %v3661
        %4078 = vmatpush2.bf16.msra.mxu0 %v3660
        %4079 = vmatprep.subr.bf16.mxu0 %v3657
        %4080 = vmatpush2.bf16.msra.mxu0 %v3656
        %4081 = vmatprep.subr.bf16.mxu0 %v3653
        %4082 = vmatpush2.bf16.msra.mxu0 %v3652
        %4083 = vmatprep.subr.bf16.mxu0 %v3649
        %4084 = vmatpush2.bf16.msra.mxu0 %v3648
        %4085 = vmatprep.subr.bf16.mxu0 %v3645
        %4086 = vmatpush2.bf16.msra.mxu0 %v3644
        %4087 = vmatprep.mubr.bf16.mxu0 %v2373
        %4088 = vmatmul.mubr.bf16.gmra.mxu0 %v2372
        %v4089 = vpop.f32.mrf.mxu0
        %v4090 = vadd.f32 %v4049, %v4089
        %v4091 = vpop.f32.mrf.mxu0
        %v4092 = vadd.f32 %v4051, %v4091
        %v4093 = vpop.f32.mrf.mxu0
        %v4094 = vpop.f32.mrf.mxu0
        %4095 = vdwg.mxu0
        %4096 = vmatprep.subr.bf16.mxu0 %v3451
        %4097 = vmatpush1.bf16.msra.mxu0 %v3450
        %4098 = vmatprep.subr.bf16.mxu0 %v3447
        %4099 = vmatpush1.bf16.msra.mxu0 %v3446
        %4100 = vmatprep.subr.bf16.mxu0 %v3443
        %4101 = vmatpush1.bf16.msra.mxu0 %v3442
        %4102 = vmatprep.subr.bf16.mxu0 %v3439
        %4103 = vmatpush1.bf16.msra.mxu0 %v3438
        %4104 = vmatprep.subr.bf16.mxu0 %v3435
        %4105 = vmatpush1.bf16.msra.mxu0 %v3434
        %4106 = vmatprep.subr.bf16.mxu0 %v3431
        %4107 = vmatpush1.bf16.msra.mxu0 %v3430
        %4108 = vmatprep.subr.bf16.mxu0 %v3427
        %4109 = vmatpush1.bf16.msra.mxu0 %v3426
        %4110 = vmatprep.subr.bf16.mxu0 %v3423
        %4111 = vmatpush1.bf16.msra.mxu0 %v3422
        %4112 = vmatprep.subr.bf16.mxu0 %v3483
        %4113 = vmatpush2.bf16.msra.mxu0 %v3482
        %4114 = vmatprep.subr.bf16.mxu0 %v3479
        %4115 = vmatpush2.bf16.msra.mxu0 %v3478
        %4116 = vmatprep.subr.bf16.mxu0 %v3475
        %4117 = vmatpush2.bf16.msra.mxu0 %v3474
        %4118 = vmatprep.subr.bf16.mxu0 %v3471
        %4119 = vmatpush2.bf16.msra.mxu0 %v3470
        %4120 = vmatprep.subr.bf16.mxu0 %v3467
        %4121 = vmatpush2.bf16.msra.mxu0 %v3466
        %4122 = vmatprep.subr.bf16.mxu0 %v3463
        %4123 = vmatpush2.bf16.msra.mxu0 %v3462
        %4124 = vmatprep.subr.bf16.mxu0 %v3459
        %4125 = vmatpush2.bf16.msra.mxu0 %v3458
        %4126 = vmatprep.subr.bf16.mxu0 %v3455
        %4127 = vmatpush2.bf16.msra.mxu0 %v3454
        %4128 = vmatprep.mubr.bf16.mxu0 %v2367
        %4129 = vmatmul.mubr.bf16.gmra.mxu0 %v2366
        %v4130 = vpop.f32.mrf.mxu0
        %v4131 = vadd.f32 %v2643, %v4130
        %v4132 = vpop.f32.mrf.mxu0
        %v4133 = vadd.f32 %v2647, %v4132
        %v4134 = vpop.f32.mrf.mxu0
        %v4135 = vpop.f32.mrf.mxu0
        %4136 = vdwg.mxu0
        %4137 = vmatprep.subr.bf16.mxu0 %v3515
        %4138 = vmatpush1.bf16.msra.mxu0 %v3514
        %4139 = vmatprep.subr.bf16.mxu0 %v3511
        %4140 = vmatpush1.bf16.msra.mxu0 %v3510
        %4141 = vmatprep.subr.bf16.mxu0 %v3507
        %4142 = vmatpush1.bf16.msra.mxu0 %v3506
        %4143 = vmatprep.subr.bf16.mxu0 %v3503
        %4144 = vmatpush1.bf16.msra.mxu0 %v3502
        %4145 = vmatprep.subr.bf16.mxu0 %v3499
        %4146 = vmatpush1.bf16.msra.mxu0 %v3498
        %4147 = vmatprep.subr.bf16.mxu0 %v3495
        %4148 = vmatpush1.bf16.msra.mxu0 %v3494
        %4149 = vmatprep.subr.bf16.mxu0 %v3491
        %4150 = vmatpush1.bf16.msra.mxu0 %v3490
        %4151 = vmatprep.subr.bf16.mxu0 %v3487
        %4152 = vmatpush1.bf16.msra.mxu0 %v3486
        %4153 = vmatprep.subr.bf16.mxu0 %v3547
        %4154 = vmatpush2.bf16.msra.mxu0 %v3546
        %4155 = vmatprep.subr.bf16.mxu0 %v3543
        %4156 = vmatpush2.bf16.msra.mxu0 %v3542
        %4157 = vmatprep.subr.bf16.mxu0 %v3539
        %4158 = vmatpush2.bf16.msra.mxu0 %v3538
        %4159 = vmatprep.subr.bf16.mxu0 %v3535
        %4160 = vmatpush2.bf16.msra.mxu0 %v3534
        %4161 = vmatprep.subr.bf16.mxu0 %v3531
        %4162 = vmatpush2.bf16.msra.mxu0 %v3530
        %4163 = vmatprep.subr.bf16.mxu0 %v3527
        %4164 = vmatpush2.bf16.msra.mxu0 %v3526
        %4165 = vmatprep.subr.bf16.mxu0 %v3523
        %4166 = vmatpush2.bf16.msra.mxu0 %v3522
        %4167 = vmatprep.subr.bf16.mxu0 %v3519
        %4168 = vmatpush2.bf16.msra.mxu0 %v3518
        %4169 = vmatprep.mubr.bf16.mxu0 %v2369
        %4170 = vmatmul.mubr.bf16.gmra.mxu0 %v2368
        %v4171 = vpop.f32.mrf.mxu0
        %v4172 = vadd.f32 %v4131, %v4171
        %v4173 = vpop.f32.mrf.mxu0
        %v4174 = vadd.f32 %v4133, %v4173
        %v4175 = vpop.f32.mrf.mxu0
        %v4176 = vpop.f32.mrf.mxu0
        %4177 = vdwg.mxu0
        %4178 = vmatprep.subr.bf16.mxu0 %v3579
        %4179 = vmatpush1.bf16.msra.mxu0 %v3578
        %4180 = vmatprep.subr.bf16.mxu0 %v3575
        %4181 = vmatpush1.bf16.msra.mxu0 %v3574
        %4182 = vmatprep.subr.bf16.mxu0 %v3571
        %4183 = vmatpush1.bf16.msra.mxu0 %v3570
        %4184 = vmatprep.subr.bf16.mxu0 %v3567
        %4185 = vmatpush1.bf16.msra.mxu0 %v3566
        %4186 = vmatprep.subr.bf16.mxu0 %v3563
        %4187 = vmatpush1.bf16.msra.mxu0 %v3562
        %4188 = vmatprep.subr.bf16.mxu0 %v3559
        %4189 = vmatpush1.bf16.msra.mxu0 %v3558
        %4190 = vmatprep.subr.bf16.mxu0 %v3555
        %4191 = vmatpush1.bf16.msra.mxu0 %v3554
        %4192 = vmatprep.subr.bf16.mxu0 %v3551
        %4193 = vmatpush1.bf16.msra.mxu0 %v3550
        %4194 = vmatprep.subr.bf16.mxu0 %v3611
        %4195 = vmatpush2.bf16.msra.mxu0 %v3610
        %4196 = vmatprep.subr.bf16.mxu0 %v3607
        %4197 = vmatpush2.bf16.msra.mxu0 %v3606
        %4198 = vmatprep.subr.bf16.mxu0 %v3603
        %4199 = vmatpush2.bf16.msra.mxu0 %v3602
        %4200 = vmatprep.subr.bf16.mxu0 %v3599
        %4201 = vmatpush2.bf16.msra.mxu0 %v3598
        %4202 = vmatprep.subr.bf16.mxu0 %v3595
        %4203 = vmatpush2.bf16.msra.mxu0 %v3594
        %4204 = vmatprep.subr.bf16.mxu0 %v3591
        %4205 = vmatpush2.bf16.msra.mxu0 %v3590
        %4206 = vmatprep.subr.bf16.mxu0 %v3587
        %4207 = vmatpush2.bf16.msra.mxu0 %v3586
        %4208 = vmatprep.subr.bf16.mxu0 %v3583
        %4209 = vmatpush2.bf16.msra.mxu0 %v3582
        %4210 = vmatprep.mubr.bf16.mxu0 %v2371
        %4211 = vmatmul.mubr.bf16.gmra.mxu0 %v2370
        %v4212 = vpop.f32.mrf.mxu0
        %v4213 = vadd.f32 %v4172, %v4212
        %v4214 = vpop.f32.mrf.mxu0
        %v4215 = vadd.f32 %v4174, %v4214
        %v4216 = vpop.f32.mrf.mxu0
        %v4217 = vpop.f32.mrf.mxu0
        %4218 = vdwg.mxu0
        %4219 = vmatprep.subr.bf16.mxu0 %v3643
        %4220 = vmatpush1.bf16.msra.mxu0 %v3642
        %4221 = vmatprep.subr.bf16.mxu0 %v3639
        %4222 = vmatpush1.bf16.msra.mxu0 %v3638
        %4223 = vmatprep.subr.bf16.mxu0 %v3635
        %4224 = vmatpush1.bf16.msra.mxu0 %v3634
        %4225 = vmatprep.subr.bf16.mxu0 %v3631
        %4226 = vmatpush1.bf16.msra.mxu0 %v3630
        %4227 = vmatprep.subr.bf16.mxu0 %v3627
        %4228 = vmatpush1.bf16.msra.mxu0 %v3626
        %4229 = vmatprep.subr.bf16.mxu0 %v3623
        %4230 = vmatpush1.bf16.msra.mxu0 %v3622
        %4231 = vmatprep.subr.bf16.mxu0 %v3619
        %4232 = vmatpush1.bf16.msra.mxu0 %v3618
        %4233 = vmatprep.subr.bf16.mxu0 %v3615
        %4234 = vmatpush1.bf16.msra.mxu0 %v3614
        %4235 = vmatprep.subr.bf16.mxu0 %v3675
        %4236 = vmatpush2.bf16.msra.mxu0 %v3674
        %4237 = vmatprep.subr.bf16.mxu0 %v3671
        %4238 = vmatpush2.bf16.msra.mxu0 %v3670
        %4239 = vmatprep.subr.bf16.mxu0 %v3667
        %4240 = vmatpush2.bf16.msra.mxu0 %v3666
        %4241 = vmatprep.subr.bf16.mxu0 %v3663
        %4242 = vmatpush2.bf16.msra.mxu0 %v3662
        %4243 = vmatprep.subr.bf16.mxu0 %v3659
        %4244 = vmatpush2.bf16.msra.mxu0 %v3658
        %4245 = vmatprep.subr.bf16.mxu0 %v3655
        %4246 = vmatpush2.bf16.msra.mxu0 %v3654
        %4247 = vmatprep.subr.bf16.mxu0 %v3651
        %4248 = vmatpush2.bf16.msra.mxu0 %v3650
        %4249 = vmatprep.subr.bf16.mxu0 %v3647
        %4250 = vmatpush2.bf16.msra.mxu0 %v3646
        %4251 = vmatprep.mubr.bf16.mxu0 %v2373
        %4252 = vmatmul.mubr.bf16.gmra.mxu0 %v2372
        %v4253 = vpop.f32.mrf.mxu0
        %v4254 = vadd.f32 %v4213, %v4253
        %v4255 = vpop.f32.mrf.mxu0
        %v4256 = vadd.f32 %v4215, %v4255
        %v4257 = vpop.f32.mrf.mxu0
        %v4258 = vpop.f32.mrf.mxu0
        %4259 = vdwg.mxu0
        %4260 = vst [vmem:[%s361] sm:$0xff] %v4090
        %4261 = vst [vmem:[%s361 + $0x8] sm:$0xff] %v4092
        %4262 = vst [vmem:[%s361 + $0x10] sm:$0xff] %v4254
        %4263 = vst [vmem:[%s361 + $0x18] sm:$0xff] %v4256
        %s4264 = sand.u32 %s187, 1
        %s4265 = scalar_lea.sflag [#allocation4], %s4264
        %s4266 = sand.u32 %s187, 1
        %s4267 = smul.addr %s4266, 32
        %s4268 = scalar_lea.vmem [#allocation13], %s4267
        // Predicated region
        $region73: #{tpu_custom_call.1} parent=47 // pred_check
          %p4269 = pneg %p197
        $region74: #{tpu_custom_call.1} parent=47 // pred_check_branch
          %4271 = sbr.rel (%p4269) target = $region76
        $region75: #{tpu_custom_call.1} parent=47 // pred_region
          %s4273 = ssub.s32 512, 512
          %4274 = vsyncadd %s4265, %s4273
          %s4275 = smul.addr %s27, 4
          %s4276 = smul.addr %s4275, 128
          %s4277 = scalar_lea.hbm %s7, %s4276
          %s4279 = sshll.u32 %s4268, 4
          %s4280 = int_to_ptr.vmem [resolvable:$true] %s4279
          %4282 = dma.vmem_to_hbm [thread:$0]  %s4280, 512, %s4277, %s4265
        $region76: #{tpu_custom_call.1} parent=47 // pred_fallthru
          _
      $region48: #{tpu_custom_call.1} parent=5 // pred_fallthru
        _
      %p4283 = scmp.le.s32.totalorder 2, %s22
      // Predicated region
      $region77: #{tpu_custom_call.1} parent=5 // pred_check
        %p4284 = pneg %p4283
      $region78: #{tpu_custom_call.1} parent=5 // pred_check_branch
        %4286 = sbr.rel (%p4284) target = $region80
      $region79: #{tpu_custom_call.1} parent=5 // pred_region
        %s4287 = ssub.s32 %s22, 2
        // Predicated region
        $region81: #{tpu_custom_call.1} parent=79 // pred_check
          %p4288 = pneg %p203
        $region82: #{tpu_custom_call.1} parent=79 // pred_check_branch
          %4290 = sbr.rel (%p4288) target = $region84
        $region83: #{tpu_custom_call.1} parent=79 // pred_region
          %s4291 = sand.u32 %s188, 1
          %s4292 = scalar_lea.sflag [#allocation4], %s4291
          %s4293 = sand.u32 %s188, 1
          %s4294 = smul.addr %s4293, 32
          %s4295 = scalar_lea.vmem [#allocation13], %s4294
          %4296 = dma.done %s4292, 512
        $region84: #{tpu_custom_call.1} parent=79 // pred_fallthru
          _
      $region80: #{tpu_custom_call.1} parent=5 // pred_fallthru
        _
    $region6: #{tpu_custom_call.1} parent=1 // loop_footer
      %s26 = sadd.s32 1, %s22
    $region7: #{tpu_custom_call.1} parent=1 // loop_footer_branch
      %21 = sbr.rel target = $region3
    $region8: #{tpu_custom_call.1} parent=1 // loop_exit
      _
    %4297 = vsyncpa [#allocation3], 1
    %s4298 = scalar_lea.sflag [#allocation3], 1
    %4299 = vsyncpa %s4298, 1
    %4300 = vsyncpa [#allocation6], 1
    %4301 = vsyncpa [#allocation9], 1
    %4302 = vsyncpa [#allocation12], 1
    %4303 = vsyncpa [#allocation4], 1
    %s4304 = scalar_lea.sflag [#allocation4], 1
    %4305 = vsyncpa %s4304, 1

</llo_original>
